<compile_context>
chip_gen: v6e
topology: v6e:2x2x1
jax: 0.10.0
libtpu: 0.0.40
codegen_flags: <defaults>
</compile_context>

<pallas_src>
import math
import functools

import numpy as np
import jax
import jax.numpy as jnp
from jax import lax
from jax.experimental import pallas as pl
from jax.experimental.pallas import tpu as pltpu


# ------------------------- configuration (small, synthetic) -------------------------
class Configs:
    depth = 2
    GT_pooling_rate = (1, 2)   # MaxPool1d kernel/stride per GPHT block
    token_len = 8
    GT_d_model = 32
    GT_d_ff = 64
    n_heads = 4
    GT_e_layers = 1            # one EncoderLayer per block
    pred_len = 8               # == token_len (one-token-ahead autoregression, as in GPHT)
    dropout = 0.0              # eval mode -> identity
    activation = "gelu"
    factor = 1
    output_attention = False


NUM_BLOCK_PARAMS = 17          # per-GPHT-block tensors handed to the kernel (fixed order)


# --------------------------------- in-kernel helpers --------------------------------
def _layer_norm(x, g, b, eps=1e-5):
    mu = jnp.mean(x, axis=-1, keepdims=True)
    var = jnp.mean((x - mu) ** 2, axis=-1, keepdims=True)
    return (x - mu) * lax.rsqrt(var + eps) * g + b


def _gelu(x):
    # TODO(synk): torch F.gelu defaults to the erf form; Mosaic has no erf lowering, so
    # the tanh approximation is used (negligible numerical difference).
    return 0.5 * x * (1.0 + jnp.tanh(0.7978845608028654 * (x + 0.044715 * x * x * x)))


# ------------------------------ fused forecast kernel --------------------------------
def _gpht_forecast_kernel(n_heads, multipliers,
                          x_ref, pos_ref, gavg_ref, armask_ref, bias_ref, *refs):
    out_ref = refs[-1]
    param_refs = refs[:-1]
    assert len(param_refs) == NUM_BLOCK_PARAMS * len(multipliers)

    f32, bf16 = jnp.float32, jnp.bfloat16

    x = x_ref[...].astype(f32)      # [R, S]  rows=(b, var, patch), lanes=time in patch
    R, S = x.shape                  # S == token_len
    pos = pos_ref[...]              # [R, D]   positional embedding (tiled)
    gavg = gavg_ref[...]            # [R, R]   block-diag 1/P  (group average)
    armask = armask_ref[...]        # [R, 1]   0 at the first patch of each group, else 1
    attn_bias = bias_ref[...]       # [R, R]   0 / -1e30 block-causal mask (f32)

    # ---- instance norm per (batch, variable) group (torch mean/var over time, eps 1e-5).
    #      Kept in f32; only 2 tiny matmuls per kernel call.
    gmean = jnp.mean(jnp.dot(gavg, x, preferred_element_type=f32),
                     axis=-1, keepdims=True)                               # [R, 1]
    xc = x - gmean
    gvar = jnp.mean(jnp.dot(gavg, xc * xc, preferred_element_type=f32),
                    axis=-1, keepdims=True)                                # [R, 1]
    gstd = jnp.sqrt(gvar + 1e-5)
    xcur = xc * (1.0 / gstd)                                               # normalized input

    dec = jnp.zeros(out_ref.shape, f32)                                    # [R, pred_len]

    for bi, mult in enumerate(multipliers):
        (we_ref, wqkv_ref, bqkv_ref, wo_ref, bo_ref,
         ln1g_ref, ln1b_ref, w1_ref, b1_ref, w2_ref, b2_ref,
         ln2g_ref, ln2b_ref, lnfg_ref, lnfb_ref, wh_ref, bh_ref) = \
            param_refs[bi * NUM_BLOCK_PARAMS:(bi + 1) * NUM_BLOCK_PARAMS]

        # ---- MaxPool1d(mult) along time: lane shift (slice + zero pad) + elementwise max.
        #      Stale (non-pooled) lanes are killed by the zero rows of the expanded value-
        #      embedding weight, so no shifted-in zero ever reaches a used pooled lane.
        pooled = xcur
        for k in range(1, mult):
            shifted = jnp.concatenate([xcur[:, k:], jnp.zeros((R, k), f32)], axis=1)
            pooled = jnp.maximum(pooled, shifted)

        # ---- patch/value embedding (Linear, no bias) + positional embedding ----
        h = jnp.dot(pooled.astype(bf16), we_ref[...], preferred_element_type=f32) + pos

        # ---- causal multi-head self-attention (block-diag mask keeps (b,var) groups apart)
        D = h.shape[-1]
        hd = D // n_heads
        scale = 1.0 / math.sqrt(hd)

        # fused QKV projection: one [R, D] x [D, 3D] matmul, then static lane slices
        qkv = (jnp.dot(h.astype(bf16), wqkv_ref[...], preferred_element_type=f32)
               + bqkv_ref[...])                                            # [R, 3D] f32
        heads = []
        for hh in range(n_heads):
            qh = qkv[:, hh * hd:(hh + 1) * hd].astype(bf16)
            kh = qkv[:, D + hh * hd:D + (hh + 1) * hd].astype(bf16)
            vh = qkv[:, 2 * D + hh * hd:2 * D + (hh + 1) * hd].astype(bf16)
            sc = lax.dot_general(qh, kh, (((1,), (1,)), ((), ())),
                                 preferred_element_type=f32) * scale + attn_bias
            sc = sc - jnp.max(sc, axis=-1, keepdims=True)
            e = jnp.exp(sc)
            a = e * pl.reciprocal(jnp.sum(e, axis=-1, keepdims=True), approx=True)
            heads.append(jnp.dot(a.astype(bf16), vh, preferred_element_type=f32))
        # concat head outputs along lanes -> single [D, D] output projection
        attn = (jnp.dot(jnp.concatenate(heads, axis=-1).astype(bf16), wo_ref[...],
                        preferred_element_type=f32) + bo_ref[...])

        x1 = _layer_norm(h + attn, ln1g_ref[...], ln1b_ref[...])

        # ---- position-wise FFN (Conv1d kernel_size=1 == Linear) ----
        y = jnp.dot(x1.astype(bf16), w1_ref[...], preferred_element_type=f32) + b1_ref[...]
        y = _gelu(y)
        y = jnp.dot(y.astype(bf16), w2_ref[...], preferred_element_type=f32) + b2_ref[...]
        x2 = _layer_norm(x1 + y, ln2g_ref[...], ln2b_ref[...])

        # ---- Encoder final LayerNorm + forecast head Linear(d_model, pred_len) ----
        x3 = _layer_norm(x2, lnfg_ref[...], lnfb_ref[...])
        ho = jnp.dot(x3.astype(bf16), wh_ref[...], preferred_element_type=f32) + bh_ref[...]

        dec = dec + ho                                   # dec_out += out_enc[:, -seq_len:, :]
        if bi < len(multipliers) - 1:
            # AR roll: shift the block output down by one patch (one sublane row) inside
            # each (batch, var) group; group boundaries (p == 0) are masked to zero.
            ho_shift = jnp.concatenate(
                [jnp.zeros((1, ho.shape[1]), f32), ho[:-1, :]], axis=0)
            xcur = xcur - ho_shift * armask

    # ---- de-normalize and write back.
    # TODO(synk): at real sizes pack the output lane-dense ([BN, P*pred_len]) to avoid
    #             8-lane masked vst.msk stores; negligible at this toy size.
    out_ref[...] = (dec * gstd + gmean).astype(out_ref.dtype)


# -------------------------- wrapper-side constant/parameter prep ---------------------
def _sinusoidal_pos(P, d_model):
    pos = np.arange(P, dtype=np.float32)[:, None]
    div = np.exp(np.arange(0, d_model, 2, dtype=np.float32)
                 * (-math.log(10000.0) / d_model))
    pe = np.zeros((P, d_model), np.float32)
    pe[:, 0::2] = np.sin(pos * div)
    pe[:, 1::2] = np.cos(pos * div)
    return jnp.asarray(pe)


def _group_constants(groups, P):
    """Constant matrices encoding the per-(batch,variable) group structure of the rows."""
    r = groups * P
    g = np.arange(r) // P
    p = np.arange(r) % P
    same = g[:, None] == g[None, :]
    gavg = same.astype(np.float32) / P                                     # group average
    causal = same & (p[None, :] <= p[:, None])
    attn_bias = np.where(causal, 0.0, -1e30).astype(np.float32)            # block-causal
    armask = (p != 0).astype(np.float32)[:, None]                          # [r, 1]
    return jnp.asarray(gavg), jnp.asarray(attn_bias), jnp.asarray(armask)


def _prep_block_params(raw, token_len, mult):
    """Pack one GPHTBlock's weights into the fixed kernel layout (fused QKV, bf16 weights)."""
    d_model = raw['wq'].shape[0]
    # value-embedding weight expanded to token_len rows; zero rows at non-pooled lanes
    we_exp = jnp.zeros((token_len, d_model), jnp.float32).at[::mult].set(raw['we'])
    wqkv = jnp.concatenate([raw['wq'], raw['wk'], raw['wv']], axis=1)      # [D, 3D]
    bqkv = jnp.concatenate([raw['bq'], raw['bk'], raw['bv']])[None, :]     # [1, 3D]

    bf = lambda w: w.astype(jnp.bfloat16)    # MXU operands in bf16, f32 accumulation
    row = lambda v: v[None, :]               # biases / LN params stay f32

    return [
        bf(we_exp),
        bf(wqkv), bqkv,
        bf(raw['wo']), row(raw['bo']),
        row(raw['ln1_g']), row(raw['ln1_b']),
        bf(raw['w1']), row(raw['b1']),
        bf(raw['w2']), row(raw['b2']),
        row(raw['ln2_g']), row(raw['ln2_b']),
        row(raw['lnf_g']), row(raw['lnf_b']),
        bf(raw['wh']), row(raw['bh']),
    ]


def _num_row_splits(BN, P):
    """Split the rows over 2 grid steps only on 2-TensorCore parts (v7x megacore).

    On single-TC v5e/v6e the grid is a serial loop, so splitting only halves sublane
    occupancy and adds per-step overhead; keep grid=(1,) there.
    """
    try:
        kind = jax.devices()[0].device_kind.lower()
    except Exception:
        kind = ""
    two_tc = ("v7" in kind) or ("7x" in kind)
    if two_tc and BN % 2 == 0 and ((BN // 2) * P) % 8 == 0:
        return 2
    return 1


# ------------------------------------- forecast --------------------------------------
def forecast(x_enc, params, cfg):
    B, L, nv = x_enc.shape
    token_len, pred_len = cfg.token_len, cfg.pred_len
    assert L % token_len == 0
    assert pred_len == token_len, "GPHT uses one-token-ahead AR (pred_len == token_len)"
    P = L // token_len
    BN = B * nv
    splits = _num_row_splits(BN, P)
    bn_blk = BN // splits
    R_blk = bn_blk * P
    d_model = cfg.GT_d_model

    # [B, L, nv] -> flat rows (b, var, patch), lanes = within-patch time
    x_flat = jnp.transpose(x_enc, (0, 2, 1)).reshape(BN * P, token_len)

    pos_tiled = jnp.tile(_sinusoidal_pos(P, d_model), (bn_blk, 1))          # [R_blk, D]
    gavg, attn_bias, armask = _group_constants(bn_blk, P)
    # TODO(synk): at real sizes move the group structure onto the grid (per-group steps)
    #             so the [R,R] gavg / attn_bias constants (quadratic in rows) disappear
    #             and mark the weight inputs pipeline_mode=pl.Buffered(1).

    flat_params = []
    for i in range(cfg.depth):
        flat_params += _prep_block_params(params[i], token_len, cfg.GT_pooling_rate[i])

    kernel = functools.partial(_gpht_forecast_kernel, cfg.n_heads,
                               tuple(cfg.GT_pooling_rate[:cfg.depth]))

    def const_spec(a):
        return pl.BlockSpec(a.shape, lambda i, _nd=a.ndim: (0,) * _nd)

    in_specs = ([pl.BlockSpec((R_blk, token_len), lambda i: (i, 0))]
                + [const_spec(a) for a in (pos_tiled, gavg, armask, attn_bias)]
                + [const_spec(a) for a in flat_params])
    out_specs = pl.BlockSpec((R_blk, pred_len), lambda i: (i, 0))

    dec_flat = pl.pallas_call(
        kernel,
        grid=(splits,),
        in_specs=in_specs,
        out_specs=out_specs,
        out_shape=jax.ShapeDtypeStruct((BN * P, pred_len), jnp.float32),
        compiler_params=pltpu.CompilerParams(
            dimension_semantics=("parallel",) if splits > 1 else ("arbitrary",)),
    )(x_flat, pos_tiled, gavg, armask, attn_bias, *flat_params)

    dec = dec_flat.reshape(B, nv, P * pred_len)
    return jnp.transpose(dec, (0, 2, 1))                                    # [B, L, nv]


# --------------------------------- parameter init ------------------------------------
def init_block_params(key, patch_size, d_model, d_ff, pred_len):
    ks = jax.random.split(key, 8)
    s = 0.05
    nrm = lambda k, shape: jax.random.normal(k, shape, jnp.float32) * s
    zeros = lambda n: jnp.zeros((n,), jnp.float32)
    ones = lambda n: jnp.ones((n,), jnp.float32)
    return {
        'we': nrm(ks[0], (patch_size, d_model)),   # Linear(patch_size, d_model, bias=False)
        'wq': nrm(ks[1], (d_model, d_model)), 'bq': zeros(d_model),
        'wk': nrm(ks[2], (d_model, d_model)), 'bk': zeros(d_model),
        'wv': nrm(ks[3], (d_model, d_model)), 'bv': zeros(d_model),
        'wo': nrm(ks[4], (d_model, d_model)), 'bo': zeros(d_model),
        'ln1_g': ones(d_model), 'ln1_b': zeros(d_model),
        'w1': nrm(ks[5], (d_model, d_ff)), 'b1': zeros(d_ff),
        'w2': nrm(ks[6], (d_ff, d_model)), 'b2': zeros(d_model),
        'ln2_g': ones(d_model), 'ln2_b': zeros(d_model),
        'lnf_g': ones(d_model), 'lnf_b': zeros(d_model),
        'wh': nrm(ks[7], (d_model, pred_len)), 'bh': zeros(pred_len),
    }


# --------------------------------------- main -----------------------------------------
if __name__ == "__main__":
    cfg = Configs()
    B, seq_len, n_vars = 2, 32, 4            # seq_len must be a multiple of token_len

    key = jax.random.PRNGKey(0)
    k_x, k_p = jax.random.split(key)
    x_enc = jax.random.normal(k_x, (B, seq_len, n_vars), jnp.float32)

    pkeys = jax.random.split(k_p, cfg.depth)
    params = [init_block_params(pkeys[i],
                                cfg.token_len // cfg.GT_pooling_rate[i],
                                cfg.GT_d_model, cfg.GT_d_ff, cfg.pred_len)
              for i in range(cfg.depth)]

    # TODO(synk): dropout layers are identity (eval mode); GT_e_layers fixed at 1.
    out = jax.jit(lambda xe: forecast(xe, params, cfg))(x_enc)
    jax.block_until_ready(out)
    assert out.shape == (B, seq_len, n_vars)
    print("KERNEL_OK")
</pallas_src>

<mosaic_0001>
module attributes {stable_mosaic.version = 11 : i64} {
  func.func @_gpht_forecast_kernel(%arg0: i32, %arg1: memref<32x8xf32, #tpu.memory_space<vmem>>, %arg2: memref<32x32xf32, #tpu.memory_space<vmem>>, %arg3: memref<32x32xf32, #tpu.memory_space<vmem>>, %arg4: memref<32x1xf32, #tpu.memory_space<vmem>>, %arg5: memref<32x32xf32, #tpu.memory_space<vmem>>, %arg6: memref<8x32xbf16, #tpu.memory_space<vmem>>, %arg7: memref<32x96xbf16, #tpu.memory_space<vmem>>, %arg8: memref<1x96xf32, #tpu.memory_space<vmem>>, %arg9: memref<32x32xbf16, #tpu.memory_space<vmem>>, %arg10: memref<1x32xf32, #tpu.memory_space<vmem>>, %arg11: memref<1x32xf32, #tpu.memory_space<vmem>>, %arg12: memref<1x32xf32, #tpu.memory_space<vmem>>, %arg13: memref<32x64xbf16, #tpu.memory_space<vmem>>, %arg14: memref<1x64xf32, #tpu.memory_space<vmem>>, %arg15: memref<64x32xbf16, #tpu.memory_space<vmem>>, %arg16: memref<1x32xf32, #tpu.memory_space<vmem>>, %arg17: memref<1x32xf32, #tpu.memory_space<vmem>>, %arg18: memref<1x32xf32, #tpu.memory_space<vmem>>, %arg19: memref<1x32xf32, #tpu.memory_space<vmem>>, %arg20: memref<1x32xf32, #tpu.memory_space<vmem>>, %arg21: memref<32x8xbf16, #tpu.memory_space<vmem>>, %arg22: memref<1x8xf32, #tpu.memory_space<vmem>>, %arg23: memref<8x32xbf16, #tpu.memory_space<vmem>>, %arg24: memref<32x96xbf16, #tpu.memory_space<vmem>>, %arg25: memref<1x96xf32, #tpu.memory_space<vmem>>, %arg26: memref<32x32xbf16, #tpu.memory_space<vmem>>, %arg27: memref<1x32xf32, #tpu.memory_space<vmem>>, %arg28: memref<1x32xf32, #tpu.memory_space<vmem>>, %arg29: memref<1x32xf32, #tpu.memory_space<vmem>>, %arg30: memref<32x64xbf16, #tpu.memory_space<vmem>>, %arg31: memref<1x64xf32, #tpu.memory_space<vmem>>, %arg32: memref<64x32xbf16, #tpu.memory_space<vmem>>, %arg33: memref<1x32xf32, #tpu.memory_space<vmem>>, %arg34: memref<1x32xf32, #tpu.memory_space<vmem>>, %arg35: memref<1x32xf32, #tpu.memory_space<vmem>>, %arg36: memref<1x32xf32, #tpu.memory_space<vmem>>, %arg37: memref<1x32xf32, #tpu.memory_space<vmem>>, %arg38: memref<32x8xbf16, #tpu.memory_space<vmem>>, %arg39: memref<1x8xf32, #tpu.memory_space<vmem>>, %arg40: memref<32x8xf32, #tpu.memory_space<vmem>>) attributes {dimension_semantics = [#tpu.dimension_semantics<arbitrary>], iteration_bounds = array<i64: 1>, scalar_prefetch = 0 : i64, scratch_operands = 0 : i64, tpu.core_type = #tpu.core_type<tc>, window_params = [{transform_indices = @transform_0, window_bounds = array<i64: 32, 8>}, {pipeline_mode = #tpu.pipeline_mode<synchronous>, transform_indices = @transform_1, window_bounds = array<i64: 32, 32>}, {pipeline_mode = #tpu.pipeline_mode<synchronous>, transform_indices = @transform_2, window_bounds = array<i64: 32, 32>}, {pipeline_mode = #tpu.pipeline_mode<synchronous>, transform_indices = @transform_3, window_bounds = array<i64: 32, 1>}, {pipeline_mode = #tpu.pipeline_mode<synchronous>, transform_indices = @transform_4, window_bounds = array<i64: 32, 32>}, {pipeline_mode = #tpu.pipeline_mode<synchronous>, transform_indices = @transform_5, window_bounds = array<i64: 8, 32>}, {pipeline_mode = #tpu.pipeline_mode<synchronous>, transform_indices = @transform_6, window_bounds = array<i64: 32, 96>}, {pipeline_mode = #tpu.pipeline_mode<synchronous>, transform_indices = @transform_7, window_bounds = array<i64: 1, 96>}, {pipeline_mode = #tpu.pipeline_mode<synchronous>, transform_indices = @transform_8, window_bounds = array<i64: 32, 32>}, {pipeline_mode = #tpu.pipeline_mode<synchronous>, transform_indices = @transform_9, window_bounds = array<i64: 1, 32>}, {pipeline_mode = #tpu.pipeline_mode<synchronous>, transform_indices = @transform_10, window_bounds = array<i64: 1, 32>}, {pipeline_mode = #tpu.pipeline_mode<synchronous>, transform_indices = @transform_11, window_bounds = array<i64: 1, 32>}, {pipeline_mode = #tpu.pipeline_mode<synchronous>, transform_indices = @transform_12, window_bounds = array<i64: 32, 64>}, {pipeline_mode = #tpu.pipeline_mode<synchronous>, transform_indices = @transform_13, window_bounds = array<i64: 1, 64>}, {pipeline_mode = #tpu.pipeline_mode<synchronous>, transform_indices = @transform_14, window_bounds = array<i64: 64, 32>}, {pipeline_mode = #tpu.pipeline_mode<synchronous>, transform_indices = @transform_15, window_bounds = array<i64: 1, 32>}, {pipeline_mode = #tpu.pipeline_mode<synchronous>, transform_indices = @transform_16, window_bounds = array<i64: 1, 32>}, {pipeline_mode = #tpu.pipeline_mode<synchronous>, transform_indices = @transform_17, window_bounds = array<i64: 1, 32>}, {pipeline_mode = #tpu.pipeline_mode<synchronous>, transform_indices = @transform_18, window_bounds = array<i64: 1, 32>}, {pipeline_mode = #tpu.pipeline_mode<synchronous>, transform_indices = @transform_19, window_bounds = array<i64: 1, 32>}, {pipeline_mode = #tpu.pipeline_mode<synchronous>, transform_indices = @transform_20, window_bounds = array<i64: 32, 8>}, {pipeline_mode = #tpu.pipeline_mode<synchronous>, transform_indices = @transform_21, window_bounds = array<i64: 1, 8>}, {pipeline_mode = #tpu.pipeline_mode<synchronous>, transform_indices = @transform_22, window_bounds = array<i64: 8, 32>}, {pipeline_mode = #tpu.pipeline_mode<synchronous>, transform_indices = @transform_23, window_bounds = array<i64: 32, 96>}, {pipeline_mode = #tpu.pipeline_mode<synchronous>, transform_indices = @transform_24, window_bounds = array<i64: 1, 96>}, {pipeline_mode = #tpu.pipeline_mode<synchronous>, transform_indices = @transform_25, window_bounds = array<i64: 32, 32>}, {pipeline_mode = #tpu.pipeline_mode<synchronous>, transform_indices = @transform_26, window_bounds = array<i64: 1, 32>}, {pipeline_mode = #tpu.pipeline_mode<synchronous>, transform_indices = @transform_27, window_bounds = array<i64: 1, 32>}, {pipeline_mode = #tpu.pipeline_mode<synchronous>, transform_indices = @transform_28, window_bounds = array<i64: 1, 32>}, {pipeline_mode = #tpu.pipeline_mode<synchronous>, transform_indices = @transform_29, window_bounds = array<i64: 32, 64>}, {pipeline_mode = #tpu.pipeline_mode<synchronous>, transform_indices = @transform_30, window_bounds = array<i64: 1, 64>}, {pipeline_mode = #tpu.pipeline_mode<synchronous>, transform_indices = @transform_31, window_bounds = array<i64: 64, 32>}, {pipeline_mode = #tpu.pipeline_mode<synchronous>, transform_indices = @transform_32, window_bounds = array<i64: 1, 32>}, {pipeline_mode = #tpu.pipeline_mode<synchronous>, transform_indices = @transform_33, window_bounds = array<i64: 1, 32>}, {pipeline_mode = #tpu.pipeline_mode<synchronous>, transform_indices = @transform_34, window_bounds = array<i64: 1, 32>}, {pipeline_mode = #tpu.pipeline_mode<synchronous>, transform_indices = @transform_35, window_bounds = array<i64: 1, 32>}, {pipeline_mode = #tpu.pipeline_mode<synchronous>, transform_indices = @transform_36, window_bounds = array<i64: 1, 32>}, {pipeline_mode = #tpu.pipeline_mode<synchronous>, transform_indices = @transform_37, window_bounds = array<i64: 32, 8>}, {pipeline_mode = #tpu.pipeline_mode<synchronous>, transform_indices = @transform_38, window_bounds = array<i64: 1, 8>}, {transform_indices = @transform_39, window_bounds = array<i64: 32, 8>}]} {
    %c0 = arith.constant 0 : index
    %c0_0 = arith.constant 0 : index
    %0 = vector.load %arg1[%c0, %c0_0] : memref<32x8xf32, #tpu.memory_space<vmem>>, vector<32x8xf32>
    %c0_1 = arith.constant 0 : index
    %c0_2 = arith.constant 0 : index
    %1 = vector.load %arg2[%c0_1, %c0_2] : memref<32x32xf32, #tpu.memory_space<vmem>>, vector<32x32xf32>
    %c0_3 = arith.constant 0 : index
    %c0_4 = arith.constant 0 : index
    %2 = vector.load %arg3[%c0_3, %c0_4] : memref<32x32xf32, #tpu.memory_space<vmem>>, vector<32x32xf32>
    %c0_5 = arith.constant 0 : index
    %c0_6 = arith.constant 0 : index
    %3 = vector.load %arg4[%c0_5, %c0_6] : memref<32x1xf32, #tpu.memory_space<vmem>>, vector<32x1xf32>
    %c0_7 = arith.constant 0 : index
    %c0_8 = arith.constant 0 : index
    %4 = vector.load %arg5[%c0_7, %c0_8] : memref<32x32xf32, #tpu.memory_space<vmem>>, vector<32x32xf32>
    %cst = arith.constant dense<0.000000e+00> : vector<32x8xf32>
    %5 = tpu.matmul %2, %0, %cst {dimension_numbers = #tpu.dot_dimension_numbers<[1], [0], [0], [1], [0, 0, 1, 1], [], []>} : vector<32x32xf32>, vector<32x8xf32>, vector<32x8xf32> -> vector<32x8xf32>
    %cst_9 = arith.constant dense<0.000000e+00> : vector<32xf32>
    %6 = vector.multi_reduction <add>, %5, %cst_9 [1] : vector<32x8xf32> to vector<32xf32>
    %7 = vector.shape_cast %6 : vector<32xf32> to vector<32x1xf32>
    %cst_10 = arith.constant 8.000000e+00 : f32
    %8 = vector.broadcast %cst_10 : f32 to vector<32x1xf32>
    %9 = arith.divf %7, %8 : vector<32x1xf32>
    %10 = vector.broadcast %9 : vector<32x1xf32> to vector<32x8xf32>
    %11 = arith.subf %0, %10 : vector<32x8xf32>
    %12 = arith.mulf %11, %11 : vector<32x8xf32>
    %cst_11 = arith.constant dense<0.000000e+00> : vector<32x8xf32>
    %13 = tpu.matmul %2, %12, %cst_11 {dimension_numbers = #tpu.dot_dimension_numbers<[1], [0], [0], [1], [0, 0, 1, 1], [], []>} : vector<32x32xf32>, vector<32x8xf32>, vector<32x8xf32> -> vector<32x8xf32>
    %cst_12 = arith.constant dense<0.000000e+00> : vector<32xf32>
    %14 = vector.multi_reduction <add>, %13, %cst_12 [1] : vector<32x8xf32> to vector<32xf32>
    %15 = vector.shape_cast %14 : vector<32xf32> to vector<32x1xf32>
    %cst_13 = arith.constant 8.000000e+00 : f32
    %16 = vector.broadcast %cst_13 : f32 to vector<32x1xf32>
    %17 = arith.divf %15, %16 : vector<32x1xf32>
    %cst_14 = arith.constant 9.99999974E-6 : f32
    %18 = vector.broadcast %cst_14 : f32 to vector<32x1xf32>
    %19 = arith.addf %17, %18 : vector<32x1xf32>
    %20 = math.sqrt %19 : vector<32x1xf32>
    %cst_15 = arith.constant 1.000000e+00 : f32
    %21 = vector.broadcast %cst_15 : f32 to vector<32x1xf32>
    %22 = arith.divf %21, %20 : vector<32x1xf32>
    %23 = vector.broadcast %22 : vector<32x1xf32> to vector<32x8xf32>
    %24 = arith.mulf %11, %23 : vector<32x8xf32>
    %cst_16 = arith.constant 0.000000e+00 : f32
    %25 = vector.broadcast %cst_16 : f32 to vector<32x8xf32>
    %26 = arith.truncf %24 : vector<32x8xf32> to vector<32x8xbf16>
    %c0_17 = arith.constant 0 : index
    %c0_18 = arith.constant 0 : index
    %27 = vector.load %arg6[%c0_17, %c0_18] : memref<8x32xbf16, #tpu.memory_space<vmem>>, vector<8x32xbf16>
    %cst_19 = arith.constant dense<0.000000e+00> : vector<32x32xf32>
    %28 = tpu.matmul %26, %27, %cst_19 {dimension_numbers = #tpu.dot_dimension_numbers<[1], [0], [0], [1], [0, 0, 1, 1], [], []>} : vector<32x8xbf16>, vector<8x32xbf16>, vector<32x32xf32> -> vector<32x32xf32>
    %29 = arith.addf %28, %1 : vector<32x32xf32>
    %30 = arith.truncf %29 : vector<32x32xf32> to vector<32x32xbf16>
    %c0_20 = arith.constant 0 : index
    %c0_21 = arith.constant 0 : index
    %31 = vector.load %arg7[%c0_20, %c0_21] : memref<32x96xbf16, #tpu.memory_space<vmem>>, vector<32x96xbf16>
    %cst_22 = arith.constant dense<0.000000e+00> : vector<32x96xf32>
    %32 = tpu.matmul %30, %31, %cst_22 {dimension_numbers = #tpu.dot_dimension_numbers<[1], [0], [0], [1], [0, 0, 1, 1], [], []>} : vector<32x32xbf16>, vector<32x96xbf16>, vector<32x96xf32> -> vector<32x96xf32>
    %c0_23 = arith.constant 0 : index
    %c0_24 = arith.constant 0 : index
    %33 = vector.load %arg8[%c0_23, %c0_24] : memref<1x96xf32, #tpu.memory_space<vmem>>, vector<1x96xf32>
    %34 = vector.broadcast %33 : vector<1x96xf32> to vector<32x96xf32>
    %35 = arith.addf %32, %34 : vector<32x96xf32>
    %36 = vector.extract_strided_slice %35 {offsets = [0, 0], sizes = [32, 8], strides = [1, 1]} : vector<32x96xf32> to vector<32x8xf32>
    %37 = arith.truncf %36 : vector<32x8xf32> to vector<32x8xbf16>
    %38 = vector.extract_strided_slice %35 {offsets = [0, 32], sizes = [32, 8], strides = [1, 1]} : vector<32x96xf32> to vector<32x8xf32>
    %39 = arith.truncf %38 : vector<32x8xf32> to vector<32x8xbf16>
    %40 = vector.extract_strided_slice %35 {offsets = [0, 64], sizes = [32, 8], strides = [1, 1]} : vector<32x96xf32> to vector<32x8xf32>
    %41 = arith.truncf %40 : vector<32x8xf32> to vector<32x8xbf16>
    %cst_25 = arith.constant dense<0.000000e+00> : vector<32x32xf32>
    %42 = tpu.matmul %37, %39, %cst_25 {dimension_numbers = #tpu.dot_dimension_numbers<[1], [1], [0], [0], [0, 0, 1, 0], [], []>} : vector<32x8xbf16>, vector<32x8xbf16>, vector<32x32xf32> -> vector<32x32xf32>
    %cst_26 = arith.constant 0.353553385 : f32
    %43 = vector.broadcast %cst_26 : f32 to vector<32x32xf32>
    %44 = arith.mulf %42, %43 : vector<32x32xf32>
    %45 = arith.addf %44, %4 : vector<32x32xf32>
    %cst_27 = arith.constant dense<0xFF800000> : vector<32xf32>
    %46 = vector.multi_reduction <maximumf>, %45, %cst_27 [1] : vector<32x32xf32> to vector<32xf32>
    %47 = vector.shape_cast %46 : vector<32xf32> to vector<32x1xf32>
    %48 = vector.broadcast %47 : vector<32x1xf32> to vector<32x32xf32>
    %49 = arith.subf %45, %48 : vector<32x32xf32>
    %50 = math.exp %49 : vector<32x32xf32>
    %cst_28 = arith.constant dense<0.000000e+00> : vector<32xf32>
    %51 = vector.multi_reduction <add>, %50, %cst_28 [1] : vector<32x32xf32> to vector<32xf32>
    %52 = vector.shape_cast %51 : vector<32xf32> to vector<32x1xf32>
    %53 = tpu.reciprocal %52 {approx = true} : vector<32x1xf32> -> vector<32x1xf32>
    %54 = vector.broadcast %53 : vector<32x1xf32> to vector<32x32xf32>
    %55 = arith.mulf %50, %54 : vector<32x32xf32>
    %56 = arith.truncf %55 : vector<32x32xf32> to vector<32x32xbf16>
    %cst_29 = arith.constant dense<0.000000e+00> : vector<32x8xf32>
    %57 = tpu.matmul %56, %41, %cst_29 {dimension_numbers = #tpu.dot_dimension_numbers<[1], [0], [0], [1], [0, 0, 1, 1], [], []>} : vector<32x32xbf16>, vector<32x8xbf16>, vector<32x8xf32> -> vector<32x8xf32>
    %58 = vector.extract_strided_slice %35 {offsets = [0, 8], sizes = [32, 8], strides = [1, 1]} : vector<32x96xf32> to vector<32x8xf32>
    %59 = arith.truncf %58 : vector<32x8xf32> to vector<32x8xbf16>
    %60 = vector.extract_strided_slice %35 {offsets = [0, 40], sizes = [32, 8], strides = [1, 1]} : vector<32x96xf32> to vector<32x8xf32>
    %61 = arith.truncf %60 : vector<32x8xf32> to vector<32x8xbf16>
    %62 = vector.extract_strided_slice %35 {offsets = [0, 72], sizes = [32, 8], strides = [1, 1]} : vector<32x96xf32> to vector<32x8xf32>
    %63 = arith.truncf %62 : vector<32x8xf32> to vector<32x8xbf16>
    %cst_30 = arith.constant dense<0.000000e+00> : vector<32x32xf32>
    %64 = tpu.matmul %59, %61, %cst_30 {dimension_numbers = #tpu.dot_dimension_numbers<[1], [1], [0], [0], [0, 0, 1, 0], [], []>} : vector<32x8xbf16>, vector<32x8xbf16>, vector<32x32xf32> -> vector<32x32xf32>
    %cst_31 = arith.constant 0.353553385 : f32
    %65 = vector.broadcast %cst_31 : f32 to vector<32x32xf32>
    %66 = arith.mulf %64, %65 : vector<32x32xf32>
    %67 = arith.addf %66, %4 : vector<32x32xf32>
    %cst_32 = arith.constant dense<0xFF800000> : vector<32xf32>
    %68 = vector.multi_reduction <maximumf>, %67, %cst_32 [1] : vector<32x32xf32> to vector<32xf32>
    %69 = vector.shape_cast %68 : vector<32xf32> to vector<32x1xf32>
    %70 = vector.broadcast %69 : vector<32x1xf32> to vector<32x32xf32>
    %71 = arith.subf %67, %70 : vector<32x32xf32>
    %72 = math.exp %71 : vector<32x32xf32>
    %cst_33 = arith.constant dense<0.000000e+00> : vector<32xf32>
    %73 = vector.multi_reduction <add>, %72, %cst_33 [1] : vector<32x32xf32> to vector<32xf32>
    %74 = vector.shape_cast %73 : vector<32xf32> to vector<32x1xf32>
    %75 = tpu.reciprocal %74 {approx = true} : vector<32x1xf32> -> vector<32x1xf32>
    %76 = vector.broadcast %75 : vector<32x1xf32> to vector<32x32xf32>
    %77 = arith.mulf %72, %76 : vector<32x32xf32>
    %78 = arith.truncf %77 : vector<32x32xf32> to vector<32x32xbf16>
    %cst_34 = arith.constant dense<0.000000e+00> : vector<32x8xf32>
    %79 = tpu.matmul %78, %63, %cst_34 {dimension_numbers = #tpu.dot_dimension_numbers<[1], [0], [0], [1], [0, 0, 1, 1], [], []>} : vector<32x32xbf16>, vector<32x8xbf16>, vector<32x8xf32> -> vector<32x8xf32>
    %80 = vector.extract_strided_slice %35 {offsets = [0, 16], sizes = [32, 8], strides = [1, 1]} : vector<32x96xf32> to vector<32x8xf32>
    %81 = arith.truncf %80 : vector<32x8xf32> to vector<32x8xbf16>
    %82 = vector.extract_strided_slice %35 {offsets = [0, 48], sizes = [32, 8], strides = [1, 1]} : vector<32x96xf32> to vector<32x8xf32>
    %83 = arith.truncf %82 : vector<32x8xf32> to vector<32x8xbf16>
    %84 = vector.extract_strided_slice %35 {offsets = [0, 80], sizes = [32, 8], strides = [1, 1]} : vector<32x96xf32> to vector<32x8xf32>
    %85 = arith.truncf %84 : vector<32x8xf32> to vector<32x8xbf16>
    %cst_35 = arith.constant dense<0.000000e+00> : vector<32x32xf32>
    %86 = tpu.matmul %81, %83, %cst_35 {dimension_numbers = #tpu.dot_dimension_numbers<[1], [1], [0], [0], [0, 0, 1, 0], [], []>} : vector<32x8xbf16>, vector<32x8xbf16>, vector<32x32xf32> -> vector<32x32xf32>
    %cst_36 = arith.constant 0.353553385 : f32
    %87 = vector.broadcast %cst_36 : f32 to vector<32x32xf32>
    %88 = arith.mulf %86, %87 : vector<32x32xf32>
    %89 = arith.addf %88, %4 : vector<32x32xf32>
    %cst_37 = arith.constant dense<0xFF800000> : vector<32xf32>
    %90 = vector.multi_reduction <maximumf>, %89, %cst_37 [1] : vector<32x32xf32> to vector<32xf32>
    %91 = vector.shape_cast %90 : vector<32xf32> to vector<32x1xf32>
    %92 = vector.broadcast %91 : vector<32x1xf32> to vector<32x32xf32>
    %93 = arith.subf %89, %92 : vector<32x32xf32>
    %94 = math.exp %93 : vector<32x32xf32>
    %cst_38 = arith.constant dense<0.000000e+00> : vector<32xf32>
    %95 = vector.multi_reduction <add>, %94, %cst_38 [1] : vector<32x32xf32> to vector<32xf32>
    %96 = vector.shape_cast %95 : vector<32xf32> to vector<32x1xf32>
    %97 = tpu.reciprocal %96 {approx = true} : vector<32x1xf32> -> vector<32x1xf32>
    %98 = vector.broadcast %97 : vector<32x1xf32> to vector<32x32xf32>
    %99 = arith.mulf %94, %98 : vector<32x32xf32>
    %100 = arith.truncf %99 : vector<32x32xf32> to vector<32x32xbf16>
    %cst_39 = arith.constant dense<0.000000e+00> : vector<32x8xf32>
    %101 = tpu.matmul %100, %85, %cst_39 {dimension_numbers = #tpu.dot_dimension_numbers<[1], [0], [0], [1], [0, 0, 1, 1], [], []>} : vector<32x32xbf16>, vector<32x8xbf16>, vector<32x8xf32> -> vector<32x8xf32>
    %102 = vector.extract_strided_slice %35 {offsets = [0, 24], sizes = [32, 8], strides = [1, 1]} : vector<32x96xf32> to vector<32x8xf32>
    %103 = arith.truncf %102 : vector<32x8xf32> to vector<32x8xbf16>
    %104 = vector.extract_strided_slice %35 {offsets = [0, 56], sizes = [32, 8], strides = [1, 1]} : vector<32x96xf32> to vector<32x8xf32>
    %105 = arith.truncf %104 : vector<32x8xf32> to vector<32x8xbf16>
    %106 = vector.extract_strided_slice %35 {offsets = [0, 88], sizes = [32, 8], strides = [1, 1]} : vector<32x96xf32> to vector<32x8xf32>
    %107 = arith.truncf %106 : vector<32x8xf32> to vector<32x8xbf16>
    %cst_40 = arith.constant dense<0.000000e+00> : vector<32x32xf32>
    %108 = tpu.matmul %103, %105, %cst_40 {dimension_numbers = #tpu.dot_dimension_numbers<[1], [1], [0], [0], [0, 0, 1, 0], [], []>} : vector<32x8xbf16>, vector<32x8xbf16>, vector<32x32xf32> -> vector<32x32xf32>
    %cst_41 = arith.constant 0.353553385 : f32
    %109 = vector.broadcast %cst_41 : f32 to vector<32x32xf32>
    %110 = arith.mulf %108, %109 : vector<32x32xf32>
    %111 = arith.addf %110, %4 : vector<32x32xf32>
    %cst_42 = arith.constant dense<0xFF800000> : vector<32xf32>
    %112 = vector.multi_reduction <maximumf>, %111, %cst_42 [1] : vector<32x32xf32> to vector<32xf32>
    %113 = vector.shape_cast %112 : vector<32xf32> to vector<32x1xf32>
    %114 = vector.broadcast %113 : vector<32x1xf32> to vector<32x32xf32>
    %115 = arith.subf %111, %114 : vector<32x32xf32>
    %116 = math.exp %115 : vector<32x32xf32>
    %cst_43 = arith.constant dense<0.000000e+00> : vector<32xf32>
    %117 = vector.multi_reduction <add>, %116, %cst_43 [1] : vector<32x32xf32> to vector<32xf32>
    %118 = vector.shape_cast %117 : vector<32xf32> to vector<32x1xf32>
    %119 = tpu.reciprocal %118 {approx = true} : vector<32x1xf32> -> vector<32x1xf32>
    %120 = vector.broadcast %119 : vector<32x1xf32> to vector<32x32xf32>
    %121 = arith.mulf %116, %120 : vector<32x32xf32>
    %122 = arith.truncf %121 : vector<32x32xf32> to vector<32x32xbf16>
    %cst_44 = arith.constant dense<0.000000e+00> : vector<32x8xf32>
    %123 = tpu.matmul %122, %107, %cst_44 {dimension_numbers = #tpu.dot_dimension_numbers<[1], [0], [0], [1], [0, 0, 1, 1], [], []>} : vector<32x32xbf16>, vector<32x8xbf16>, vector<32x8xf32> -> vector<32x8xf32>
    %124 = tpu.concatenate %57, %79, %101, %123 in 1 : vector<32x8xf32>, vector<32x8xf32>, vector<32x8xf32>, vector<32x8xf32> -> vector<32x32xf32>
    %125 = arith.truncf %124 : vector<32x32xf32> to vector<32x32xbf16>
    %c0_45 = arith.constant 0 : index
    %c0_46 = arith.constant 0 : index
    %126 = vector.load %arg9[%c0_45, %c0_46] : memref<32x32xbf16, #tpu.memory_space<vmem>>, vector<32x32xbf16>
    %cst_47 = arith.constant dense<0.000000e+00> : vector<32x32xf32>
    %127 = tpu.matmul %125, %126, %cst_47 {dimension_numbers = #tpu.dot_dimension_numbers<[1], [0], [0], [1], [0, 0, 1, 1], [], []>} : vector<32x32xbf16>, vector<32x32xbf16>, vector<32x32xf32> -> vector<32x32xf32>
    %c0_48 = arith.constant 0 : index
    %c0_49 = arith.constant 0 : index
    %128 = vector.load %arg10[%c0_48, %c0_49] : memref<1x32xf32, #tpu.memory_space<vmem>>, vector<1x32xf32>
    %129 = vector.broadcast %128 : vector<1x32xf32> to vector<32x32xf32>
    %130 = arith.addf %127, %129 : vector<32x32xf32>
    %131 = arith.addf %29, %130 : vector<32x32xf32>
    %c0_50 = arith.constant 0 : index
    %c0_51 = arith.constant 0 : index
    %132 = vector.load %arg11[%c0_50, %c0_51] : memref<1x32xf32, #tpu.memory_space<vmem>>, vector<1x32xf32>
    %c0_52 = arith.constant 0 : index
    %c0_53 = arith.constant 0 : index
    %133 = vector.load %arg12[%c0_52, %c0_53] : memref<1x32xf32, #tpu.memory_space<vmem>>, vector<1x32xf32>
    %cst_54 = arith.constant dense<0.000000e+00> : vector<32xf32>
    %134 = vector.multi_reduction <add>, %131, %cst_54 [1] : vector<32x32xf32> to vector<32xf32>
    %135 = vector.shape_cast %134 : vector<32xf32> to vector<32x1xf32>
    %cst_55 = arith.constant 3.200000e+01 : f32
    %136 = vector.broadcast %cst_55 : f32 to vector<32x1xf32>
    %137 = arith.divf %135, %136 : vector<32x1xf32>
    %138 = vector.broadcast %137 : vector<32x1xf32> to vector<32x32xf32>
    %139 = arith.subf %131, %138 : vector<32x32xf32>
    %140 = arith.mulf %139, %139 : vector<32x32xf32>
    %cst_56 = arith.constant dense<0.000000e+00> : vector<32xf32>
    %141 = vector.multi_reduction <add>, %140, %cst_56 [1] : vector<32x32xf32> to vector<32xf32>
    %142 = vector.shape_cast %141 : vector<32xf32> to vector<32x1xf32>
    %cst_57 = arith.constant 3.200000e+01 : f32
    %143 = vector.broadcast %cst_57 : f32 to vector<32x1xf32>
    %144 = arith.divf %142, %143 : vector<32x1xf32>
    %145 = vector.broadcast %137 : vector<32x1xf32> to vector<32x32xf32>
    %146 = arith.subf %131, %145 : vector<32x32xf32>
    %cst_58 = arith.constant 9.99999974E-6 : f32
    %147 = vector.broadcast %cst_58 : f32 to vector<32x1xf32>
    %148 = arith.addf %144, %147 : vector<32x1xf32>
    %149 = math.rsqrt %148 : vector<32x1xf32>
    %150 = vector.broadcast %149 : vector<32x1xf32> to vector<32x32xf32>
    %151 = arith.mulf %146, %150 : vector<32x32xf32>
    %152 = vector.broadcast %132 : vector<1x32xf32> to vector<32x32xf32>
    %153 = arith.mulf %151, %152 : vector<32x32xf32>
    %154 = vector.broadcast %133 : vector<1x32xf32> to vector<32x32xf32>
    %155 = arith.addf %153, %154 : vector<32x32xf32>
    %156 = arith.truncf %155 : vector<32x32xf32> to vector<32x32xbf16>
    %c0_59 = arith.constant 0 : index
    %c0_60 = arith.constant 0 : index
    %157 = vector.load %arg13[%c0_59, %c0_60] : memref<32x64xbf16, #tpu.memory_space<vmem>>, vector<32x64xbf16>
    %cst_61 = arith.constant dense<0.000000e+00> : vector<32x64xf32>
    %158 = tpu.matmul %156, %157, %cst_61 {dimension_numbers = #tpu.dot_dimension_numbers<[1], [0], [0], [1], [0, 0, 1, 1], [], []>} : vector<32x32xbf16>, vector<32x64xbf16>, vector<32x64xf32> -> vector<32x64xf32>
    %c0_62 = arith.constant 0 : index
    %c0_63 = arith.constant 0 : index
    %159 = vector.load %arg14[%c0_62, %c0_63] : memref<1x64xf32, #tpu.memory_space<vmem>>, vector<1x64xf32>
    %160 = vector.broadcast %159 : vector<1x64xf32> to vector<32x64xf32>
    %161 = arith.addf %158, %160 : vector<32x64xf32>
    %cst_64 = arith.constant 5.000000e-01 : f32
    %162 = vector.broadcast %cst_64 : f32 to vector<32x64xf32>
    %163 = arith.mulf %162, %161 : vector<32x64xf32>
    %cst_65 = arith.constant 4.471500e-02 : f32
    %164 = vector.broadcast %cst_65 : f32 to vector<32x64xf32>
    %165 = arith.mulf %164, %161 : vector<32x64xf32>
    %166 = arith.mulf %165, %161 : vector<32x64xf32>
    %167 = arith.mulf %166, %161 : vector<32x64xf32>
    %168 = arith.addf %161, %167 : vector<32x64xf32>
    %cst_66 = arith.constant 0.797884583 : f32
    %169 = vector.broadcast %cst_66 : f32 to vector<32x64xf32>
    %170 = arith.mulf %169, %168 : vector<32x64xf32>
    %171 = math.tanh %170 : vector<32x64xf32>
    %cst_67 = arith.constant 1.000000e+00 : f32
    %172 = vector.broadcast %cst_67 : f32 to vector<32x64xf32>
    %173 = arith.addf %172, %171 : vector<32x64xf32>
    %174 = arith.mulf %163, %173 : vector<32x64xf32>
    %175 = arith.truncf %174 : vector<32x64xf32> to vector<32x64xbf16>
    %c0_68 = arith.constant 0 : index
    %c0_69 = arith.constant 0 : index
    %176 = vector.load %arg15[%c0_68, %c0_69] : memref<64x32xbf16, #tpu.memory_space<vmem>>, vector<64x32xbf16>
    %cst_70 = arith.constant dense<0.000000e+00> : vector<32x32xf32>
    %177 = tpu.matmul %175, %176, %cst_70 {dimension_numbers = #tpu.dot_dimension_numbers<[1], [0], [0], [1], [0, 0, 1, 1], [], []>} : vector<32x64xbf16>, vector<64x32xbf16>, vector<32x32xf32> -> vector<32x32xf32>
    %c0_71 = arith.constant 0 : index
    %c0_72 = arith.constant 0 : index
    %178 = vector.load %arg16[%c0_71, %c0_72] : memref<1x32xf32, #tpu.memory_space<vmem>>, vector<1x32xf32>
    %179 = vector.broadcast %178 : vector<1x32xf32> to vector<32x32xf32>
    %180 = arith.addf %177, %179 : vector<32x32xf32>
    %181 = arith.addf %155, %180 : vector<32x32xf32>
    %c0_73 = arith.constant 0 : index
    %c0_74 = arith.constant 0 : index
    %182 = vector.load %arg17[%c0_73, %c0_74] : memref<1x32xf32, #tpu.memory_space<vmem>>, vector<1x32xf32>
    %c0_75 = arith.constant 0 : index
    %c0_76 = arith.constant 0 : index
    %183 = vector.load %arg18[%c0_75, %c0_76] : memref<1x32xf32, #tpu.memory_space<vmem>>, vector<1x32xf32>
    %cst_77 = arith.constant dense<0.000000e+00> : vector<32xf32>
    %184 = vector.multi_reduction <add>, %181, %cst_77 [1] : vector<32x32xf32> to vector<32xf32>
    %185 = vector.shape_cast %184 : vector<32xf32> to vector<32x1xf32>
    %cst_78 = arith.constant 3.200000e+01 : f32
    %186 = vector.broadcast %cst_78 : f32 to vector<32x1xf32>
    %187 = arith.divf %185, %186 : vector<32x1xf32>
    %188 = vector.broadcast %187 : vector<32x1xf32> to vector<32x32xf32>
    %189 = arith.subf %181, %188 : vector<32x32xf32>
    %190 = arith.mulf %189, %189 : vector<32x32xf32>
    %cst_79 = arith.constant dense<0.000000e+00> : vector<32xf32>
    %191 = vector.multi_reduction <add>, %190, %cst_79 [1] : vector<32x32xf32> to vector<32xf32>
    %192 = vector.shape_cast %191 : vector<32xf32> to vector<32x1xf32>
    %cst_80 = arith.constant 3.200000e+01 : f32
    %193 = vector.broadcast %cst_80 : f32 to vector<32x1xf32>
    %194 = arith.divf %192, %193 : vector<32x1xf32>
    %195 = vector.broadcast %187 : vector<32x1xf32> to vector<32x32xf32>
    %196 = arith.subf %181, %195 : vector<32x32xf32>
    %cst_81 = arith.constant 9.99999974E-6 : f32
    %197 = vector.broadcast %cst_81 : f32 to vector<32x1xf32>
    %198 = arith.addf %194, %197 : vector<32x1xf32>
    %199 = math.rsqrt %198 : vector<32x1xf32>
    %200 = vector.broadcast %199 : vector<32x1xf32> to vector<32x32xf32>
    %201 = arith.mulf %196, %200 : vector<32x32xf32>
    %202 = vector.broadcast %182 : vector<1x32xf32> to vector<32x32xf32>
    %203 = arith.mulf %201, %202 : vector<32x32xf32>
    %204 = vector.broadcast %183 : vector<1x32xf32> to vector<32x32xf32>
    %205 = arith.addf %203, %204 : vector<32x32xf32>
    %c0_82 = arith.constant 0 : index
    %c0_83 = arith.constant 0 : index
    %206 = vector.load %arg19[%c0_82, %c0_83] : memref<1x32xf32, #tpu.memory_space<vmem>>, vector<1x32xf32>
    %c0_84 = arith.constant 0 : index
    %c0_85 = arith.constant 0 : index
    %207 = vector.load %arg20[%c0_84, %c0_85] : memref<1x32xf32, #tpu.memory_space<vmem>>, vector<1x32xf32>
    %cst_86 = arith.constant dense<0.000000e+00> : vector<32xf32>
    %208 = vector.multi_reduction <add>, %205, %cst_86 [1] : vector<32x32xf32> to vector<32xf32>
    %209 = vector.shape_cast %208 : vector<32xf32> to vector<32x1xf32>
    %cst_87 = arith.constant 3.200000e+01 : f32
    %210 = vector.broadcast %cst_87 : f32 to vector<32x1xf32>
    %211 = arith.divf %209, %210 : vector<32x1xf32>
    %212 = vector.broadcast %211 : vector<32x1xf32> to vector<32x32xf32>
    %213 = arith.subf %205, %212 : vector<32x32xf32>
    %214 = arith.mulf %213, %213 : vector<32x32xf32>
    %cst_88 = arith.constant dense<0.000000e+00> : vector<32xf32>
    %215 = vector.multi_reduction <add>, %214, %cst_88 [1] : vector<32x32xf32> to vector<32xf32>
    %216 = vector.shape_cast %215 : vector<32xf32> to vector<32x1xf32>
    %cst_89 = arith.constant 3.200000e+01 : f32
    %217 = vector.broadcast %cst_89 : f32 to vector<32x1xf32>
    %218 = arith.divf %216, %217 : vector<32x1xf32>
    %219 = vector.broadcast %211 : vector<32x1xf32> to vector<32x32xf32>
    %220 = arith.subf %205, %219 : vector<32x32xf32>
    %cst_90 = arith.constant 9.99999974E-6 : f32
    %221 = vector.broadcast %cst_90 : f32 to vector<32x1xf32>
    %222 = arith.addf %218, %221 : vector<32x1xf32>
    %223 = math.rsqrt %222 : vector<32x1xf32>
    %224 = vector.broadcast %223 : vector<32x1xf32> to vector<32x32xf32>
    %225 = arith.mulf %220, %224 : vector<32x32xf32>
    %226 = vector.broadcast %206 : vector<1x32xf32> to vector<32x32xf32>
    %227 = arith.mulf %225, %226 : vector<32x32xf32>
    %228 = vector.broadcast %207 : vector<1x32xf32> to vector<32x32xf32>
    %229 = arith.addf %227, %228 : vector<32x32xf32>
    %230 = arith.truncf %229 : vector<32x32xf32> to vector<32x32xbf16>
    %c0_91 = arith.constant 0 : index
    %c0_92 = arith.constant 0 : index
    %231 = vector.load %arg21[%c0_91, %c0_92] : memref<32x8xbf16, #tpu.memory_space<vmem>>, vector<32x8xbf16>
    %cst_93 = arith.constant dense<0.000000e+00> : vector<32x8xf32>
    %232 = tpu.matmul %230, %231, %cst_93 {dimension_numbers = #tpu.dot_dimension_numbers<[1], [0], [0], [1], [0, 0, 1, 1], [], []>} : vector<32x32xbf16>, vector<32x8xbf16>, vector<32x8xf32> -> vector<32x8xf32>
    %c0_94 = arith.constant 0 : index
    %c0_95 = arith.constant 0 : index
    %233 = vector.load %arg22[%c0_94, %c0_95] : memref<1x8xf32, #tpu.memory_space<vmem>>, vector<1x8xf32>
    %234 = vector.broadcast %233 : vector<1x8xf32> to vector<32x8xf32>
    %235 = arith.addf %232, %234 : vector<32x8xf32>
    %236 = arith.addf %25, %235 : vector<32x8xf32>
    %cst_96 = arith.constant 0.000000e+00 : f32
    %237 = vector.broadcast %cst_96 : f32 to vector<1x8xf32>
    %238 = vector.extract_strided_slice %235 {offsets = [0, 0], sizes = [31, 8], strides = [1, 1]} : vector<32x8xf32> to vector<31x8xf32>
    %239 = tpu.concatenate %237, %238 in 0 : vector<1x8xf32>, vector<31x8xf32> -> vector<32x8xf32>
    %240 = vector.broadcast %3 : vector<32x1xf32> to vector<32x8xf32>
    %241 = arith.mulf %239, %240 : vector<32x8xf32>
    %242 = arith.subf %24, %241 : vector<32x8xf32>
    %243 = vector.extract_strided_slice %242 {offsets = [0, 1], sizes = [32, 7], strides = [1, 1]} : vector<32x8xf32> to vector<32x7xf32>
    %cst_97 = arith.constant 0.000000e+00 : f32
    %244 = vector.broadcast %cst_97 : f32 to vector<32x1xf32>
    %245 = tpu.concatenate %243, %244 in 1 : vector<32x7xf32>, vector<32x1xf32> -> vector<32x8xf32>
    %246 = arith.maximumf %242, %245 : vector<32x8xf32>
    %247 = arith.truncf %246 : vector<32x8xf32> to vector<32x8xbf16>
    %c0_98 = arith.constant 0 : index
    %c0_99 = arith.constant 0 : index
    %248 = vector.load %arg23[%c0_98, %c0_99] : memref<8x32xbf16, #tpu.memory_space<vmem>>, vector<8x32xbf16>
    %cst_100 = arith.constant dense<0.000000e+00> : vector<32x32xf32>
    %249 = tpu.matmul %247, %248, %cst_100 {dimension_numbers = #tpu.dot_dimension_numbers<[1], [0], [0], [1], [0, 0, 1, 1], [], []>} : vector<32x8xbf16>, vector<8x32xbf16>, vector<32x32xf32> -> vector<32x32xf32>
    %250 = arith.addf %249, %1 : vector<32x32xf32>
    %251 = arith.truncf %250 : vector<32x32xf32> to vector<32x32xbf16>
    %c0_101 = arith.constant 0 : index
    %c0_102 = arith.constant 0 : index
    %252 = vector.load %arg24[%c0_101, %c0_102] : memref<32x96xbf16, #tpu.memory_space<vmem>>, vector<32x96xbf16>
    %cst_103 = arith.constant dense<0.000000e+00> : vector<32x96xf32>
    %253 = tpu.matmul %251, %252, %cst_103 {dimension_numbers = #tpu.dot_dimension_numbers<[1], [0], [0], [1], [0, 0, 1, 1], [], []>} : vector<32x32xbf16>, vector<32x96xbf16>, vector<32x96xf32> -> vector<32x96xf32>
    %c0_104 = arith.constant 0 : index
    %c0_105 = arith.constant 0 : index
    %254 = vector.load %arg25[%c0_104, %c0_105] : memref<1x96xf32, #tpu.memory_space<vmem>>, vector<1x96xf32>
    %255 = vector.broadcast %254 : vector<1x96xf32> to vector<32x96xf32>
    %256 = arith.addf %253, %255 : vector<32x96xf32>
    %257 = vector.extract_strided_slice %256 {offsets = [0, 0], sizes = [32, 8], strides = [1, 1]} : vector<32x96xf32> to vector<32x8xf32>
    %258 = arith.truncf %257 : vector<32x8xf32> to vector<32x8xbf16>
    %259 = vector.extract_strided_slice %256 {offsets = [0, 32], sizes = [32, 8], strides = [1, 1]} : vector<32x96xf32> to vector<32x8xf32>
    %260 = arith.truncf %259 : vector<32x8xf32> to vector<32x8xbf16>
    %261 = vector.extract_strided_slice %256 {offsets = [0, 64], sizes = [32, 8], strides = [1, 1]} : vector<32x96xf32> to vector<32x8xf32>
    %262 = arith.truncf %261 : vector<32x8xf32> to vector<32x8xbf16>
    %cst_106 = arith.constant dense<0.000000e+00> : vector<32x32xf32>
    %263 = tpu.matmul %258, %260, %cst_106 {dimension_numbers = #tpu.dot_dimension_numbers<[1], [1], [0], [0], [0, 0, 1, 0], [], []>} : vector<32x8xbf16>, vector<32x8xbf16>, vector<32x32xf32> -> vector<32x32xf32>
    %cst_107 = arith.constant 0.353553385 : f32
    %264 = vector.broadcast %cst_107 : f32 to vector<32x32xf32>
    %265 = arith.mulf %263, %264 : vector<32x32xf32>
    %266 = arith.addf %265, %4 : vector<32x32xf32>
    %cst_108 = arith.constant dense<0xFF800000> : vector<32xf32>
    %267 = vector.multi_reduction <maximumf>, %266, %cst_108 [1] : vector<32x32xf32> to vector<32xf32>
    %268 = vector.shape_cast %267 : vector<32xf32> to vector<32x1xf32>
    %269 = vector.broadcast %268 : vector<32x1xf32> to vector<32x32xf32>
    %270 = arith.subf %266, %269 : vector<32x32xf32>
    %271 = math.exp %270 : vector<32x32xf32>
    %cst_109 = arith.constant dense<0.000000e+00> : vector<32xf32>
    %272 = vector.multi_reduction <add>, %271, %cst_109 [1] : vector<32x32xf32> to vector<32xf32>
    %273 = vector.shape_cast %272 : vector<32xf32> to vector<32x1xf32>
    %274 = tpu.reciprocal %273 {approx = true} : vector<32x1xf32> -> vector<32x1xf32>
    %275 = vector.broadcast %274 : vector<32x1xf32> to vector<32x32xf32>
    %276 = arith.mulf %271, %275 : vector<32x32xf32>
    %277 = arith.truncf %276 : vector<32x32xf32> to vector<32x32xbf16>
    %cst_110 = arith.constant dense<0.000000e+00> : vector<32x8xf32>
    %278 = tpu.matmul %277, %262, %cst_110 {dimension_numbers = #tpu.dot_dimension_numbers<[1], [0], [0], [1], [0, 0, 1, 1], [], []>} : vector<32x32xbf16>, vector<32x8xbf16>, vector<32x8xf32> -> vector<32x8xf32>
    %279 = vector.extract_strided_slice %256 {offsets = [0, 8], sizes = [32, 8], strides = [1, 1]} : vector<32x96xf32> to vector<32x8xf32>
    %280 = arith.truncf %279 : vector<32x8xf32> to vector<32x8xbf16>
    %281 = vector.extract_strided_slice %256 {offsets = [0, 40], sizes = [32, 8], strides = [1, 1]} : vector<32x96xf32> to vector<32x8xf32>
    %282 = arith.truncf %281 : vector<32x8xf32> to vector<32x8xbf16>
    %283 = vector.extract_strided_slice %256 {offsets = [0, 72], sizes = [32, 8], strides = [1, 1]} : vector<32x96xf32> to vector<32x8xf32>
    %284 = arith.truncf %283 : vector<32x8xf32> to vector<32x8xbf16>
    %cst_111 = arith.constant dense<0.000000e+00> : vector<32x32xf32>
    %285 = tpu.matmul %280, %282, %cst_111 {dimension_numbers = #tpu.dot_dimension_numbers<[1], [1], [0], [0], [0, 0, 1, 0], [], []>} : vector<32x8xbf16>, vector<32x8xbf16>, vector<32x32xf32> -> vector<32x32xf32>
    %cst_112 = arith.constant 0.353553385 : f32
    %286 = vector.broadcast %cst_112 : f32 to vector<32x32xf32>
    %287 = arith.mulf %285, %286 : vector<32x32xf32>
    %288 = arith.addf %287, %4 : vector<32x32xf32>
    %cst_113 = arith.constant dense<0xFF800000> : vector<32xf32>
    %289 = vector.multi_reduction <maximumf>, %288, %cst_113 [1] : vector<32x32xf32> to vector<32xf32>
    %290 = vector.shape_cast %289 : vector<32xf32> to vector<32x1xf32>
    %291 = vector.broadcast %290 : vector<32x1xf32> to vector<32x32xf32>
    %292 = arith.subf %288, %291 : vector<32x32xf32>
    %293 = math.exp %292 : vector<32x32xf32>
    %cst_114 = arith.constant dense<0.000000e+00> : vector<32xf32>
    %294 = vector.multi_reduction <add>, %293, %cst_114 [1] : vector<32x32xf32> to vector<32xf32>
    %295 = vector.shape_cast %294 : vector<32xf32> to vector<32x1xf32>
    %296 = tpu.reciprocal %295 {approx = true} : vector<32x1xf32> -> vector<32x1xf32>
    %297 = vector.broadcast %296 : vector<32x1xf32> to vector<32x32xf32>
    %298 = arith.mulf %293, %297 : vector<32x32xf32>
    %299 = arith.truncf %298 : vector<32x32xf32> to vector<32x32xbf16>
    %cst_115 = arith.constant dense<0.000000e+00> : vector<32x8xf32>
    %300 = tpu.matmul %299, %284, %cst_115 {dimension_numbers = #tpu.dot_dimension_numbers<[1], [0], [0], [1], [0, 0, 1, 1], [], []>} : vector<32x32xbf16>, vector<32x8xbf16>, vector<32x8xf32> -> vector<32x8xf32>
    %301 = vector.extract_strided_slice %256 {offsets = [0, 16], sizes = [32, 8], strides = [1, 1]} : vector<32x96xf32> to vector<32x8xf32>
    %302 = arith.truncf %301 : vector<32x8xf32> to vector<32x8xbf16>
    %303 = vector.extract_strided_slice %256 {offsets = [0, 48], sizes = [32, 8], strides = [1, 1]} : vector<32x96xf32> to vector<32x8xf32>
    %304 = arith.truncf %303 : vector<32x8xf32> to vector<32x8xbf16>
    %305 = vector.extract_strided_slice %256 {offsets = [0, 80], sizes = [32, 8], strides = [1, 1]} : vector<32x96xf32> to vector<32x8xf32>
    %306 = arith.truncf %305 : vector<32x8xf32> to vector<32x8xbf16>
    %cst_116 = arith.constant dense<0.000000e+00> : vector<32x32xf32>
    %307 = tpu.matmul %302, %304, %cst_116 {dimension_numbers = #tpu.dot_dimension_numbers<[1], [1], [0], [0], [0, 0, 1, 0], [], []>} : vector<32x8xbf16>, vector<32x8xbf16>, vector<32x32xf32> -> vector<32x32xf32>
    %cst_117 = arith.constant 0.353553385 : f32
    %308 = vector.broadcast %cst_117 : f32 to vector<32x32xf32>
    %309 = arith.mulf %307, %308 : vector<32x32xf32>
    %310 = arith.addf %309, %4 : vector<32x32xf32>
    %cst_118 = arith.constant dense<0xFF800000> : vector<32xf32>
    %311 = vector.multi_reduction <maximumf>, %310, %cst_118 [1] : vector<32x32xf32> to vector<32xf32>
    %312 = vector.shape_cast %311 : vector<32xf32> to vector<32x1xf32>
    %313 = vector.broadcast %312 : vector<32x1xf32> to vector<32x32xf32>
    %314 = arith.subf %310, %313 : vector<32x32xf32>
    %315 = math.exp %314 : vector<32x32xf32>
    %cst_119 = arith.constant dense<0.000000e+00> : vector<32xf32>
    %316 = vector.multi_reduction <add>, %315, %cst_119 [1] : vector<32x32xf32> to vector<32xf32>
    %317 = vector.shape_cast %316 : vector<32xf32> to vector<32x1xf32>
    %318 = tpu.reciprocal %317 {approx = true} : vector<32x1xf32> -> vector<32x1xf32>
    %319 = vector.broadcast %318 : vector<32x1xf32> to vector<32x32xf32>
    %320 = arith.mulf %315, %319 : vector<32x32xf32>
    %321 = arith.truncf %320 : vector<32x32xf32> to vector<32x32xbf16>
    %cst_120 = arith.constant dense<0.000000e+00> : vector<32x8xf32>
    %322 = tpu.matmul %321, %306, %cst_120 {dimension_numbers = #tpu.dot_dimension_numbers<[1], [0], [0], [1], [0, 0, 1, 1], [], []>} : vector<32x32xbf16>, vector<32x8xbf16>, vector<32x8xf32> -> vector<32x8xf32>
    %323 = vector.extract_strided_slice %256 {offsets = [0, 24], sizes = [32, 8], strides = [1, 1]} : vector<32x96xf32> to vector<32x8xf32>
    %324 = arith.truncf %323 : vector<32x8xf32> to vector<32x8xbf16>
    %325 = vector.extract_strided_slice %256 {offsets = [0, 56], sizes = [32, 8], strides = [1, 1]} : vector<32x96xf32> to vector<32x8xf32>
    %326 = arith.truncf %325 : vector<32x8xf32> to vector<32x8xbf16>
    %327 = vector.extract_strided_slice %256 {offsets = [0, 88], sizes = [32, 8], strides = [1, 1]} : vector<32x96xf32> to vector<32x8xf32>
    %328 = arith.truncf %327 : vector<32x8xf32> to vector<32x8xbf16>
    %cst_121 = arith.constant dense<0.000000e+00> : vector<32x32xf32>
    %329 = tpu.matmul %324, %326, %cst_121 {dimension_numbers = #tpu.dot_dimension_numbers<[1], [1], [0], [0], [0, 0, 1, 0], [], []>} : vector<32x8xbf16>, vector<32x8xbf16>, vector<32x32xf32> -> vector<32x32xf32>
    %cst_122 = arith.constant 0.353553385 : f32
    %330 = vector.broadcast %cst_122 : f32 to vector<32x32xf32>
    %331 = arith.mulf %329, %330 : vector<32x32xf32>
    %332 = arith.addf %331, %4 : vector<32x32xf32>
    %cst_123 = arith.constant dense<0xFF800000> : vector<32xf32>
    %333 = vector.multi_reduction <maximumf>, %332, %cst_123 [1] : vector<32x32xf32> to vector<32xf32>
    %334 = vector.shape_cast %333 : vector<32xf32> to vector<32x1xf32>
    %335 = vector.broadcast %334 : vector<32x1xf32> to vector<32x32xf32>
    %336 = arith.subf %332, %335 : vector<32x32xf32>
    %337 = math.exp %336 : vector<32x32xf32>
    %cst_124 = arith.constant dense<0.000000e+00> : vector<32xf32>
    %338 = vector.multi_reduction <add>, %337, %cst_124 [1] : vector<32x32xf32> to vector<32xf32>
    %339 = vector.shape_cast %338 : vector<32xf32> to vector<32x1xf32>
    %340 = tpu.reciprocal %339 {approx = true} : vector<32x1xf32> -> vector<32x1xf32>
    %341 = vector.broadcast %340 : vector<32x1xf32> to vector<32x32xf32>
    %342 = arith.mulf %337, %341 : vector<32x32xf32>
    %343 = arith.truncf %342 : vector<32x32xf32> to vector<32x32xbf16>
    %cst_125 = arith.constant dense<0.000000e+00> : vector<32x8xf32>
    %344 = tpu.matmul %343, %328, %cst_125 {dimension_numbers = #tpu.dot_dimension_numbers<[1], [0], [0], [1], [0, 0, 1, 1], [], []>} : vector<32x32xbf16>, vector<32x8xbf16>, vector<32x8xf32> -> vector<32x8xf32>
    %345 = tpu.concatenate %278, %300, %322, %344 in 1 : vector<32x8xf32>, vector<32x8xf32>, vector<32x8xf32>, vector<32x8xf32> -> vector<32x32xf32>
    %346 = arith.truncf %345 : vector<32x32xf32> to vector<32x32xbf16>
    %c0_126 = arith.constant 0 : index
    %c0_127 = arith.constant 0 : index
    %347 = vector.load %arg26[%c0_126, %c0_127] : memref<32x32xbf16, #tpu.memory_space<vmem>>, vector<32x32xbf16>
    %cst_128 = arith.constant dense<0.000000e+00> : vector<32x32xf32>
    %348 = tpu.matmul %346, %347, %cst_128 {dimension_numbers = #tpu.dot_dimension_numbers<[1], [0], [0], [1], [0, 0, 1, 1], [], []>} : vector<32x32xbf16>, vector<32x32xbf16>, vector<32x32xf32> -> vector<32x32xf32>
    %c0_129 = arith.constant 0 : index
    %c0_130 = arith.constant 0 : index
    %349 = vector.load %arg27[%c0_129, %c0_130] : memref<1x32xf32, #tpu.memory_space<vmem>>, vector<1x32xf32>
    %350 = vector.broadcast %349 : vector<1x32xf32> to vector<32x32xf32>
    %351 = arith.addf %348, %350 : vector<32x32xf32>
    %352 = arith.addf %250, %351 : vector<32x32xf32>
    %c0_131 = arith.constant 0 : index
    %c0_132 = arith.constant 0 : index
    %353 = vector.load %arg28[%c0_131, %c0_132] : memref<1x32xf32, #tpu.memory_space<vmem>>, vector<1x32xf32>
    %c0_133 = arith.constant 0 : index
    %c0_134 = arith.constant 0 : index
    %354 = vector.load %arg29[%c0_133, %c0_134] : memref<1x32xf32, #tpu.memory_space<vmem>>, vector<1x32xf32>
    %cst_135 = arith.constant dense<0.000000e+00> : vector<32xf32>
    %355 = vector.multi_reduction <add>, %352, %cst_135 [1] : vector<32x32xf32> to vector<32xf32>
    %356 = vector.shape_cast %355 : vector<32xf32> to vector<32x1xf32>
    %cst_136 = arith.constant 3.200000e+01 : f32
    %357 = vector.broadcast %cst_136 : f32 to vector<32x1xf32>
    %358 = arith.divf %356, %357 : vector<32x1xf32>
    %359 = vector.broadcast %358 : vector<32x1xf32> to vector<32x32xf32>
    %360 = arith.subf %352, %359 : vector<32x32xf32>
    %361 = arith.mulf %360, %360 : vector<32x32xf32>
    %cst_137 = arith.constant dense<0.000000e+00> : vector<32xf32>
    %362 = vector.multi_reduction <add>, %361, %cst_137 [1] : vector<32x32xf32> to vector<32xf32>
    %363 = vector.shape_cast %362 : vector<32xf32> to vector<32x1xf32>
    %cst_138 = arith.constant 3.200000e+01 : f32
    %364 = vector.broadcast %cst_138 : f32 to vector<32x1xf32>
    %365 = arith.divf %363, %364 : vector<32x1xf32>
    %366 = vector.broadcast %358 : vector<32x1xf32> to vector<32x32xf32>
    %367 = arith.subf %352, %366 : vector<32x32xf32>
    %cst_139 = arith.constant 9.99999974E-6 : f32
    %368 = vector.broadcast %cst_139 : f32 to vector<32x1xf32>
    %369 = arith.addf %365, %368 : vector<32x1xf32>
    %370 = math.rsqrt %369 : vector<32x1xf32>
    %371 = vector.broadcast %370 : vector<32x1xf32> to vector<32x32xf32>
    %372 = arith.mulf %367, %371 : vector<32x32xf32>
    %373 = vector.broadcast %353 : vector<1x32xf32> to vector<32x32xf32>
    %374 = arith.mulf %372, %373 : vector<32x32xf32>
    %375 = vector.broadcast %354 : vector<1x32xf32> to vector<32x32xf32>
    %376 = arith.addf %374, %375 : vector<32x32xf32>
    %377 = arith.truncf %376 : vector<32x32xf32> to vector<32x32xbf16>
    %c0_140 = arith.constant 0 : index
    %c0_141 = arith.constant 0 : index
    %378 = vector.load %arg30[%c0_140, %c0_141] : memref<32x64xbf16, #tpu.memory_space<vmem>>, vector<32x64xbf16>
    %cst_142 = arith.constant dense<0.000000e+00> : vector<32x64xf32>
    %379 = tpu.matmul %377, %378, %cst_142 {dimension_numbers = #tpu.dot_dimension_numbers<[1], [0], [0], [1], [0, 0, 1, 1], [], []>} : vector<32x32xbf16>, vector<32x64xbf16>, vector<32x64xf32> -> vector<32x64xf32>
    %c0_143 = arith.constant 0 : index
    %c0_144 = arith.constant 0 : index
    %380 = vector.load %arg31[%c0_143, %c0_144] : memref<1x64xf32, #tpu.memory_space<vmem>>, vector<1x64xf32>
    %381 = vector.broadcast %380 : vector<1x64xf32> to vector<32x64xf32>
    %382 = arith.addf %379, %381 : vector<32x64xf32>
    %cst_145 = arith.constant 5.000000e-01 : f32
    %383 = vector.broadcast %cst_145 : f32 to vector<32x64xf32>
    %384 = arith.mulf %383, %382 : vector<32x64xf32>
    %cst_146 = arith.constant 4.471500e-02 : f32
    %385 = vector.broadcast %cst_146 : f32 to vector<32x64xf32>
    %386 = arith.mulf %385, %382 : vector<32x64xf32>
    %387 = arith.mulf %386, %382 : vector<32x64xf32>
    %388 = arith.mulf %387, %382 : vector<32x64xf32>
    %389 = arith.addf %382, %388 : vector<32x64xf32>
    %cst_147 = arith.constant 0.797884583 : f32
    %390 = vector.broadcast %cst_147 : f32 to vector<32x64xf32>
    %391 = arith.mulf %390, %389 : vector<32x64xf32>
    %392 = math.tanh %391 : vector<32x64xf32>
    %cst_148 = arith.constant 1.000000e+00 : f32
    %393 = vector.broadcast %cst_148 : f32 to vector<32x64xf32>
    %394 = arith.addf %393, %392 : vector<32x64xf32>
    %395 = arith.mulf %384, %394 : vector<32x64xf32>
    %396 = arith.truncf %395 : vector<32x64xf32> to vector<32x64xbf16>
    %c0_149 = arith.constant 0 : index
    %c0_150 = arith.constant 0 : index
    %397 = vector.load %arg32[%c0_149, %c0_150] : memref<64x32xbf16, #tpu.memory_space<vmem>>, vector<64x32xbf16>
    %cst_151 = arith.constant dense<0.000000e+00> : vector<32x32xf32>
    %398 = tpu.matmul %396, %397, %cst_151 {dimension_numbers = #tpu.dot_dimension_numbers<[1], [0], [0], [1], [0, 0, 1, 1], [], []>} : vector<32x64xbf16>, vector<64x32xbf16>, vector<32x32xf32> -> vector<32x32xf32>
    %c0_152 = arith.constant 0 : index
    %c0_153 = arith.constant 0 : index
    %399 = vector.load %arg33[%c0_152, %c0_153] : memref<1x32xf32, #tpu.memory_space<vmem>>, vector<1x32xf32>
    %400 = vector.broadcast %399 : vector<1x32xf32> to vector<32x32xf32>
    %401 = arith.addf %398, %400 : vector<32x32xf32>
    %402 = arith.addf %376, %401 : vector<32x32xf32>
    %c0_154 = arith.constant 0 : index
    %c0_155 = arith.constant 0 : index
    %403 = vector.load %arg34[%c0_154, %c0_155] : memref<1x32xf32, #tpu.memory_space<vmem>>, vector<1x32xf32>
    %c0_156 = arith.constant 0 : index
    %c0_157 = arith.constant 0 : index
    %404 = vector.load %arg35[%c0_156, %c0_157] : memref<1x32xf32, #tpu.memory_space<vmem>>, vector<1x32xf32>
    %cst_158 = arith.constant dense<0.000000e+00> : vector<32xf32>
    %405 = vector.multi_reduction <add>, %402, %cst_158 [1] : vector<32x32xf32> to vector<32xf32>
    %406 = vector.shape_cast %405 : vector<32xf32> to vector<32x1xf32>
    %cst_159 = arith.constant 3.200000e+01 : f32
    %407 = vector.broadcast %cst_159 : f32 to vector<32x1xf32>
    %408 = arith.divf %406, %407 : vector<32x1xf32>
    %409 = vector.broadcast %408 : vector<32x1xf32> to vector<32x32xf32>
    %410 = arith.subf %402, %409 : vector<32x32xf32>
    %411 = arith.mulf %410, %410 : vector<32x32xf32>
    %cst_160 = arith.constant dense<0.000000e+00> : vector<32xf32>
    %412 = vector.multi_reduction <add>, %411, %cst_160 [1] : vector<32x32xf32> to vector<32xf32>
    %413 = vector.shape_cast %412 : vector<32xf32> to vector<32x1xf32>
    %cst_161 = arith.constant 3.200000e+01 : f32
    %414 = vector.broadcast %cst_161 : f32 to vector<32x1xf32>
    %415 = arith.divf %413, %414 : vector<32x1xf32>
    %416 = vector.broadcast %408 : vector<32x1xf32> to vector<32x32xf32>
    %417 = arith.subf %402, %416 : vector<32x32xf32>
    %cst_162 = arith.constant 9.99999974E-6 : f32
    %418 = vector.broadcast %cst_162 : f32 to vector<32x1xf32>
    %419 = arith.addf %415, %418 : vector<32x1xf32>
    %420 = math.rsqrt %419 : vector<32x1xf32>
    %421 = vector.broadcast %420 : vector<32x1xf32> to vector<32x32xf32>
    %422 = arith.mulf %417, %421 : vector<32x32xf32>
    %423 = vector.broadcast %403 : vector<1x32xf32> to vector<32x32xf32>
    %424 = arith.mulf %422, %423 : vector<32x32xf32>
    %425 = vector.broadcast %404 : vector<1x32xf32> to vector<32x32xf32>
    %426 = arith.addf %424, %425 : vector<32x32xf32>
    %c0_163 = arith.constant 0 : index
    %c0_164 = arith.constant 0 : index
    %427 = vector.load %arg36[%c0_163, %c0_164] : memref<1x32xf32, #tpu.memory_space<vmem>>, vector<1x32xf32>
    %c0_165 = arith.constant 0 : index
    %c0_166 = arith.constant 0 : index
    %428 = vector.load %arg37[%c0_165, %c0_166] : memref<1x32xf32, #tpu.memory_space<vmem>>, vector<1x32xf32>
    %cst_167 = arith.constant dense<0.000000e+00> : vector<32xf32>
    %429 = vector.multi_reduction <add>, %426, %cst_167 [1] : vector<32x32xf32> to vector<32xf32>
    %430 = vector.shape_cast %429 : vector<32xf32> to vector<32x1xf32>
    %cst_168 = arith.constant 3.200000e+01 : f32
    %431 = vector.broadcast %cst_168 : f32 to vector<32x1xf32>
    %432 = arith.divf %430, %431 : vector<32x1xf32>
    %433 = vector.broadcast %432 : vector<32x1xf32> to vector<32x32xf32>
    %434 = arith.subf %426, %433 : vector<32x32xf32>
    %435 = arith.mulf %434, %434 : vector<32x32xf32>
    %cst_169 = arith.constant dense<0.000000e+00> : vector<32xf32>
    %436 = vector.multi_reduction <add>, %435, %cst_169 [1] : vector<32x32xf32> to vector<32xf32>
    %437 = vector.shape_cast %436 : vector<32xf32> to vector<32x1xf32>
    %cst_170 = arith.constant 3.200000e+01 : f32
    %438 = vector.broadcast %cst_170 : f32 to vector<32x1xf32>
    %439 = arith.divf %437, %438 : vector<32x1xf32>
    %440 = vector.broadcast %432 : vector<32x1xf32> to vector<32x32xf32>
    %441 = arith.subf %426, %440 : vector<32x32xf32>
    %cst_171 = arith.constant 9.99999974E-6 : f32
    %442 = vector.broadcast %cst_171 : f32 to vector<32x1xf32>
    %443 = arith.addf %439, %442 : vector<32x1xf32>
    %444 = math.rsqrt %443 : vector<32x1xf32>
    %445 = vector.broadcast %444 : vector<32x1xf32> to vector<32x32xf32>
    %446 = arith.mulf %441, %445 : vector<32x32xf32>
    %447 = vector.broadcast %427 : vector<1x32xf32> to vector<32x32xf32>
    %448 = arith.mulf %446, %447 : vector<32x32xf32>
    %449 = vector.broadcast %428 : vector<1x32xf32> to vector<32x32xf32>
    %450 = arith.addf %448, %449 : vector<32x32xf32>
    %451 = arith.truncf %450 : vector<32x32xf32> to vector<32x32xbf16>
    %c0_172 = arith.constant 0 : index
    %c0_173 = arith.constant 0 : index
    %452 = vector.load %arg38[%c0_172, %c0_173] : memref<32x8xbf16, #tpu.memory_space<vmem>>, vector<32x8xbf16>
    %cst_174 = arith.constant dense<0.000000e+00> : vector<32x8xf32>
    %453 = tpu.matmul %451, %452, %cst_174 {dimension_numbers = #tpu.dot_dimension_numbers<[1], [0], [0], [1], [0, 0, 1, 1], [], []>} : vector<32x32xbf16>, vector<32x8xbf16>, vector<32x8xf32> -> vector<32x8xf32>
    %c0_175 = arith.constant 0 : index
    %c0_176 = arith.constant 0 : index
    %454 = vector.load %arg39[%c0_175, %c0_176] : memref<1x8xf32, #tpu.memory_space<vmem>>, vector<1x8xf32>
    %455 = vector.broadcast %454 : vector<1x8xf32> to vector<32x8xf32>
    %456 = arith.addf %453, %455 : vector<32x8xf32>
    %457 = arith.addf %236, %456 : vector<32x8xf32>
    %458 = vector.broadcast %20 : vector<32x1xf32> to vector<32x8xf32>
    %459 = arith.mulf %457, %458 : vector<32x8xf32>
    %460 = vector.broadcast %9 : vector<32x1xf32> to vector<32x8xf32>
    %461 = arith.addf %459, %460 : vector<32x8xf32>
    %c0_177 = arith.constant 0 : index
    %c0_178 = arith.constant 0 : index
    %462 = vector.load %arg40[%c0_177, %c0_178] : memref<32x8xf32, #tpu.memory_space<vmem>>, vector<32x8xf32>
    tpu.vector_store %arg40[%c0_177, %c0_178], %461 {strides = array<i32>} : memref<32x8xf32, #tpu.memory_space<vmem>>, vector<32x8xf32>,
    return
  }
  func.func @transform_0(%arg0: i32) -> (i32, i32) {
    %c0_i32 = arith.constant 0 : i32
    %c0_i32_0 = arith.constant 0 : i32
    return %arg0, %c0_i32 : i32, i32
  }
  func.func @transform_1(%arg0: i32) -> (i32, i32) {
    %c0_i32 = arith.constant 0 : i32
    %c0_i32_0 = arith.constant 0 : i32
    %c0_i32_1 = arith.constant 0 : i32
    return %c0_i32, %c0_i32_0 : i32, i32
  }
  func.func @transform_2(%arg0: i32) -> (i32, i32) {
    %c0_i32 = arith.constant 0 : i32
    %c0_i32_0 = arith.constant 0 : i32
    %c0_i32_1 = arith.constant 0 : i32
    return %c0_i32, %c0_i32_0 : i32, i32
  }
  func.func @transform_3(%arg0: i32) -> (i32, i32) {
    %c0_i32 = arith.constant 0 : i32
    %c0_i32_0 = arith.constant 0 : i32
    %c0_i32_1 = arith.constant 0 : i32
    return %c0_i32, %c0_i32_0 : i32, i32
  }
  func.func @transform_4(%arg0: i32) -> (i32, i32) {
    %c0_i32 = arith.constant 0 : i32
    %c0_i32_0 = arith.constant 0 : i32
    %c0_i32_1 = arith.constant 0 : i32
    return %c0_i32, %c0_i32_0 : i32, i32
  }
  func.func @transform_5(%arg0: i32) -> (i32, i32) {
    %c0_i32 = arith.constant 0 : i32
    %c0_i32_0 = arith.constant 0 : i32
    %c0_i32_1 = arith.constant 0 : i32
    return %c0_i32, %c0_i32_0 : i32, i32
  }
  func.func @transform_6(%arg0: i32) -> (i32, i32) {
    %c0_i32 = arith.constant 0 : i32
    %c0_i32_0 = arith.constant 0 : i32
    %c0_i32_1 = arith.constant 0 : i32
    return %c0_i32, %c0_i32_0 : i32, i32
  }
  func.func @transform_7(%arg0: i32) -> (i32, i32) {
    %c0_i32 = arith.constant 0 : i32
    %c0_i32_0 = arith.constant 0 : i32
    %c0_i32_1 = arith.constant 0 : i32
    return %c0_i32, %c0_i32_0 : i32, i32
  }
  func.func @transform_8(%arg0: i32) -> (i32, i32) {
    %c0_i32 = arith.constant 0 : i32
    %c0_i32_0 = arith.constant 0 : i32
    %c0_i32_1 = arith.constant 0 : i32
    return %c0_i32, %c0_i32_0 : i32, i32
  }
  func.func @transform_9(%arg0: i32) -> (i32, i32) {
    %c0_i32 = arith.constant 0 : i32
    %c0_i32_0 = arith.constant 0 : i32
    %c0_i32_1 = arith.constant 0 : i32
    return %c0_i32, %c0_i32_0 : i32, i32
  }
  func.func @transform_10(%arg0: i32) -> (i32, i32) {
    %c0_i32 = arith.constant 0 : i32
    %c0_i32_0 = arith.constant 0 : i32
    %c0_i32_1 = arith.constant 0 : i32
    return %c0_i32, %c0_i32_0 : i32, i32
  }
  func.func @transform_11(%arg0: i32) -> (i32, i32) {
    %c0_i32 = arith.constant 0 : i32
    %c0_i32_0 = arith.constant 0 : i32
    %c0_i32_1 = arith.constant 0 : i32
    return %c0_i32, %c0_i32_0 : i32, i32
  }
  func.func @transform_12(%arg0: i32) -> (i32, i32) {
    %c0_i32 = arith.constant 0 : i32
    %c0_i32_0 = arith.constant 0 : i32
    %c0_i32_1 = arith.constant 0 : i32
    return %c0_i32, %c0_i32_0 : i32, i32
  }
  func.func @transform_13(%arg0: i32) -> (i32, i32) {
    %c0_i32 = arith.constant 0 : i32
    %c0_i32_0 = arith.constant 0 : i32
    %c0_i32_1 = arith.constant 0 : i32
    return %c0_i32, %c0_i32_0 : i32, i32
  }
  func.func @transform_14(%arg0: i32) -> (i32, i32) {
    %c0_i32 = arith.constant 0 : i32
    %c0_i32_0 = arith.constant 0 : i32
    %c0_i32_1 = arith.constant 0 : i32
    return %c0_i32, %c0_i32_0 : i32, i32
  }
  func.func @transform_15(%arg0: i32) -> (i32, i32) {
    %c0_i32 = arith.constant 0 : i32
    %c0_i32_0 = arith.constant 0 : i32
    %c0_i32_1 = arith.constant 0 : i32
    return %c0_i32, %c0_i32_0 : i32, i32
  }
  func.func @transform_16(%arg0: i32) -> (i32, i32) {
    %c0_i32 = arith.constant 0 : i32
    %c0_i32_0 = arith.constant 0 : i32
    %c0_i32_1 = arith.constant 0 : i32
    return %c0_i32, %c0_i32_0 : i32, i32
  }
  func.func @transform_17(%arg0: i32) -> (i32, i32) {
    %c0_i32 = arith.constant 0 : i32
    %c0_i32_0 = arith.constant 0 : i32
    %c0_i32_1 = arith.constant 0 : i32
    return %c0_i32, %c0_i32_0 : i32, i32
  }
  func.func @transform_18(%arg0: i32) -> (i32, i32) {
    %c0_i32 = arith.constant 0 : i32
    %c0_i32_0 = arith.constant 0 : i32
    %c0_i32_1 = arith.constant 0 : i32
    return %c0_i32, %c0_i32_0 : i32, i32
  }
  func.func @transform_19(%arg0: i32) -> (i32, i32) {
    %c0_i32 = arith.constant 0 : i32
    %c0_i32_0 = arith.constant 0 : i32
    %c0_i32_1 = arith.constant 0 : i32
    return %c0_i32, %c0_i32_0 : i32, i32
  }
  func.func @transform_20(%arg0: i32) -> (i32, i32) {
    %c0_i32 = arith.constant 0 : i32
    %c0_i32_0 = arith.constant 0 : i32
    %c0_i32_1 = arith.constant 0 : i32
    return %c0_i32, %c0_i32_0 : i32, i32
  }
  func.func @transform_21(%arg0: i32) -> (i32, i32) {
    %c0_i32 = arith.constant 0 : i32
    %c0_i32_0 = arith.constant 0 : i32
    %c0_i32_1 = arith.constant 0 : i32
    return %c0_i32, %c0_i32_0 : i32, i32
  }
  func.func @transform_22(%arg0: i32) -> (i32, i32) {
    %c0_i32 = arith.constant 0 : i32
    %c0_i32_0 = arith.constant 0 : i32
    %c0_i32_1 = arith.constant 0 : i32
    return %c0_i32, %c0_i32_0 : i32, i32
  }
  func.func @transform_23(%arg0: i32) -> (i32, i32) {
    %c0_i32 = arith.constant 0 : i32
    %c0_i32_0 = arith.constant 0 : i32
    %c0_i32_1 = arith.constant 0 : i32
    return %c0_i32, %c0_i32_0 : i32, i32
  }
  func.func @transform_24(%arg0: i32) -> (i32, i32) {
    %c0_i32 = arith.constant 0 : i32
    %c0_i32_0 = arith.constant 0 : i32
    %c0_i32_1 = arith.constant 0 : i32
    return %c0_i32, %c0_i32_0 : i32, i32
  }
  func.func @transform_25(%arg0: i32) -> (i32, i32) {
    %c0_i32 = arith.constant 0 : i32
    %c0_i32_0 = arith.constant 0 : i32
    %c0_i32_1 = arith.constant 0 : i32
    return %c0_i32, %c0_i32_0 : i32, i32
  }
  func.func @transform_26(%arg0: i32) -> (i32, i32) {
    %c0_i32 = arith.constant 0 : i32
    %c0_i32_0 = arith.constant 0 : i32
    %c0_i32_1 = arith.constant 0 : i32
    return %c0_i32, %c0_i32_0 : i32, i32
  }
  func.func @transform_27(%arg0: i32) -> (i32, i32) {
    %c0_i32 = arith.constant 0 : i32
    %c0_i32_0 = arith.constant 0 : i32
    %c0_i32_1 = arith.constant 0 : i32
    return %c0_i32, %c0_i32_0 : i32, i32
  }
  func.func @transform_28(%arg0: i32) -> (i32, i32) {
    %c0_i32 = arith.constant 0 : i32
    %c0_i32_0 = arith.constant 0 : i32
    %c0_i32_1 = arith.constant 0 : i32
    return %c0_i32, %c0_i32_0 : i32, i32
  }
  func.func @transform_29(%arg0: i32) -> (i32, i32) {
    %c0_i32 = arith.constant 0 : i32
    %c0_i32_0 = arith.constant 0 : i32
    %c0_i32_1 = arith.constant 0 : i32
    return %c0_i32, %c0_i32_0 : i32, i32
  }
  func.func @transform_30(%arg0: i32) -> (i32, i32) {
    %c0_i32 = arith.constant 0 : i32
    %c0_i32_0 = arith.constant 0 : i32
    %c0_i32_1 = arith.constant 0 : i32
    return %c0_i32, %c0_i32_0 : i32, i32
  }
  func.func @transform_31(%arg0: i32) -> (i32, i32) {
    %c0_i32 = arith.constant 0 : i32
    %c0_i32_0 = arith.constant 0 : i32
    %c0_i32_1 = arith.constant 0 : i32
    return %c0_i32, %c0_i32_0 : i32, i32
  }
  func.func @transform_32(%arg0: i32) -> (i32, i32) {
    %c0_i32 = arith.constant 0 : i32
    %c0_i32_0 = arith.constant 0 : i32
    %c0_i32_1 = arith.constant 0 : i32
    return %c0_i32, %c0_i32_0 : i32, i32
  }
  func.func @transform_33(%arg0: i32) -> (i32, i32) {
    %c0_i32 = arith.constant 0 : i32
    %c0_i32_0 = arith.constant 0 : i32
    %c0_i32_1 = arith.constant 0 : i32
    return %c0_i32, %c0_i32_0 : i32, i32
  }
  func.func @transform_34(%arg0: i32) -> (i32, i32) {
    %c0_i32 = arith.constant 0 : i32
    %c0_i32_0 = arith.constant 0 : i32
    %c0_i32_1 = arith.constant 0 : i32
    return %c0_i32, %c0_i32_0 : i32, i32
  }
  func.func @transform_35(%arg0: i32) -> (i32, i32) {
    %c0_i32 = arith.constant 0 : i32
    %c0_i32_0 = arith.constant 0 : i32
    %c0_i32_1 = arith.constant 0 : i32
    return %c0_i32, %c0_i32_0 : i32, i32
  }
  func.func @transform_36(%arg0: i32) -> (i32, i32) {
    %c0_i32 = arith.constant 0 : i32
    %c0_i32_0 = arith.constant 0 : i32
    %c0_i32_1 = arith.constant 0 : i32
    return %c0_i32, %c0_i32_0 : i32, i32
  }
  func.func @transform_37(%arg0: i32) -> (i32, i32) {
    %c0_i32 = arith.constant 0 : i32
    %c0_i32_0 = arith.constant 0 : i32
    %c0_i32_1 = arith.constant 0 : i32
    return %c0_i32, %c0_i32_0 : i32, i32
  }
  func.func @transform_38(%arg0: i32) -> (i32, i32) {
    %c0_i32 = arith.constant 0 : i32
    %c0_i32_0 = arith.constant 0 : i32
    %c0_i32_1 = arith.constant 0 : i32
    return %c0_i32, %c0_i32_0 : i32, i32
  }
  func.func @transform_39(%arg0: i32) -> (i32, i32) {
    %c0_i32 = arith.constant 0 : i32
    %c0_i32_0 = arith.constant 0 : i32
    return %arg0, %c0_i32 : i32, i32
  }
}

</mosaic_0001>

<llo_original>
// kernel: _lambda_.1
$region0: #{_lambda_.1}
  #allocation0 [shape = 'u32[]', space=smem, size = 0x4, offset = 0x4, fixed_abs, tag = 'smem constant byte address 0x4 - core index']
  #allocation1 [shape = 'u32[144,128]{1,0:T(1,128)}', space=vmem, size = 0x12000, scoped, tag = 'internal scratch']
  %s0 = inlined_call_operand.smem [shape: u32[40], index: -1, kind: input, shape index: {}]
  %s1 = sld [smem:[%s0]]
  %s2 = scalar_lea.smem %s0, 1
  %s3 = sld [smem:[%s2]]
  %s4 = scalar_lea.smem %s0, 2
  %s5 = sld [smem:[%s4]]
  %s6 = scalar_lea.smem %s0, 3
  %s7 = sld [smem:[%s6]]
  %s8 = scalar_lea.smem %s0, 4
  %s9 = sld [smem:[%s8]]
  %s10 = scalar_lea.smem %s0, 5
  %s11 = sld [smem:[%s10]]
  %s12 = scalar_lea.smem %s0, 6
  %s13 = sld [smem:[%s12]]
  %s14 = scalar_lea.smem %s0, 7
  %s15 = sld [smem:[%s14]]
  %s16 = scalar_lea.smem %s0, 8
  %s17 = sld [smem:[%s16]]
  %s18 = scalar_lea.smem %s0, 9
  %s19 = sld [smem:[%s18]]
  %s20 = scalar_lea.smem %s0, 10
  %s21 = sld [smem:[%s20]]
  %s22 = scalar_lea.smem %s0, 11
  %s23 = sld [smem:[%s22]]
  %s24 = scalar_lea.smem %s0, 12
  %s25 = sld [smem:[%s24]]
  %s26 = scalar_lea.smem %s0, 13
  %s27 = sld [smem:[%s26]]
  %s28 = scalar_lea.smem %s0, 14
  %s29 = sld [smem:[%s28]]
  %s30 = scalar_lea.smem %s0, 15
  %s31 = sld [smem:[%s30]]
  %s32 = scalar_lea.smem %s0, 16
  %s33 = sld [smem:[%s32]]
  %s34 = scalar_lea.smem %s0, 17
  %s35 = sld [smem:[%s34]]
  %s36 = scalar_lea.smem %s0, 18
  %s37 = sld [smem:[%s36]]
  %s38 = scalar_lea.smem %s0, 19
  %s39 = sld [smem:[%s38]]
  %s40 = scalar_lea.smem %s0, 20
  %s41 = sld [smem:[%s40]]
  %s42 = scalar_lea.smem %s0, 21
  %s43 = sld [smem:[%s42]]
  %s44 = scalar_lea.smem %s0, 22
  %s45 = sld [smem:[%s44]]
  %s46 = scalar_lea.smem %s0, 23
  %s47 = sld [smem:[%s46]]
  %s48 = scalar_lea.smem %s0, 24
  %s49 = sld [smem:[%s48]]
  %s50 = scalar_lea.smem %s0, 25
  %s51 = sld [smem:[%s50]]
  %s52 = scalar_lea.smem %s0, 26
  %s53 = sld [smem:[%s52]]
  %s54 = scalar_lea.smem %s0, 27
  %s55 = sld [smem:[%s54]]
  %s56 = scalar_lea.smem %s0, 28
  %s57 = sld [smem:[%s56]]
  %s58 = scalar_lea.smem %s0, 29
  %s59 = sld [smem:[%s58]]
  %s60 = scalar_lea.smem %s0, 30
  %s61 = sld [smem:[%s60]]
  %s62 = scalar_lea.smem %s0, 31
  %s63 = sld [smem:[%s62]]
  %s64 = scalar_lea.smem %s0, 32
  %s65 = sld [smem:[%s64]]
  %s66 = scalar_lea.smem %s0, 33
  %s67 = sld [smem:[%s66]]
  %s68 = scalar_lea.smem %s0, 34
  %s69 = sld [smem:[%s68]]
  %s70 = scalar_lea.smem %s0, 35
  %s71 = sld [smem:[%s70]]
  %s72 = scalar_lea.smem %s0, 36
  %s73 = sld [smem:[%s72]]
  %s74 = scalar_lea.smem %s0, 37
  %s75 = sld [smem:[%s74]]
  %s76 = scalar_lea.smem %s0, 38
  %s77 = sld [smem:[%s76]]
  %s78 = scalar_lea.smem %s0, 39
  %s79 = sld [smem:[%s78]]
  %s80 = sld [smem:[#allocation0]]
  $region198: #{_lambda_.1} parent=0
    _
  %s82 = ssub.s32 1, %s80
  %s83 = scalar_select 0, %s82, %s80
  $region1: #{_lambda_.1} parent=0
    #allocation2 [shape = 'u8[8192]{0}', space=vmem, size = 0x2000, scoped, tag = 'input window, operand 12, single buffered']
    #allocation3 [shape = 's32[1]{0}', space=sflag, size = 0x4, scoped, tag = 'scoped memory for _lambda_.1']
    #allocation4 [shape = 'u8[16384]{0}', space=vmem, size = 0x4000, scoped, tag = 'input window, operand 14, single buffered']
    #allocation5 [shape = 's32[1]{0}', space=sflag, size = 0x4, scoped, tag = 'scoped memory for _lambda_.1']
    #allocation6 [shape = 'u8[8192]{0}', space=vmem, size = 0x2000, scoped, tag = 'input window, operand 20, single buffered']
    #allocation7 [shape = 'u8[8192]{0}', space=vmem, size = 0x2000, scoped, tag = 'input window, operand 23, single buffered']
    #allocation8 [shape = 's32[1]{0}', space=sflag, size = 0x4, scoped, tag = 'scoped memory for _lambda_.1']
    #allocation9 [shape = 'u8[8192]{0}', space=vmem, size = 0x2000, scoped, tag = 'input window, operand 25, single buffered']
    #allocation10 [shape = 'u8[8192]{0}', space=vmem, size = 0x2000, scoped, tag = 'input window, operand 29, single buffered']
    #allocation11 [shape = 's32[1]{0}', space=sflag, size = 0x4, scoped, tag = 'scoped memory for _lambda_.1']
    #allocation12 [shape = 'u8[16384]{0}', space=vmem, size = 0x4000, scoped, tag = 'input window, operand 31, single buffered']
    #allocation13 [shape = 'u8[8192]{0}', space=vmem, size = 0x2000, scoped, tag = 'input window, operand 37, single buffered']
    #allocation14 [shape = 's32[1]{0}', space=sflag, size = 0x4, scoped, tag = 'scoped memory for _lambda_.1']
    %84 = vsyncpa [#allocation3], 0
    %85 = vsyncpa [#allocation5], 0
    %86 = vsyncpa [#allocation8], 0
    %87 = vsyncpa [#allocation11], 0
    %88 = vsyncpa [#allocation14], 0
    // Predicated region
    $region2: #{_lambda_.1} parent=1 // pred_check
      _
    $region3: #{_lambda_.1} parent=1 // pred_check_branch
      %90 = sbr.rel (0) target = $region5
    $region4: #{_lambda_.1} parent=1 // pred_region
      _
    $region5: #{_lambda_.1} parent=1 // pred_fallthru
      _
    // Predicated region
    $region6: #{_lambda_.1} parent=1 // pred_check
      _
    $region7: #{_lambda_.1} parent=1 // pred_check_branch
      %92 = sbr.rel (0) target = $region9
    $region8: #{_lambda_.1} parent=1 // pred_region
      _
    $region9: #{_lambda_.1} parent=1 // pred_fallthru
      _
    // Predicated region
    $region10: #{_lambda_.1} parent=1 // pred_check
      _
    $region11: #{_lambda_.1} parent=1 // pred_check_branch
      %94 = sbr.rel (0) target = $region13
    $region12: #{_lambda_.1} parent=1 // pred_region
      _
    $region13: #{_lambda_.1} parent=1 // pred_fallthru
      _
    // Predicated region
    $region14: #{_lambda_.1} parent=1 // pred_check
      _
    $region15: #{_lambda_.1} parent=1 // pred_check_branch
      %96 = sbr.rel (0) target = $region17
    $region16: #{_lambda_.1} parent=1 // pred_region
      _
    $region17: #{_lambda_.1} parent=1 // pred_fallthru
      _
    // Predicated region
    $region18: #{_lambda_.1} parent=1 // pred_check
      _
    $region19: #{_lambda_.1} parent=1 // pred_check_branch
      %98 = sbr.rel (0) target = $region21
    $region20: #{_lambda_.1} parent=1 // pred_region
      _
    $region21: #{_lambda_.1} parent=1 // pred_fallthru
      _
    // Predicated region
    $region22: #{_lambda_.1} parent=1 // pred_check
      _
    $region23: #{_lambda_.1} parent=1 // pred_check_branch
      %100 = sbr.rel (0) target = $region25
    $region24: #{_lambda_.1} parent=1 // pred_region
      _
    $region25: #{_lambda_.1} parent=1 // pred_fallthru
      _
    // Predicated region
    $region26: #{_lambda_.1} parent=1 // pred_check
      _
    $region27: #{_lambda_.1} parent=1 // pred_check_branch
      %102 = sbr.rel (0) target = $region29
    $region28: #{_lambda_.1} parent=1 // pred_region
      _
    $region29: #{_lambda_.1} parent=1 // pred_fallthru
      _
    // Predicated region
    $region30: #{_lambda_.1} parent=1 // pred_check
      _
    $region31: #{_lambda_.1} parent=1 // pred_check_branch
      %104 = sbr.rel (0) target = $region33
    $region32: #{_lambda_.1} parent=1 // pred_region
      _
    $region33: #{_lambda_.1} parent=1 // pred_fallthru
      _
    // Predicated region
    $region34: #{_lambda_.1} parent=1 // pred_check
      _
    $region35: #{_lambda_.1} parent=1 // pred_check_branch
      %106 = sbr.rel (0) target = $region37
    $region36: #{_lambda_.1} parent=1 // pred_region
      _
    $region37: #{_lambda_.1} parent=1 // pred_fallthru
      _
    // Predicated region
    $region38: #{_lambda_.1} parent=1 // pred_check
      _
    $region39: #{_lambda_.1} parent=1 // pred_check_branch
      %108 = sbr.rel (0) target = $region41
    $region40: #{_lambda_.1} parent=1 // pred_region
      _
    $region41: #{_lambda_.1} parent=1 // pred_fallthru
      _
    // Predicated region
    $region42: #{_lambda_.1} parent=1 // pred_check
      _
    $region43: #{_lambda_.1} parent=1 // pred_check_branch
      %110 = sbr.rel (0) target = $region45
    $region44: #{_lambda_.1} parent=1 // pred_region
      _
    $region45: #{_lambda_.1} parent=1 // pred_fallthru
      _
    // Predicated region
    $region46: #{_lambda_.1} parent=1 // pred_check
      _
    $region47: #{_lambda_.1} parent=1 // pred_check_branch
      %112 = sbr.rel (0) target = $region49
    $region48: #{_lambda_.1} parent=1 // pred_region
      _
    $region49: #{_lambda_.1} parent=1 // pred_fallthru
      _
    // Predicated region
    $region50: #{_lambda_.1} parent=1 // pred_check
      _
    $region51: #{_lambda_.1} parent=1 // pred_check_branch
      %114 = sbr.rel (0) target = $region53
    $region52: #{_lambda_.1} parent=1 // pred_region
      %s116 = ssub.s32 256, 256
      %117 = vsyncadd [#allocation3], %s116
      %s118 = sshll.u32 [#allocation2], 4
      %s119 = int_to_ptr.vmem [resolvable:$true] %s118
      %124 = dma.hbm_to_vmem [thread:$0]  %s25, 256, %s119, [#allocation3], 64, 64, 4
    $region53: #{_lambda_.1} parent=1 // pred_fallthru
      _
    // Predicated region
    $region54: #{_lambda_.1} parent=1 // pred_check
      _
    $region55: #{_lambda_.1} parent=1 // pred_check_branch
      %126 = sbr.rel (0) target = $region57
    $region56: #{_lambda_.1} parent=1 // pred_region
      _
    $region57: #{_lambda_.1} parent=1 // pred_fallthru
      _
    // Predicated region
    $region58: #{_lambda_.1} parent=1 // pred_check
      _
    $region59: #{_lambda_.1} parent=1 // pred_check_branch
      %128 = sbr.rel (0) target = $region61
    $region60: #{_lambda_.1} parent=1 // pred_region
      %s130 = ssub.s32 512, 512
      %131 = vsyncadd [#allocation5], %s130
      %s132 = sshll.u32 [#allocation4], 4
      %s133 = int_to_ptr.vmem [resolvable:$true] %s132
      %138 = dma.hbm_to_vmem [thread:$0]  %s29, 512, %s133, [#allocation5], 64, 64, 4
    $region61: #{_lambda_.1} parent=1 // pred_fallthru
      _
    // Predicated region
    $region62: #{_lambda_.1} parent=1 // pred_check
      _
    $region63: #{_lambda_.1} parent=1 // pred_check_branch
      %140 = sbr.rel (0) target = $region65
    $region64: #{_lambda_.1} parent=1 // pred_region
      _
    $region65: #{_lambda_.1} parent=1 // pred_fallthru
      _
    // Predicated region
    $region66: #{_lambda_.1} parent=1 // pred_check
      _
    $region67: #{_lambda_.1} parent=1 // pred_check_branch
      %142 = sbr.rel (0) target = $region69
    $region68: #{_lambda_.1} parent=1 // pred_region
      _
    $region69: #{_lambda_.1} parent=1 // pred_fallthru
      _
    // Predicated region
    $region70: #{_lambda_.1} parent=1 // pred_check
      _
    $region71: #{_lambda_.1} parent=1 // pred_check_branch
      %144 = sbr.rel (0) target = $region73
    $region72: #{_lambda_.1} parent=1 // pred_region
      _
    $region73: #{_lambda_.1} parent=1 // pred_fallthru
      _
    // Predicated region
    $region74: #{_lambda_.1} parent=1 // pred_check
      _
    $region75: #{_lambda_.1} parent=1 // pred_check_branch
      %146 = sbr.rel (0) target = $region77
    $region76: #{_lambda_.1} parent=1 // pred_region
      _
    $region77: #{_lambda_.1} parent=1 // pred_fallthru
      _
    // Predicated region
    $region78: #{_lambda_.1} parent=1 // pred_check
      _
    $region79: #{_lambda_.1} parent=1 // pred_check_branch
      %148 = sbr.rel (0) target = $region81
    $region80: #{_lambda_.1} parent=1 // pred_region
      _
    $region81: #{_lambda_.1} parent=1 // pred_fallthru
      _
    // Predicated region
    $region82: #{_lambda_.1} parent=1 // pred_check
      _
    $region83: #{_lambda_.1} parent=1 // pred_check_branch
      %150 = sbr.rel (0) target = $region85
    $region84: #{_lambda_.1} parent=1 // pred_region
      %s152 = ssub.s32 256, 256
      %153 = vsyncadd [#allocation5], %s152
      %s154 = sshll.u32 [#allocation6], 4
      %s155 = int_to_ptr.vmem [resolvable:$true] %s154
      %160 = dma.hbm_to_vmem [thread:$0]  %s41, 256, %s155, [#allocation5], 64, 64, 4
    $region85: #{_lambda_.1} parent=1 // pred_fallthru
      _
    // Predicated region
    $region86: #{_lambda_.1} parent=1 // pred_check
      _
    $region87: #{_lambda_.1} parent=1 // pred_check_branch
      %162 = sbr.rel (0) target = $region89
    $region88: #{_lambda_.1} parent=1 // pred_region
      _
    $region89: #{_lambda_.1} parent=1 // pred_fallthru
      _
    // Predicated region
    $region90: #{_lambda_.1} parent=1 // pred_check
      _
    $region91: #{_lambda_.1} parent=1 // pred_check_branch
      %164 = sbr.rel (0) target = $region93
    $region92: #{_lambda_.1} parent=1 // pred_region
      _
    $region93: #{_lambda_.1} parent=1 // pred_fallthru
      _
    // Predicated region
    $region94: #{_lambda_.1} parent=1 // pred_check
      _
    $region95: #{_lambda_.1} parent=1 // pred_check_branch
      %166 = sbr.rel (0) target = $region97
    $region96: #{_lambda_.1} parent=1 // pred_region
      %s168 = ssub.s32 256, 256
      %169 = vsyncadd [#allocation8], %s168
      %s170 = sshll.u32 [#allocation7], 4
      %s171 = int_to_ptr.vmem [resolvable:$true] %s170
      %176 = dma.hbm_to_vmem [thread:$0]  %s47, 256, %s171, [#allocation8], 64, 64, 4
    $region97: #{_lambda_.1} parent=1 // pred_fallthru
      _
    // Predicated region
    $region98: #{_lambda_.1} parent=1 // pred_check
      _
    $region99: #{_lambda_.1} parent=1 // pred_check_branch
      %178 = sbr.rel (0) target = $region101
    $region100: #{_lambda_.1} parent=1 // pred_region
      _
    $region101: #{_lambda_.1} parent=1 // pred_fallthru
      _
    // Predicated region
    $region102: #{_lambda_.1} parent=1 // pred_check
      _
    $region103: #{_lambda_.1} parent=1 // pred_check_branch
      %180 = sbr.rel (0) target = $region105
    $region104: #{_lambda_.1} parent=1 // pred_region
      %s182 = ssub.s32 256, 256
      %183 = vsyncadd [#allocation8], %s182
      %s184 = sshll.u32 [#allocation9], 4
      %s185 = int_to_ptr.vmem [resolvable:$true] %s184
      %190 = dma.hbm_to_vmem [thread:$0]  %s51, 256, %s185, [#allocation8], 64, 64, 4
    $region105: #{_lambda_.1} parent=1 // pred_fallthru
      _
    // Predicated region
    $region106: #{_lambda_.1} parent=1 // pred_check
      _
    $region107: #{_lambda_.1} parent=1 // pred_check_branch
      %192 = sbr.rel (0) target = $region109
    $region108: #{_lambda_.1} parent=1 // pred_region
      _
    $region109: #{_lambda_.1} parent=1 // pred_fallthru
      _
    // Predicated region
    $region110: #{_lambda_.1} parent=1 // pred_check
      _
    $region111: #{_lambda_.1} parent=1 // pred_check_branch
      %194 = sbr.rel (0) target = $region113
    $region112: #{_lambda_.1} parent=1 // pred_region
      _
    $region113: #{_lambda_.1} parent=1 // pred_fallthru
      _
    // Predicated region
    $region114: #{_lambda_.1} parent=1 // pred_check
      _
    $region115: #{_lambda_.1} parent=1 // pred_check_branch
      %196 = sbr.rel (0) target = $region117
    $region116: #{_lambda_.1} parent=1 // pred_region
      _
    $region117: #{_lambda_.1} parent=1 // pred_fallthru
      _
    // Predicated region
    $region118: #{_lambda_.1} parent=1 // pred_check
      _
    $region119: #{_lambda_.1} parent=1 // pred_check_branch
      %198 = sbr.rel (0) target = $region121
    $region120: #{_lambda_.1} parent=1 // pred_region
      %s200 = ssub.s32 256, 256
      %201 = vsyncadd [#allocation11], %s200
      %s202 = sshll.u32 [#allocation10], 4
      %s203 = int_to_ptr.vmem [resolvable:$true] %s202
      %208 = dma.hbm_to_vmem [thread:$0]  %s59, 256, %s203, [#allocation11], 64, 64, 4
    $region121: #{_lambda_.1} parent=1 // pred_fallthru
      _
    // Predicated region
    $region122: #{_lambda_.1} parent=1 // pred_check
      _
    $region123: #{_lambda_.1} parent=1 // pred_check_branch
      %210 = sbr.rel (0) target = $region125
    $region124: #{_lambda_.1} parent=1 // pred_region
      _
    $region125: #{_lambda_.1} parent=1 // pred_fallthru
      _
    // Predicated region
    $region126: #{_lambda_.1} parent=1 // pred_check
      _
    $region127: #{_lambda_.1} parent=1 // pred_check_branch
      %212 = sbr.rel (0) target = $region129
    $region128: #{_lambda_.1} parent=1 // pred_region
      %s214 = ssub.s32 512, 512
      %215 = vsyncadd [#allocation11], %s214
      %s216 = sshll.u32 [#allocation12], 4
      %s217 = int_to_ptr.vmem [resolvable:$true] %s216
      %222 = dma.hbm_to_vmem [thread:$0]  %s63, 512, %s217, [#allocation11], 64, 64, 4
    $region129: #{_lambda_.1} parent=1 // pred_fallthru
      _
    // Predicated region
    $region130: #{_lambda_.1} parent=1 // pred_check
      _
    $region131: #{_lambda_.1} parent=1 // pred_check_branch
      %224 = sbr.rel (0) target = $region133
    $region132: #{_lambda_.1} parent=1 // pred_region
      _
    $region133: #{_lambda_.1} parent=1 // pred_fallthru
      _
    // Predicated region
    $region134: #{_lambda_.1} parent=1 // pred_check
      _
    $region135: #{_lambda_.1} parent=1 // pred_check_branch
      %226 = sbr.rel (0) target = $region137
    $region136: #{_lambda_.1} parent=1 // pred_region
      _
    $region137: #{_lambda_.1} parent=1 // pred_fallthru
      _
    // Predicated region
    $region138: #{_lambda_.1} parent=1 // pred_check
      _
    $region139: #{_lambda_.1} parent=1 // pred_check_branch
      %228 = sbr.rel (0) target = $region141
    $region140: #{_lambda_.1} parent=1 // pred_region
      _
    $region141: #{_lambda_.1} parent=1 // pred_fallthru
      _
    // Predicated region
    $region142: #{_lambda_.1} parent=1 // pred_check
      _
    $region143: #{_lambda_.1} parent=1 // pred_check_branch
      %230 = sbr.rel (0) target = $region145
    $region144: #{_lambda_.1} parent=1 // pred_region
      _
    $region145: #{_lambda_.1} parent=1 // pred_fallthru
      _
    // Predicated region
    $region146: #{_lambda_.1} parent=1 // pred_check
      _
    $region147: #{_lambda_.1} parent=1 // pred_check_branch
      %232 = sbr.rel (0) target = $region149
    $region148: #{_lambda_.1} parent=1 // pred_region
      _
    $region149: #{_lambda_.1} parent=1 // pred_fallthru
      _
    // Predicated region
    $region150: #{_lambda_.1} parent=1 // pred_check
      _
    $region151: #{_lambda_.1} parent=1 // pred_check_branch
      %234 = sbr.rel (0) target = $region153
    $region152: #{_lambda_.1} parent=1 // pred_region
      %s236 = ssub.s32 256, 256
      %237 = vsyncadd [#allocation14], %s236
      %s238 = sshll.u32 [#allocation13], 4
      %s239 = int_to_ptr.vmem [resolvable:$true] %s238
      %244 = dma.hbm_to_vmem [thread:$0]  %s75, 256, %s239, [#allocation14], 64, 64, 4
    $region153: #{_lambda_.1} parent=1 // pred_fallthru
      _
    // Predicated region
    $region154: #{_lambda_.1} parent=1 // pred_check
      _
    $region155: #{_lambda_.1} parent=1 // pred_check_branch
      %246 = sbr.rel (0) target = $region157
    $region156: #{_lambda_.1} parent=1 // pred_region
      _
    $region157: #{_lambda_.1} parent=1 // pred_fallthru
      _
    // Predicated region
    $region158: #{_lambda_.1} parent=1 // pred_check
      _
    $region159: #{_lambda_.1} parent=1 // pred_check_branch
      %248 = sbr.rel (0) target = $region161
    $region160: #{_lambda_.1} parent=1 // pred_region
      %249 = dma.done [#allocation3], 256
    $region161: #{_lambda_.1} parent=1 // pred_fallthru
      _
    // Predicated region
    $region162: #{_lambda_.1} parent=1 // pred_check
      _
    $region163: #{_lambda_.1} parent=1 // pred_check_branch
      %251 = sbr.rel (0) target = $region165
    $region164: #{_lambda_.1} parent=1 // pred_region
      %252 = dma.done [#allocation5], 512
    $region165: #{_lambda_.1} parent=1 // pred_fallthru
      _
    // Predicated region
    $region166: #{_lambda_.1} parent=1 // pred_check
      _
    $region167: #{_lambda_.1} parent=1 // pred_check_branch
      %254 = sbr.rel (0) target = $region169
    $region168: #{_lambda_.1} parent=1 // pred_region
      %255 = dma.done [#allocation5], 256
    $region169: #{_lambda_.1} parent=1 // pred_fallthru
      _
    // Predicated region
    $region170: #{_lambda_.1} parent=1 // pred_check
      _
    $region171: #{_lambda_.1} parent=1 // pred_check_branch
      %257 = sbr.rel (0) target = $region173
    $region172: #{_lambda_.1} parent=1 // pred_region
      %258 = dma.done [#allocation8], 256
    $region173: #{_lambda_.1} parent=1 // pred_fallthru
      _
    // Predicated region
    $region174: #{_lambda_.1} parent=1 // pred_check
      _
    $region175: #{_lambda_.1} parent=1 // pred_check_branch
      %260 = sbr.rel (0) target = $region177
    $region176: #{_lambda_.1} parent=1 // pred_region
      %261 = dma.done [#allocation8], 256
    $region177: #{_lambda_.1} parent=1 // pred_fallthru
      _
    // Predicated region
    $region178: #{_lambda_.1} parent=1 // pred_check
      _
    $region179: #{_lambda_.1} parent=1 // pred_check_branch
      %263 = sbr.rel (0) target = $region181
    $region180: #{_lambda_.1} parent=1 // pred_region
      %264 = dma.done [#allocation11], 256
    $region181: #{_lambda_.1} parent=1 // pred_fallthru
      _
    // Predicated region
    $region182: #{_lambda_.1} parent=1 // pred_check
      _
    $region183: #{_lambda_.1} parent=1 // pred_check_branch
      %266 = sbr.rel (0) target = $region185
    $region184: #{_lambda_.1} parent=1 // pred_region
      %267 = dma.done [#allocation11], 512
    $region185: #{_lambda_.1} parent=1 // pred_fallthru
      _
    // Predicated region
    $region186: #{_lambda_.1} parent=1 // pred_check
      _
    $region187: #{_lambda_.1} parent=1 // pred_check_branch
      %269 = sbr.rel (0) target = $region189
    $region188: #{_lambda_.1} parent=1 // pred_region
      %270 = dma.done [#allocation14], 256
    $region189: #{_lambda_.1} parent=1 // pred_fallthru
      _
    %v272 = vld [vmem:[%s1] sm:$0xff]
    %v273 = vld [vmem:[%s1 + $0x8] sm:$0xff]
    %v274 = vld [vmem:[%s1 + $0x10] sm:$0xff]
    %v275 = vld [vmem:[%s1 + $0x18] sm:$0xff]
    %v276 = vld [vmem:[%s3] sm:$0xff]
    %v277 = vld [vmem:[%s3 + $0x8] sm:$0xff]
    %v278 = vld [vmem:[%s3 + $0x10] sm:$0xff]
    %v279 = vld [vmem:[%s3 + $0x18] sm:$0xff]
    %v280 = vld [vmem:[%s5] sm:$0xff]
    %v281 = vld [vmem:[%s5 + $0x8] sm:$0xff]
    %v282 = vld [vmem:[%s5 + $0x10] sm:$0xff]
    %v283 = vld [vmem:[%s5 + $0x18] sm:$0xff]
    %v284 = vld [vmem:[%s7] sm:$0xff]
    %v285 = vld [vmem:[%s7 + $0x8] sm:$0xff]
    %v286 = vld [vmem:[%s7 + $0x10] sm:$0xff]
    %v287 = vld [vmem:[%s7 + $0x18] sm:$0xff]
    %v288 = vld [vmem:[%s9] sm:$0xff]
    %v289 = vld [vmem:[%s9 + $0x8] sm:$0xff]
    %v290 = vld [vmem:[%s9 + $0x10] sm:$0xff]
    %v291 = vld [vmem:[%s9 + $0x18] sm:$0xff]
    %vm292 = vcmask 261120
    %v294 = vsel %vm292, %v280, 0
    %v297 = vsel %vm292, %v281, 0
    %v300 = vsel %vm292, %v282, 0
    %v303 = vsel %vm292, %v283, 0
    %305 = vmatprep.subr.mxu0 0.0
    %306 = vmatpush1.msra.mxu0 0.0
    %307 = vmatprep.subr.mxu0 0.0
    %308 = vmatpush1.msra.mxu0 0.0
    %309 = vmatprep.subr.mxu0 0.0
    %310 = vmatpush1.msra.mxu0 0.0
    %311 = vmatprep.subr.mxu0 0.0
    %312 = vmatpush1.msra.mxu0 0.0
    %313 = vmatprep.subr.mxu0 0.0
    %314 = vmatpush1.msra.mxu0 0.0
    %315 = vmatprep.subr.mxu0 0.0
    %316 = vmatpush1.msra.mxu0 0.0
    %317 = vmatprep.subr.mxu0 0.0
    %318 = vmatpush1.msra.mxu0 0.0
    %319 = vmatprep.subr.mxu0 0.0
    %320 = vmatpush1.msra.mxu0 0.0
    %321 = vmatprep.subr.mxu0 0.0
    %322 = vmatpush1.msra.mxu0 0.0
    %323 = vmatprep.subr.mxu0 0.0
    %324 = vmatpush1.msra.mxu0 0.0
    %325 = vmatprep.subr.mxu0 0.0
    %326 = vmatpush1.msra.mxu0 0.0
    %327 = vmatprep.subr.mxu0 0.0
    %328 = vmatpush1.msra.mxu0 0.0
    %329 = vmatprep.subr.mxu0 0.0
    %330 = vmatpush1.msra.mxu0 %v275
    %331 = vmatprep.subr.mxu0 0.0
    %332 = vmatpush1.msra.mxu0 %v274
    %333 = vmatprep.subr.mxu0 0.0
    %334 = vmatpush1.msra.mxu0 %v273
    %335 = vmatprep.subr.mxu0 0.0
    %336 = vmatpush1.msra.mxu0 %v272
    %337 = vmatprep.subr.mxu0 0.0
    %338 = vmatpush2.msra.mxu0 0.0
    %339 = vmatprep.subr.mxu0 0.0
    %340 = vmatpush2.msra.mxu0 0.0
    %341 = vmatprep.subr.mxu0 0.0
    %342 = vmatpush2.msra.mxu0 0.0
    %343 = vmatprep.subr.mxu0 0.0
    %344 = vmatpush2.msra.mxu0 0.0
    %345 = vmatprep.subr.mxu0 0.0
    %346 = vmatpush2.msra.mxu0 0.0
    %347 = vmatprep.subr.mxu0 0.0
    %348 = vmatpush2.msra.mxu0 0.0
    %349 = vmatprep.subr.mxu0 0.0
    %350 = vmatpush2.msra.mxu0 0.0
    %351 = vmatprep.subr.mxu0 0.0
    %352 = vmatpush2.msra.mxu0 0.0
    %353 = vmatprep.subr.mxu0 0.0
    %354 = vmatpush2.msra.mxu0 0.0
    %355 = vmatprep.subr.mxu0 0.0
    %356 = vmatpush2.msra.mxu0 0.0
    %357 = vmatprep.subr.mxu0 0.0
    %358 = vmatpush2.msra.mxu0 0.0
    %359 = vmatprep.subr.mxu0 0.0
    %360 = vmatpush2.msra.mxu0 0.0
    %361 = vmatprep.subr.mxu0 0.0
    %362 = vmatpush2.msra.mxu0 0.0
    %363 = vmatprep.subr.mxu0 0.0
    %364 = vmatpush2.msra.mxu0 0.0
    %365 = vmatprep.subr.mxu0 0.0
    %366 = vmatpush2.msra.mxu0 0.0
    %367 = vmatprep.subr.mxu0 0.0
    %368 = vmatpush2.msra.mxu0 0.0
    %369 = vmatprep.mubr.f32.mxu0 0.0
    %370 = vmatmul.mubr.f32.gmra.mxu0 %v294
    %v371 = vpop.f32.mrf.mxu0
    %v372 = vadd.f32 0.0, %v371
    %v373 = vpop.f32.mrf.mxu0
    %374 = vmatprep.mubr.f32.mxu0 0.0
    %375 = vmatmul.mubr.f32.gmra.mxu0 %v297
    %v376 = vpop.f32.mrf.mxu0
    %v377 = vadd.f32 0.0, %v376
    %v378 = vpop.f32.mrf.mxu0
    %379 = vmatprep.mubr.f32.mxu0 0.0
    %380 = vmatmul.mubr.f32.gmra.mxu0 %v300
    %v381 = vpop.f32.mrf.mxu0
    %v382 = vadd.f32 0.0, %v381
    %v383 = vpop.f32.mrf.mxu0
    %384 = vmatprep.mubr.f32.mxu0 0.0
    %385 = vmatmul.mubr.f32.gmra.mxu0 %v303
    %v386 = vpop.f32.mrf.mxu0
    %v387 = vadd.f32 0.0, %v386
    %v388 = vpop.f32.mrf.mxu0
    %389 = vdwg.mxu0
    %vm390 = vcmask 64512
    %v391 = vsel %vm390, %v372, 0.0
    %392 = vadd.xlane.f32.xlu0 %v391
    %v393 = vpop.xlane.xlu0 %392
    %v394 = vsel %vm390, %v377, 0.0
    %395 = vadd.xlane.f32.xlu0 %v394
    %v396 = vpop.xlane.xlu0 %395
    %v397 = vsel %vm390, %v382, 0.0
    %398 = vadd.xlane.f32.xlu0 %v397
    %v399 = vpop.xlane.xlu0 %398
    %v400 = vsel %vm390, %v387, 0.0
    %401 = vadd.xlane.f32.xlu0 %v400
    %v402 = vpop.xlane.xlu0 %401
    %v403 = vrcp.pop 8.0
    %v404 = vmul.f32 %v393, %v403
    %v405 = vmul.f32 %v396, %v403
    %v406 = vmul.f32 %v399, %v403
    %v407 = vmul.f32 %v402, %v403
    %v408 = vsub.f32 %v272, %v404
    %v409 = vsub.f32 %v273, %v405
    %v410 = vsub.f32 %v274, %v406
    %v411 = vsub.f32 %v275, %v407
    %v412 = vmul.f32 %v408, %v408
    %v413 = vmul.f32 %v409, %v409
    %v414 = vmul.f32 %v410, %v410
    %v415 = vmul.f32 %v411, %v411
    %416 = vmatprep.subr.mxu0 0.0
    %417 = vmatpush1.msra.mxu0 0.0
    %418 = vmatprep.subr.mxu0 0.0
    %419 = vmatpush1.msra.mxu0 0.0
    %420 = vmatprep.subr.mxu0 0.0
    %421 = vmatpush1.msra.mxu0 0.0
    %422 = vmatprep.subr.mxu0 0.0
    %423 = vmatpush1.msra.mxu0 0.0
    %424 = vmatprep.subr.mxu0 0.0
    %425 = vmatpush1.msra.mxu0 0.0
    %426 = vmatprep.subr.mxu0 0.0
    %427 = vmatpush1.msra.mxu0 0.0
    %428 = vmatprep.subr.mxu0 0.0
    %429 = vmatpush1.msra.mxu0 0.0
    %430 = vmatprep.subr.mxu0 0.0
    %431 = vmatpush1.msra.mxu0 0.0
    %432 = vmatprep.subr.mxu0 0.0
    %433 = vmatpush1.msra.mxu0 0.0
    %434 = vmatprep.subr.mxu0 0.0
    %435 = vmatpush1.msra.mxu0 0.0
    %436 = vmatprep.subr.mxu0 0.0
    %437 = vmatpush1.msra.mxu0 0.0
    %438 = vmatprep.subr.mxu0 0.0
    %439 = vmatpush1.msra.mxu0 0.0
    %440 = vmatprep.subr.mxu0 0.0
    %441 = vmatpush1.msra.mxu0 %v415
    %442 = vmatprep.subr.mxu0 0.0
    %443 = vmatpush1.msra.mxu0 %v414
    %444 = vmatprep.subr.mxu0 0.0
    %445 = vmatpush1.msra.mxu0 %v413
    %446 = vmatprep.subr.mxu0 0.0
    %447 = vmatpush1.msra.mxu0 %v412
    %448 = vmatprep.subr.mxu0 0.0
    %449 = vmatpush2.msra.mxu0 0.0
    %450 = vmatprep.subr.mxu0 0.0
    %451 = vmatpush2.msra.mxu0 0.0
    %452 = vmatprep.subr.mxu0 0.0
    %453 = vmatpush2.msra.mxu0 0.0
    %454 = vmatprep.subr.mxu0 0.0
    %455 = vmatpush2.msra.mxu0 0.0
    %456 = vmatprep.subr.mxu0 0.0
    %457 = vmatpush2.msra.mxu0 0.0
    %458 = vmatprep.subr.mxu0 0.0
    %459 = vmatpush2.msra.mxu0 0.0
    %460 = vmatprep.subr.mxu0 0.0
    %461 = vmatpush2.msra.mxu0 0.0
    %462 = vmatprep.subr.mxu0 0.0
    %463 = vmatpush2.msra.mxu0 0.0
    %464 = vmatprep.subr.mxu0 0.0
    %465 = vmatpush2.msra.mxu0 0.0
    %466 = vmatprep.subr.mxu0 0.0
    %467 = vmatpush2.msra.mxu0 0.0
    %468 = vmatprep.subr.mxu0 0.0
    %469 = vmatpush2.msra.mxu0 0.0
    %470 = vmatprep.subr.mxu0 0.0
    %471 = vmatpush2.msra.mxu0 0.0
    %472 = vmatprep.subr.mxu0 0.0
    %473 = vmatpush2.msra.mxu0 0.0
    %474 = vmatprep.subr.mxu0 0.0
    %475 = vmatpush2.msra.mxu0 0.0
    %476 = vmatprep.subr.mxu0 0.0
    %477 = vmatpush2.msra.mxu0 0.0
    %478 = vmatprep.subr.mxu0 0.0
    %479 = vmatpush2.msra.mxu0 0.0
    %480 = vmatprep.mubr.f32.mxu0 0.0
    %481 = vmatmul.mubr.f32.gmra.mxu0 %v294
    %v482 = vpop.f32.mrf.mxu0
    %v483 = vadd.f32 0.0, %v482
    %v484 = vpop.f32.mrf.mxu0
    %485 = vmatprep.mubr.f32.mxu0 0.0
    %486 = vmatmul.mubr.f32.gmra.mxu0 %v297
    %v487 = vpop.f32.mrf.mxu0
    %v488 = vadd.f32 0.0, %v487
    %v489 = vpop.f32.mrf.mxu0
    %490 = vmatprep.mubr.f32.mxu0 0.0
    %491 = vmatmul.mubr.f32.gmra.mxu0 %v300
    %v492 = vpop.f32.mrf.mxu0
    %v493 = vadd.f32 0.0, %v492
    %v494 = vpop.f32.mrf.mxu0
    %495 = vmatprep.mubr.f32.mxu0 0.0
    %496 = vmatmul.mubr.f32.gmra.mxu0 %v303
    %v497 = vpop.f32.mrf.mxu0
    %v498 = vadd.f32 0.0, %v497
    %v499 = vpop.f32.mrf.mxu0
    %500 = vdwg.mxu0
    %v501 = vsel %vm390, %v483, 0.0
    %502 = vadd.xlane.f32.xlu0 %v501
    %v503 = vpop.xlane.xlu0 %502
    %v504 = vsel %vm390, %v488, 0.0
    %505 = vadd.xlane.f32.xlu0 %v504
    %v506 = vpop.xlane.xlu0 %505
    %v507 = vsel %vm390, %v493, 0.0
    %508 = vadd.xlane.f32.xlu0 %v507
    %v509 = vpop.xlane.xlu0 %508
    %v510 = vsel %vm390, %v498, 0.0
    %511 = vadd.xlane.f32.xlu0 %v510
    %v512 = vpop.xlane.xlu0 %511
    %v513 = vmul.f32 %v503, %v403
    %v514 = vmul.f32 %v506, %v403
    %v515 = vmul.f32 %v509, %v403
    %v516 = vmul.f32 %v512, %v403
    %v517 = vadd.f32 %v513, 1e-05
    %v518 = vadd.f32 %v514, 1e-05
    %v519 = vadd.f32 %v515, 1e-05
    %v520 = vadd.f32 %v516, 1e-05
    %v521 = vrsqrt.pop %v517
    %v522 = vmul.f32 %v517, %v521
    %vm523 = vcmp.eq.f32.partialorder %v517, inf
    %v524 = vsel %vm523, %v517, %v522
    %vm525 = vcmp.eq.f32.partialorder %v517, 0.0
    %v526 = vand.u32 %v517, 2147483648
    %v527 = vsel %vm525, %v526, %v524
    %v528 = vrsqrt.pop %v518
    %v529 = vmul.f32 %v518, %v528
    %vm530 = vcmp.eq.f32.partialorder %v518, inf
    %v531 = vsel %vm530, %v518, %v529
    %vm532 = vcmp.eq.f32.partialorder %v518, 0.0
    %v533 = vand.u32 %v518, 2147483648
    %v534 = vsel %vm532, %v533, %v531
    %v535 = vrsqrt.pop %v519
    %v536 = vmul.f32 %v519, %v535
    %vm537 = vcmp.eq.f32.partialorder %v519, inf
    %v538 = vsel %vm537, %v519, %v536
    %vm539 = vcmp.eq.f32.partialorder %v519, 0.0
    %v540 = vand.u32 %v519, 2147483648
    %v541 = vsel %vm539, %v540, %v538
    %v542 = vrsqrt.pop %v520
    %v543 = vmul.f32 %v520, %v542
    %vm544 = vcmp.eq.f32.partialorder %v520, inf
    %v545 = vsel %vm544, %v520, %v543
    %vm546 = vcmp.eq.f32.partialorder %v520, 0.0
    %v547 = vand.u32 %v520, 2147483648
    %v548 = vsel %vm546, %v547, %v545
    %v549 = vrcp.pop %v527
    %v550 = vmul.f32 1.0, %v549
    %v551 = vrcp.pop %v534
    %v552 = vmul.f32 1.0, %v551
    %v553 = vrcp.pop %v541
    %v554 = vmul.f32 1.0, %v553
    %v555 = vrcp.pop %v548
    %v556 = vmul.f32 1.0, %v555
    %v557 = vmul.f32 %v408, %v550
    %v558 = vmul.f32 %v409, %v552
    %v559 = vmul.f32 %v410, %v554
    %v560 = vmul.f32 %v411, %v556
    %v561 = vpack.c.bf16 %v558, %v557
    %v562 = vpack.c.bf16 %v560, %v559
    %v563 = vld [vmem:[%s11] sm:$0xf]
    %v565 = vsel %vm390, %v561, 0
    %v568 = vsel %vm390, %v562, 0
    %vm570 = vcmask 1043456
    %v572 = vsel %vm570, %v563, 0
    %574 = vmatprep.subr.bf16.mxu0 0
    %575 = vmatpush1.bf16.msra.mxu0 0
    %576 = vmatprep.subr.bf16.mxu0 0
    %577 = vmatpush1.bf16.msra.mxu0 0
    %578 = vmatprep.subr.bf16.mxu0 0
    %579 = vmatpush1.bf16.msra.mxu0 0
    %580 = vmatprep.subr.bf16.mxu0 0
    %581 = vmatpush1.bf16.msra.mxu0 0
    %582 = vmatprep.subr.bf16.mxu0 0
    %583 = vmatpush1.bf16.msra.mxu0 0
    %584 = vmatprep.subr.bf16.mxu0 0
    %585 = vmatpush1.bf16.msra.mxu0 0
    %586 = vmatprep.subr.bf16.mxu0 0
    %587 = vmatpush1.bf16.msra.mxu0 0
    %588 = vmatprep.subr.bf16.mxu0 0
    %589 = vmatpush1.bf16.msra.mxu0 %v572
    %590 = vmatprep.subr.bf16.mxu0 0
    %591 = vmatpush2.bf16.msra.mxu0 0
    %592 = vmatprep.subr.bf16.mxu0 0
    %593 = vmatpush2.bf16.msra.mxu0 0
    %594 = vmatprep.subr.bf16.mxu0 0
    %595 = vmatpush2.bf16.msra.mxu0 0
    %596 = vmatprep.subr.bf16.mxu0 0
    %597 = vmatpush2.bf16.msra.mxu0 0
    %598 = vmatprep.subr.bf16.mxu0 0
    %599 = vmatpush2.bf16.msra.mxu0 0
    %600 = vmatprep.subr.bf16.mxu0 0
    %601 = vmatpush2.bf16.msra.mxu0 0
    %602 = vmatprep.subr.bf16.mxu0 0
    %603 = vmatpush2.bf16.msra.mxu0 0
    %604 = vmatprep.subr.bf16.mxu0 0
    %605 = vmatpush2.bf16.msra.mxu0 0
    %606 = vmatprep.mubr.bf16.mxu0 0
    %607 = vmatmul.mubr.bf16.gmra.mxu0 %v565
    %v608 = vpop.f32.mrf.mxu0
    %v609 = vadd.f32 %v276, %v608
    %v610 = vpop.f32.mrf.mxu0
    %v611 = vpop.f32.mrf.mxu0
    %v612 = vadd.f32 %v277, %v611
    %v613 = vpop.f32.mrf.mxu0
    %614 = vmatprep.mubr.bf16.mxu0 0
    %615 = vmatmul.mubr.bf16.gmra.mxu0 %v568
    %v616 = vpop.f32.mrf.mxu0
    %v617 = vadd.f32 %v278, %v616
    %v618 = vpop.f32.mrf.mxu0
    %v619 = vpop.f32.mrf.mxu0
    %v620 = vadd.f32 %v279, %v619
    %v621 = vpop.f32.mrf.mxu0
    %622 = vdwg.mxu0
    %v623 = vpack.c.bf16 %v612, %v609
    %v624 = vpack.c.bf16 %v620, %v617
    %v625 = vld [vmem:[%s13] sm:$0xf]
    %v626 = vld [vmem:[%s13 + $0x4] sm:$0xf]
    %v627 = vld [vmem:[%s13 + $0x8] sm:$0xf]
    %v628 = vld [vmem:[%s13 + $0xc] sm:$0xf]
    %v629 = vld [vmem:[%s15] sm:$0x1]
    %v631 = vlaneseq
    %v632 = vshrl.u32 %v631, 7
    %v633 = vsub.s32 0, %v632
    %v634 = vrot.slane %v629, %v633
    %v640 = vunpack.c.l.b16 %v625
    %v641 = vunpack.c.l.b16 %v626
    %v642 = vunpack.c.l.b16 %v627
    %v643 = vunpack.c.l.b16 %v628
    %v644 = vpack.c.b16 %v641, %v640
    %v645 = vpack.c.b16 %v643, %v642
    %v649 = vsel %vm292, %v623, 0
    %v652 = vsel %vm292, %v624, 0
    %654 = vmatprep.subr.bf16.mxu0 0
    %655 = vmatpush1.bf16.msra.mxu0 0
    %656 = vmatprep.subr.bf16.mxu0 0
    %657 = vmatpush1.bf16.msra.mxu0 0
    %658 = vmatprep.subr.bf16.mxu0 0
    %659 = vmatpush1.bf16.msra.mxu0 0
    %660 = vmatprep.subr.bf16.mxu0 0
    %661 = vmatpush1.bf16.msra.mxu0 0
    %662 = vmatprep.subr.bf16.mxu0 0
    %663 = vmatpush1.bf16.msra.mxu0 0
    %664 = vmatprep.subr.bf16.mxu0 0
    %665 = vmatpush1.bf16.msra.mxu0 0
    %666 = vmatprep.subr.bf16.mxu0 0
    %667 = vmatpush1.bf16.msra.mxu0 %v645
    %668 = vmatprep.subr.bf16.mxu0 0
    %669 = vmatpush1.bf16.msra.mxu0 %v644
    %670 = vmatprep.subr.bf16.mxu0 0
    %671 = vmatpush2.bf16.msra.mxu0 0
    %672 = vmatprep.subr.bf16.mxu0 0
    %673 = vmatpush2.bf16.msra.mxu0 0
    %674 = vmatprep.subr.bf16.mxu0 0
    %675 = vmatpush2.bf16.msra.mxu0 0
    %676 = vmatprep.subr.bf16.mxu0 0
    %677 = vmatpush2.bf16.msra.mxu0 0
    %678 = vmatprep.subr.bf16.mxu0 0
    %679 = vmatpush2.bf16.msra.mxu0 0
    %680 = vmatprep.subr.bf16.mxu0 0
    %681 = vmatpush2.bf16.msra.mxu0 0
    %682 = vmatprep.subr.bf16.mxu0 0
    %683 = vmatpush2.bf16.msra.mxu0 0
    %684 = vmatprep.subr.bf16.mxu0 0
    %685 = vmatpush2.bf16.msra.mxu0 0
    %686 = vmatprep.mubr.bf16.mxu0 0
    %687 = vmatmul.mubr.bf16.gmra.mxu0 %v649
    %v688 = vpop.f32.mrf.mxu0
    %v689 = vadd.f32 %v634, %v688
    %v690 = vpop.f32.mrf.mxu0
    %v691 = vpop.f32.mrf.mxu0
    %v692 = vadd.f32 %v634, %v691
    %v693 = vpop.f32.mrf.mxu0
    %694 = vmatprep.mubr.bf16.mxu0 0
    %695 = vmatmul.mubr.bf16.gmra.mxu0 %v652
    %v696 = vpop.f32.mrf.mxu0
    %v697 = vadd.f32 %v634, %v696
    %v698 = vpop.f32.mrf.mxu0
    %v699 = vpop.f32.mrf.mxu0
    %v700 = vadd.f32 %v634, %v699
    %v701 = vpop.f32.mrf.mxu0
    %702 = vdwg.mxu0
    %v703 = vpack.c.bf16 %v692, %v689
    %v704 = vpack.c.bf16 %v700, %v697
    %707 = vrot.lane.b32.xlu0 %v703, 96
    %v708 = vpop.permute.xlu0 %707
    %709 = vrot.lane.b32.xlu0 %v704, 96
    %v710 = vpop.permute.xlu0 %709
    %v712 = vsel %vm390, %v703, 0
    %v715 = vsel %vm390, %v704, 0
    %v718 = vsel %vm390, %v708, 0
    %v721 = vsel %vm390, %v710, 0
    %723 = vmatprep.subr.bf16.mxu0 0
    %724 = vmatpush1.bf16.xpose.msra.mxu0 0
    %725 = vmatprep.subr.bf16.mxu0 0
    %726 = vmatpush1.bf16.xpose.msra.mxu0 0
    %727 = vmatprep.subr.bf16.mxu0 0
    %728 = vmatpush1.bf16.xpose.msra.mxu0 0
    %729 = vmatprep.subr.bf16.mxu0 0
    %730 = vmatpush1.bf16.xpose.msra.mxu0 0
    %731 = vmatprep.subr.bf16.mxu0 0
    %732 = vmatpush1.bf16.xpose.msra.mxu0 0
    %733 = vmatprep.subr.bf16.mxu0 0
    %734 = vmatpush1.bf16.xpose.msra.mxu0 0
    %735 = vmatprep.subr.bf16.mxu0 0
    %736 = vmatpush1.bf16.xpose.msra.mxu0 %v721
    %737 = vmatprep.subr.bf16.mxu0 0
    %738 = vmatpush1.bf16.xpose.msra.mxu0 %v718
    %739 = vmatprep.subr.bf16.mxu0 0
    %740 = vmatpush2.bf16.xpose.msra.mxu0 0
    %741 = vmatprep.subr.bf16.mxu0 0
    %742 = vmatpush2.bf16.xpose.msra.mxu0 0
    %743 = vmatprep.subr.bf16.mxu0 0
    %744 = vmatpush2.bf16.xpose.msra.mxu0 0
    %745 = vmatprep.subr.bf16.mxu0 0
    %746 = vmatpush2.bf16.xpose.msra.mxu0 0
    %747 = vmatprep.subr.bf16.mxu0 0
    %748 = vmatpush2.bf16.xpose.msra.mxu0 0
    %749 = vmatprep.subr.bf16.mxu0 0
    %750 = vmatpush2.bf16.xpose.msra.mxu0 0
    %751 = vmatprep.subr.bf16.mxu0 0
    %752 = vmatpush2.bf16.xpose.msra.mxu0 0
    %753 = vmatprep.subr.bf16.mxu0 0
    %754 = vmatpush2.bf16.xpose.msra.mxu0 0
    %755 = vmatprep.mubr.bf16.mxu0 0
    %756 = vmatmul.mubr.bf16.gmra.mxu0 %v712
    %v757 = vpop.f32.mrf.mxu0
    %v758 = vadd.f32 0.0, %v757
    %v759 = vpop.f32.mrf.mxu0
    %v760 = vpop.f32.mrf.mxu0
    %v761 = vadd.f32 0.0, %v760
    %v762 = vpop.f32.mrf.mxu0
    %763 = vmatprep.mubr.bf16.mxu0 0
    %764 = vmatmul.mubr.bf16.gmra.mxu0 %v715
    %v765 = vpop.f32.mrf.mxu0
    %v766 = vadd.f32 0.0, %v765
    %v767 = vpop.f32.mrf.mxu0
    %v768 = vpop.f32.mrf.mxu0
    %v769 = vadd.f32 0.0, %v768
    %v770 = vpop.f32.mrf.mxu0
    %771 = vdwg.mxu0
    %v772 = vmul.f32 %v758, 0.35355338
    %v773 = vmul.f32 %v761, 0.35355338
    %v774 = vmul.f32 %v766, 0.35355338
    %v775 = vmul.f32 %v769, 0.35355338
    %v776 = vadd.f32 %v772, %v288
    %v777 = vadd.f32 %v773, %v289
    %v778 = vadd.f32 %v774, %v290
    %v779 = vadd.f32 %v775, %v291
    %v780 = vsel %vm292, %v776, -inf
    %781 = vmax.xlane.f32.xlu0 %v780
    %v782 = vpop.xlane.xlu0 %781
    %v783 = vsel %vm292, %v777, -inf
    %784 = vmax.xlane.f32.xlu0 %v783
    %v785 = vpop.xlane.xlu0 %784
    %v786 = vsel %vm292, %v778, -inf
    %787 = vmax.xlane.f32.xlu0 %v786
    %v788 = vpop.xlane.xlu0 %787
    %v789 = vsel %vm292, %v779, -inf
    %790 = vmax.xlane.f32.xlu0 %v789
    %v791 = vpop.xlane.xlu0 %790
    %v792 = vsub.f32 %v776, %v782
    %v793 = vsub.f32 %v777, %v785
    %v794 = vsub.f32 %v778, %v788
    %v795 = vsub.f32 %v779, %v791
    %v796 = vmul.f32 %v792, 1.442695
    %v797 = vpow.pop %v796
    %v798 = vmul.f32 %v793, 1.442695
    %v799 = vpow.pop %v798
    %v800 = vmul.f32 %v794, 1.442695
    %v801 = vpow.pop %v800
    %v802 = vmul.f32 %v795, 1.442695
    %v803 = vpow.pop %v802
    %v804 = vsel %vm292, %v797, 0.0
    %805 = vadd.xlane.f32.xlu0 %v804
    %v806 = vpop.xlane.xlu0 %805
    %v807 = vsel %vm292, %v799, 0.0
    %808 = vadd.xlane.f32.xlu0 %v807
    %v809 = vpop.xlane.xlu0 %808
    %v810 = vsel %vm292, %v801, 0.0
    %811 = vadd.xlane.f32.xlu0 %v810
    %v812 = vpop.xlane.xlu0 %811
    %v813 = vsel %vm292, %v803, 0.0
    %814 = vadd.xlane.f32.xlu0 %v813
    %v815 = vpop.xlane.xlu0 %814
    %v816 = vrcp.pop %v806
    %v817 = vrcp.pop %v809
    %v818 = vrcp.pop %v812
    %v819 = vrcp.pop %v815
    %v820 = vmul.f32 %v797, %v816
    %v821 = vmul.f32 %v799, %v817
    %v822 = vmul.f32 %v801, %v818
    %v823 = vmul.f32 %v803, %v819
    %v824 = vpack.c.bf16 %v821, %v820
    %v825 = vpack.c.bf16 %v823, %v822
    %826 = vrot.lane.b32.xlu0 %v703, 64
    %v827 = vpop.permute.xlu0 %826
    %828 = vrot.lane.b32.xlu0 %v704, 64
    %v829 = vpop.permute.xlu0 %828
    %v833 = vsel %vm292, %v824, 0
    %v836 = vsel %vm292, %v825, 0
    %838 = vmatprep.subr.bf16.mxu0 0
    %839 = vmatpush1.bf16.msra.mxu0 0
    %840 = vmatprep.subr.bf16.mxu0 0
    %841 = vmatpush1.bf16.msra.mxu0 0
    %842 = vmatprep.subr.bf16.mxu0 0
    %843 = vmatpush1.bf16.msra.mxu0 0
    %844 = vmatprep.subr.bf16.mxu0 0
    %845 = vmatpush1.bf16.msra.mxu0 0
    %846 = vmatprep.subr.bf16.mxu0 0
    %847 = vmatpush1.bf16.msra.mxu0 0
    %848 = vmatprep.subr.bf16.mxu0 0
    %849 = vmatpush1.bf16.msra.mxu0 0
    %850 = vmatprep.subr.bf16.mxu0 0
    %851 = vmatpush1.bf16.msra.mxu0 %v829
    %852 = vmatprep.subr.bf16.mxu0 0
    %853 = vmatpush1.bf16.msra.mxu0 %v827
    %854 = vmatprep.subr.bf16.mxu0 0
    %855 = vmatpush2.bf16.msra.mxu0 0
    %856 = vmatprep.subr.bf16.mxu0 0
    %857 = vmatpush2.bf16.msra.mxu0 0
    %858 = vmatprep.subr.bf16.mxu0 0
    %859 = vmatpush2.bf16.msra.mxu0 0
    %860 = vmatprep.subr.bf16.mxu0 0
    %861 = vmatpush2.bf16.msra.mxu0 0
    %862 = vmatprep.subr.bf16.mxu0 0
    %863 = vmatpush2.bf16.msra.mxu0 0
    %864 = vmatprep.subr.bf16.mxu0 0
    %865 = vmatpush2.bf16.msra.mxu0 0
    %866 = vmatprep.subr.bf16.mxu0 0
    %867 = vmatpush2.bf16.msra.mxu0 0
    %868 = vmatprep.subr.bf16.mxu0 0
    %869 = vmatpush2.bf16.msra.mxu0 0
    %870 = vmatprep.mubr.bf16.mxu0 0
    %871 = vmatmul.mubr.bf16.gmra.mxu0 %v833
    %v872 = vpop.f32.mrf.mxu0
    %v873 = vadd.f32 0.0, %v872
    %v874 = vpop.f32.mrf.mxu0
    %v875 = vpop.f32.mrf.mxu0
    %v876 = vadd.f32 0.0, %v875
    %v877 = vpop.f32.mrf.mxu0
    %878 = vmatprep.mubr.bf16.mxu0 0
    %879 = vmatmul.mubr.bf16.gmra.mxu0 %v836
    %v880 = vpop.f32.mrf.mxu0
    %v881 = vadd.f32 0.0, %v880
    %v882 = vpop.f32.mrf.mxu0
    %v883 = vpop.f32.mrf.mxu0
    %v884 = vadd.f32 0.0, %v883
    %v885 = vpop.f32.mrf.mxu0
    %886 = vdwg.mxu0
    %887 = vrot.lane.b32.xlu0 %v703, 120
    %v888 = vpop.permute.xlu0 %887
    %889 = vrot.lane.b32.xlu0 %v704, 120
    %v890 = vpop.permute.xlu0 %889
    %891 = vrot.lane.b32.xlu0 %v703, 88
    %v892 = vpop.permute.xlu0 %891
    %893 = vrot.lane.b32.xlu0 %v704, 88
    %v894 = vpop.permute.xlu0 %893
    %v896 = vsel %vm390, %v888, 0
    %v899 = vsel %vm390, %v890, 0
    %v902 = vsel %vm390, %v892, 0
    %v905 = vsel %vm390, %v894, 0
    %907 = vmatprep.subr.bf16.mxu0 0
    %908 = vmatpush1.bf16.xpose.msra.mxu0 0
    %909 = vmatprep.subr.bf16.mxu0 0
    %910 = vmatpush1.bf16.xpose.msra.mxu0 0
    %911 = vmatprep.subr.bf16.mxu0 0
    %912 = vmatpush1.bf16.xpose.msra.mxu0 0
    %913 = vmatprep.subr.bf16.mxu0 0
    %914 = vmatpush1.bf16.xpose.msra.mxu0 0
    %915 = vmatprep.subr.bf16.mxu0 0
    %916 = vmatpush1.bf16.xpose.msra.mxu0 0
    %917 = vmatprep.subr.bf16.mxu0 0
    %918 = vmatpush1.bf16.xpose.msra.mxu0 0
    %919 = vmatprep.subr.bf16.mxu0 0
    %920 = vmatpush1.bf16.xpose.msra.mxu0 %v905
    %921 = vmatprep.subr.bf16.mxu0 0
    %922 = vmatpush1.bf16.xpose.msra.mxu0 %v902
    %923 = vmatprep.subr.bf16.mxu0 0
    %924 = vmatpush2.bf16.xpose.msra.mxu0 0
    %925 = vmatprep.subr.bf16.mxu0 0
    %926 = vmatpush2.bf16.xpose.msra.mxu0 0
    %927 = vmatprep.subr.bf16.mxu0 0
    %928 = vmatpush2.bf16.xpose.msra.mxu0 0
    %929 = vmatprep.subr.bf16.mxu0 0
    %930 = vmatpush2.bf16.xpose.msra.mxu0 0
    %931 = vmatprep.subr.bf16.mxu0 0
    %932 = vmatpush2.bf16.xpose.msra.mxu0 0
    %933 = vmatprep.subr.bf16.mxu0 0
    %934 = vmatpush2.bf16.xpose.msra.mxu0 0
    %935 = vmatprep.subr.bf16.mxu0 0
    %936 = vmatpush2.bf16.xpose.msra.mxu0 0
    %937 = vmatprep.subr.bf16.mxu0 0
    %938 = vmatpush2.bf16.xpose.msra.mxu0 0
    %939 = vmatprep.mubr.bf16.mxu0 0
    %940 = vmatmul.mubr.bf16.gmra.mxu0 %v896
    %v941 = vpop.f32.mrf.mxu0
    %v942 = vadd.f32 0.0, %v941
    %v943 = vpop.f32.mrf.mxu0
    %v944 = vpop.f32.mrf.mxu0
    %v945 = vadd.f32 0.0, %v944
    %v946 = vpop.f32.mrf.mxu0
    %947 = vmatprep.mubr.bf16.mxu0 0
    %948 = vmatmul.mubr.bf16.gmra.mxu0 %v899
    %v949 = vpop.f32.mrf.mxu0
    %v950 = vadd.f32 0.0, %v949
    %v951 = vpop.f32.mrf.mxu0
    %v952 = vpop.f32.mrf.mxu0
    %v953 = vadd.f32 0.0, %v952
    %v954 = vpop.f32.mrf.mxu0
    %955 = vdwg.mxu0
    %v956 = vmul.f32 %v942, 0.35355338
    %v957 = vmul.f32 %v945, 0.35355338
    %v958 = vmul.f32 %v950, 0.35355338
    %v959 = vmul.f32 %v953, 0.35355338
    %v960 = vadd.f32 %v956, %v288
    %v961 = vadd.f32 %v957, %v289
    %v962 = vadd.f32 %v958, %v290
    %v963 = vadd.f32 %v959, %v291
    %v964 = vsel %vm292, %v960, -inf
    %965 = vmax.xlane.f32.xlu0 %v964
    %v966 = vpop.xlane.xlu0 %965
    %v967 = vsel %vm292, %v961, -inf
    %968 = vmax.xlane.f32.xlu0 %v967
    %v969 = vpop.xlane.xlu0 %968
    %v970 = vsel %vm292, %v962, -inf
    %971 = vmax.xlane.f32.xlu0 %v970
    %v972 = vpop.xlane.xlu0 %971
    %v973 = vsel %vm292, %v963, -inf
    %974 = vmax.xlane.f32.xlu0 %v973
    %v975 = vpop.xlane.xlu0 %974
    %v976 = vsub.f32 %v960, %v966
    %v977 = vsub.f32 %v961, %v969
    %v978 = vsub.f32 %v962, %v972
    %v979 = vsub.f32 %v963, %v975
    %v980 = vmul.f32 %v976, 1.442695
    %v981 = vpow.pop %v980
    %v982 = vmul.f32 %v977, 1.442695
    %v983 = vpow.pop %v982
    %v984 = vmul.f32 %v978, 1.442695
    %v985 = vpow.pop %v984
    %v986 = vmul.f32 %v979, 1.442695
    %v987 = vpow.pop %v986
    %v988 = vsel %vm292, %v981, 0.0
    %989 = vadd.xlane.f32.xlu0 %v988
    %v990 = vpop.xlane.xlu0 %989
    %v991 = vsel %vm292, %v983, 0.0
    %992 = vadd.xlane.f32.xlu0 %v991
    %v993 = vpop.xlane.xlu0 %992
    %v994 = vsel %vm292, %v985, 0.0
    %995 = vadd.xlane.f32.xlu0 %v994
    %v996 = vpop.xlane.xlu0 %995
    %v997 = vsel %vm292, %v987, 0.0
    %998 = vadd.xlane.f32.xlu0 %v997
    %v999 = vpop.xlane.xlu0 %998
    %v1000 = vrcp.pop %v990
    %v1001 = vrcp.pop %v993
    %v1002 = vrcp.pop %v996
    %v1003 = vrcp.pop %v999
    %v1004 = vmul.f32 %v981, %v1000
    %v1005 = vmul.f32 %v983, %v1001
    %v1006 = vmul.f32 %v985, %v1002
    %v1007 = vmul.f32 %v987, %v1003
    %v1008 = vpack.c.bf16 %v1005, %v1004
    %v1009 = vpack.c.bf16 %v1007, %v1006
    %1010 = vrot.lane.b32.xlu0 %v703, 56
    %v1011 = vpop.permute.xlu0 %1010
    %1012 = vrot.lane.b32.xlu0 %v704, 56
    %v1013 = vpop.permute.xlu0 %1012
    %v1017 = vsel %vm292, %v1008, 0
    %v1020 = vsel %vm292, %v1009, 0
    %1022 = vmatprep.subr.bf16.mxu0 0
    %1023 = vmatpush1.bf16.msra.mxu0 0
    %1024 = vmatprep.subr.bf16.mxu0 0
    %1025 = vmatpush1.bf16.msra.mxu0 0
    %1026 = vmatprep.subr.bf16.mxu0 0
    %1027 = vmatpush1.bf16.msra.mxu0 0
    %1028 = vmatprep.subr.bf16.mxu0 0
    %1029 = vmatpush1.bf16.msra.mxu0 0
    %1030 = vmatprep.subr.bf16.mxu0 0
    %1031 = vmatpush1.bf16.msra.mxu0 0
    %1032 = vmatprep.subr.bf16.mxu0 0
    %1033 = vmatpush1.bf16.msra.mxu0 0
    %1034 = vmatprep.subr.bf16.mxu0 0
    %1035 = vmatpush1.bf16.msra.mxu0 %v1013
    %1036 = vmatprep.subr.bf16.mxu0 0
    %1037 = vmatpush1.bf16.msra.mxu0 %v1011
    %1038 = vmatprep.subr.bf16.mxu0 0
    %1039 = vmatpush2.bf16.msra.mxu0 0
    %1040 = vmatprep.subr.bf16.mxu0 0
    %1041 = vmatpush2.bf16.msra.mxu0 0
    %1042 = vmatprep.subr.bf16.mxu0 0
    %1043 = vmatpush2.bf16.msra.mxu0 0
    %1044 = vmatprep.subr.bf16.mxu0 0
    %1045 = vmatpush2.bf16.msra.mxu0 0
    %1046 = vmatprep.subr.bf16.mxu0 0
    %1047 = vmatpush2.bf16.msra.mxu0 0
    %1048 = vmatprep.subr.bf16.mxu0 0
    %1049 = vmatpush2.bf16.msra.mxu0 0
    %1050 = vmatprep.subr.bf16.mxu0 0
    %1051 = vmatpush2.bf16.msra.mxu0 0
    %1052 = vmatprep.subr.bf16.mxu0 0
    %1053 = vmatpush2.bf16.msra.mxu0 0
    %1054 = vmatprep.mubr.bf16.mxu0 0
    %1055 = vmatmul.mubr.bf16.gmra.mxu0 %v1017
    %v1056 = vpop.f32.mrf.mxu0
    %v1057 = vadd.f32 0.0, %v1056
    %v1058 = vpop.f32.mrf.mxu0
    %v1059 = vpop.f32.mrf.mxu0
    %v1060 = vadd.f32 0.0, %v1059
    %v1061 = vpop.f32.mrf.mxu0
    %1062 = vmatprep.mubr.bf16.mxu0 0
    %1063 = vmatmul.mubr.bf16.gmra.mxu0 %v1020
    %v1064 = vpop.f32.mrf.mxu0
    %v1065 = vadd.f32 0.0, %v1064
    %v1066 = vpop.f32.mrf.mxu0
    %v1067 = vpop.f32.mrf.mxu0
    %v1068 = vadd.f32 0.0, %v1067
    %v1069 = vpop.f32.mrf.mxu0
    %1070 = vdwg.mxu0
    %1071 = vrot.lane.b32.xlu0 %v703, 112
    %v1072 = vpop.permute.xlu0 %1071
    %1073 = vrot.lane.b32.xlu0 %v704, 112
    %v1074 = vpop.permute.xlu0 %1073
    %1075 = vrot.lane.b32.xlu0 %v703, 80
    %v1076 = vpop.permute.xlu0 %1075
    %1077 = vrot.lane.b32.xlu0 %v704, 80
    %v1078 = vpop.permute.xlu0 %1077
    %v1080 = vsel %vm390, %v1072, 0
    %v1083 = vsel %vm390, %v1074, 0
    %v1086 = vsel %vm390, %v1076, 0
    %v1089 = vsel %vm390, %v1078, 0
    %1091 = vmatprep.subr.bf16.mxu0 0
    %1092 = vmatpush1.bf16.xpose.msra.mxu0 0
    %1093 = vmatprep.subr.bf16.mxu0 0
    %1094 = vmatpush1.bf16.xpose.msra.mxu0 0
    %1095 = vmatprep.subr.bf16.mxu0 0
    %1096 = vmatpush1.bf16.xpose.msra.mxu0 0
    %1097 = vmatprep.subr.bf16.mxu0 0
    %1098 = vmatpush1.bf16.xpose.msra.mxu0 0
    %1099 = vmatprep.subr.bf16.mxu0 0
    %1100 = vmatpush1.bf16.xpose.msra.mxu0 0
    %1101 = vmatprep.subr.bf16.mxu0 0
    %1102 = vmatpush1.bf16.xpose.msra.mxu0 0
    %1103 = vmatprep.subr.bf16.mxu0 0
    %1104 = vmatpush1.bf16.xpose.msra.mxu0 %v1089
    %1105 = vmatprep.subr.bf16.mxu0 0
    %1106 = vmatpush1.bf16.xpose.msra.mxu0 %v1086
    %1107 = vmatprep.subr.bf16.mxu0 0
    %1108 = vmatpush2.bf16.xpose.msra.mxu0 0
    %1109 = vmatprep.subr.bf16.mxu0 0
    %1110 = vmatpush2.bf16.xpose.msra.mxu0 0
    %1111 = vmatprep.subr.bf16.mxu0 0
    %1112 = vmatpush2.bf16.xpose.msra.mxu0 0
    %1113 = vmatprep.subr.bf16.mxu0 0
    %1114 = vmatpush2.bf16.xpose.msra.mxu0 0
    %1115 = vmatprep.subr.bf16.mxu0 0
    %1116 = vmatpush2.bf16.xpose.msra.mxu0 0
    %1117 = vmatprep.subr.bf16.mxu0 0
    %1118 = vmatpush2.bf16.xpose.msra.mxu0 0
    %1119 = vmatprep.subr.bf16.mxu0 0
    %1120 = vmatpush2.bf16.xpose.msra.mxu0 0
    %1121 = vmatprep.subr.bf16.mxu0 0
    %1122 = vmatpush2.bf16.xpose.msra.mxu0 0
    %1123 = vmatprep.mubr.bf16.mxu0 0
    %1124 = vmatmul.mubr.bf16.gmra.mxu0 %v1080
    %v1125 = vpop.f32.mrf.mxu0
    %v1126 = vadd.f32 0.0, %v1125
    %v1127 = vpop.f32.mrf.mxu0
    %v1128 = vpop.f32.mrf.mxu0
    %v1129 = vadd.f32 0.0, %v1128
    %v1130 = vpop.f32.mrf.mxu0
    %1131 = vmatprep.mubr.bf16.mxu0 0
    %1132 = vmatmul.mubr.bf16.gmra.mxu0 %v1083
    %v1133 = vpop.f32.mrf.mxu0
    %v1134 = vadd.f32 0.0, %v1133
    %v1135 = vpop.f32.mrf.mxu0
    %v1136 = vpop.f32.mrf.mxu0
    %v1137 = vadd.f32 0.0, %v1136
    %v1138 = vpop.f32.mrf.mxu0
    %1139 = vdwg.mxu0
    %v1140 = vmul.f32 %v1126, 0.35355338
    %v1141 = vmul.f32 %v1129, 0.35355338
    %v1142 = vmul.f32 %v1134, 0.35355338
    %v1143 = vmul.f32 %v1137, 0.35355338
    %v1144 = vadd.f32 %v1140, %v288
    %v1145 = vadd.f32 %v1141, %v289
    %v1146 = vadd.f32 %v1142, %v290
    %v1147 = vadd.f32 %v1143, %v291
    %v1148 = vsel %vm292, %v1144, -inf
    %1149 = vmax.xlane.f32.xlu0 %v1148
    %v1150 = vpop.xlane.xlu0 %1149
    %v1151 = vsel %vm292, %v1145, -inf
    %1152 = vmax.xlane.f32.xlu0 %v1151
    %v1153 = vpop.xlane.xlu0 %1152
    %v1154 = vsel %vm292, %v1146, -inf
    %1155 = vmax.xlane.f32.xlu0 %v1154
    %v1156 = vpop.xlane.xlu0 %1155
    %v1157 = vsel %vm292, %v1147, -inf
    %1158 = vmax.xlane.f32.xlu0 %v1157
    %v1159 = vpop.xlane.xlu0 %1158
    %v1160 = vsub.f32 %v1144, %v1150
    %v1161 = vsub.f32 %v1145, %v1153
    %v1162 = vsub.f32 %v1146, %v1156
    %v1163 = vsub.f32 %v1147, %v1159
    %v1164 = vmul.f32 %v1160, 1.442695
    %v1165 = vpow.pop %v1164
    %v1166 = vmul.f32 %v1161, 1.442695
    %v1167 = vpow.pop %v1166
    %v1168 = vmul.f32 %v1162, 1.442695
    %v1169 = vpow.pop %v1168
    %v1170 = vmul.f32 %v1163, 1.442695
    %v1171 = vpow.pop %v1170
    %v1172 = vsel %vm292, %v1165, 0.0
    %1173 = vadd.xlane.f32.xlu0 %v1172
    %v1174 = vpop.xlane.xlu0 %1173
    %v1175 = vsel %vm292, %v1167, 0.0
    %1176 = vadd.xlane.f32.xlu0 %v1175
    %v1177 = vpop.xlane.xlu0 %1176
    %v1178 = vsel %vm292, %v1169, 0.0
    %1179 = vadd.xlane.f32.xlu0 %v1178
    %v1180 = vpop.xlane.xlu0 %1179
    %v1181 = vsel %vm292, %v1171, 0.0
    %1182 = vadd.xlane.f32.xlu0 %v1181
    %v1183 = vpop.xlane.xlu0 %1182
    %v1184 = vrcp.pop %v1174
    %v1185 = vrcp.pop %v1177
    %v1186 = vrcp.pop %v1180
    %v1187 = vrcp.pop %v1183
    %v1188 = vmul.f32 %v1165, %v1184
    %v1189 = vmul.f32 %v1167, %v1185
    %v1190 = vmul.f32 %v1169, %v1186
    %v1191 = vmul.f32 %v1171, %v1187
    %v1192 = vpack.c.bf16 %v1189, %v1188
    %v1193 = vpack.c.bf16 %v1191, %v1190
    %1194 = vrot.lane.b32.xlu0 %v703, 48
    %v1195 = vpop.permute.xlu0 %1194
    %1196 = vrot.lane.b32.xlu0 %v704, 48
    %v1197 = vpop.permute.xlu0 %1196
    %v1201 = vsel %vm292, %v1192, 0
    %v1204 = vsel %vm292, %v1193, 0
    %1206 = vmatprep.subr.bf16.mxu0 0
    %1207 = vmatpush1.bf16.msra.mxu0 0
    %1208 = vmatprep.subr.bf16.mxu0 0
    %1209 = vmatpush1.bf16.msra.mxu0 0
    %1210 = vmatprep.subr.bf16.mxu0 0
    %1211 = vmatpush1.bf16.msra.mxu0 0
    %1212 = vmatprep.subr.bf16.mxu0 0
    %1213 = vmatpush1.bf16.msra.mxu0 0
    %1214 = vmatprep.subr.bf16.mxu0 0
    %1215 = vmatpush1.bf16.msra.mxu0 0
    %1216 = vmatprep.subr.bf16.mxu0 0
    %1217 = vmatpush1.bf16.msra.mxu0 0
    %1218 = vmatprep.subr.bf16.mxu0 0
    %1219 = vmatpush1.bf16.msra.mxu0 %v1197
    %1220 = vmatprep.subr.bf16.mxu0 0
    %1221 = vmatpush1.bf16.msra.mxu0 %v1195
    %1222 = vmatprep.subr.bf16.mxu0 0
    %1223 = vmatpush2.bf16.msra.mxu0 0
    %1224 = vmatprep.subr.bf16.mxu0 0
    %1225 = vmatpush2.bf16.msra.mxu0 0
    %1226 = vmatprep.subr.bf16.mxu0 0
    %1227 = vmatpush2.bf16.msra.mxu0 0
    %1228 = vmatprep.subr.bf16.mxu0 0
    %1229 = vmatpush2.bf16.msra.mxu0 0
    %1230 = vmatprep.subr.bf16.mxu0 0
    %1231 = vmatpush2.bf16.msra.mxu0 0
    %1232 = vmatprep.subr.bf16.mxu0 0
    %1233 = vmatpush2.bf16.msra.mxu0 0
    %1234 = vmatprep.subr.bf16.mxu0 0
    %1235 = vmatpush2.bf16.msra.mxu0 0
    %1236 = vmatprep.subr.bf16.mxu0 0
    %1237 = vmatpush2.bf16.msra.mxu0 0
    %1238 = vmatprep.mubr.bf16.mxu0 0
    %1239 = vmatmul.mubr.bf16.gmra.mxu0 %v1201
    %v1240 = vpop.f32.mrf.mxu0
    %v1241 = vadd.f32 0.0, %v1240
    %v1242 = vpop.f32.mrf.mxu0
    %v1243 = vpop.f32.mrf.mxu0
    %v1244 = vadd.f32 0.0, %v1243
    %v1245 = vpop.f32.mrf.mxu0
    %1246 = vmatprep.mubr.bf16.mxu0 0
    %1247 = vmatmul.mubr.bf16.gmra.mxu0 %v1204
    %v1248 = vpop.f32.mrf.mxu0
    %v1249 = vadd.f32 0.0, %v1248
    %v1250 = vpop.f32.mrf.mxu0
    %v1251 = vpop.f32.mrf.mxu0
    %v1252 = vadd.f32 0.0, %v1251
    %v1253 = vpop.f32.mrf.mxu0
    %1254 = vdwg.mxu0
    %1255 = vrot.lane.b32.xlu0 %v703, 104
    %v1256 = vpop.permute.xlu0 %1255
    %1257 = vrot.lane.b32.xlu0 %v704, 104
    %v1258 = vpop.permute.xlu0 %1257
    %1259 = vrot.lane.b32.xlu0 %v703, 72
    %v1260 = vpop.permute.xlu0 %1259
    %1261 = vrot.lane.b32.xlu0 %v704, 72
    %v1262 = vpop.permute.xlu0 %1261
    %v1264 = vsel %vm390, %v1256, 0
    %v1267 = vsel %vm390, %v1258, 0
    %v1270 = vsel %vm390, %v1260, 0
    %v1273 = vsel %vm390, %v1262, 0
    %1275 = vmatprep.subr.bf16.mxu0 0
    %1276 = vmatpush1.bf16.xpose.msra.mxu0 0
    %1277 = vmatprep.subr.bf16.mxu0 0
    %1278 = vmatpush1.bf16.xpose.msra.mxu0 0
    %1279 = vmatprep.subr.bf16.mxu0 0
    %1280 = vmatpush1.bf16.xpose.msra.mxu0 0
    %1281 = vmatprep.subr.bf16.mxu0 0
    %1282 = vmatpush1.bf16.xpose.msra.mxu0 0
    %1283 = vmatprep.subr.bf16.mxu0 0
    %1284 = vmatpush1.bf16.xpose.msra.mxu0 0
    %1285 = vmatprep.subr.bf16.mxu0 0
    %1286 = vmatpush1.bf16.xpose.msra.mxu0 0
    %1287 = vmatprep.subr.bf16.mxu0 0
    %1288 = vmatpush1.bf16.xpose.msra.mxu0 %v1273
    %1289 = vmatprep.subr.bf16.mxu0 0
    %1290 = vmatpush1.bf16.xpose.msra.mxu0 %v1270
    %1291 = vmatprep.subr.bf16.mxu0 0
    %1292 = vmatpush2.bf16.xpose.msra.mxu0 0
    %1293 = vmatprep.subr.bf16.mxu0 0
    %1294 = vmatpush2.bf16.xpose.msra.mxu0 0
    %1295 = vmatprep.subr.bf16.mxu0 0
    %1296 = vmatpush2.bf16.xpose.msra.mxu0 0
    %1297 = vmatprep.subr.bf16.mxu0 0
    %1298 = vmatpush2.bf16.xpose.msra.mxu0 0
    %1299 = vmatprep.subr.bf16.mxu0 0
    %1300 = vmatpush2.bf16.xpose.msra.mxu0 0
    %1301 = vmatprep.subr.bf16.mxu0 0
    %1302 = vmatpush2.bf16.xpose.msra.mxu0 0
    %1303 = vmatprep.subr.bf16.mxu0 0
    %1304 = vmatpush2.bf16.xpose.msra.mxu0 0
    %1305 = vmatprep.subr.bf16.mxu0 0
    %1306 = vmatpush2.bf16.xpose.msra.mxu0 0
    %1307 = vmatprep.mubr.bf16.mxu0 0
    %1308 = vmatmul.mubr.bf16.gmra.mxu0 %v1264
    %v1309 = vpop.f32.mrf.mxu0
    %v1310 = vadd.f32 0.0, %v1309
    %v1311 = vpop.f32.mrf.mxu0
    %v1312 = vpop.f32.mrf.mxu0
    %v1313 = vadd.f32 0.0, %v1312
    %v1314 = vpop.f32.mrf.mxu0
    %1315 = vmatprep.mubr.bf16.mxu0 0
    %1316 = vmatmul.mubr.bf16.gmra.mxu0 %v1267
    %v1317 = vpop.f32.mrf.mxu0
    %v1318 = vadd.f32 0.0, %v1317
    %v1319 = vpop.f32.mrf.mxu0
    %v1320 = vpop.f32.mrf.mxu0
    %v1321 = vadd.f32 0.0, %v1320
    %v1322 = vpop.f32.mrf.mxu0
    %1323 = vdwg.mxu0
    %v1324 = vmul.f32 %v1310, 0.35355338
    %v1325 = vmul.f32 %v1313, 0.35355338
    %v1326 = vmul.f32 %v1318, 0.35355338
    %v1327 = vmul.f32 %v1321, 0.35355338
    %v1328 = vadd.f32 %v1324, %v288
    %v1329 = vadd.f32 %v1325, %v289
    %v1330 = vadd.f32 %v1326, %v290
    %v1331 = vadd.f32 %v1327, %v291
    %v1332 = vsel %vm292, %v1328, -inf
    %1333 = vmax.xlane.f32.xlu0 %v1332
    %v1334 = vpop.xlane.xlu0 %1333
    %v1335 = vsel %vm292, %v1329, -inf
    %1336 = vmax.xlane.f32.xlu0 %v1335
    %v1337 = vpop.xlane.xlu0 %1336
    %v1338 = vsel %vm292, %v1330, -inf
    %1339 = vmax.xlane.f32.xlu0 %v1338
    %v1340 = vpop.xlane.xlu0 %1339
    %v1341 = vsel %vm292, %v1331, -inf
    %1342 = vmax.xlane.f32.xlu0 %v1341
    %v1343 = vpop.xlane.xlu0 %1342
    %v1344 = vsub.f32 %v1328, %v1334
    %v1345 = vsub.f32 %v1329, %v1337
    %v1346 = vsub.f32 %v1330, %v1340
    %v1347 = vsub.f32 %v1331, %v1343
    %v1348 = vmul.f32 %v1344, 1.442695
    %v1349 = vpow.pop %v1348
    %v1350 = vmul.f32 %v1345, 1.442695
    %v1351 = vpow.pop %v1350
    %v1352 = vmul.f32 %v1346, 1.442695
    %v1353 = vpow.pop %v1352
    %v1354 = vmul.f32 %v1347, 1.442695
    %v1355 = vpow.pop %v1354
    %v1356 = vsel %vm292, %v1349, 0.0
    %1357 = vadd.xlane.f32.xlu0 %v1356
    %v1358 = vpop.xlane.xlu0 %1357
    %v1359 = vsel %vm292, %v1351, 0.0
    %1360 = vadd.xlane.f32.xlu0 %v1359
    %v1361 = vpop.xlane.xlu0 %1360
    %v1362 = vsel %vm292, %v1353, 0.0
    %1363 = vadd.xlane.f32.xlu0 %v1362
    %v1364 = vpop.xlane.xlu0 %1363
    %v1365 = vsel %vm292, %v1355, 0.0
    %1366 = vadd.xlane.f32.xlu0 %v1365
    %v1367 = vpop.xlane.xlu0 %1366
    %v1368 = vrcp.pop %v1358
    %v1369 = vrcp.pop %v1361
    %v1370 = vrcp.pop %v1364
    %v1371 = vrcp.pop %v1367
    %v1372 = vmul.f32 %v1349, %v1368
    %v1373 = vmul.f32 %v1351, %v1369
    %v1374 = vmul.f32 %v1353, %v1370
    %v1375 = vmul.f32 %v1355, %v1371
    %v1376 = vpack.c.bf16 %v1373, %v1372
    %v1377 = vpack.c.bf16 %v1375, %v1374
    %1378 = vrot.lane.b32.xlu0 %v703, 40
    %v1379 = vpop.permute.xlu0 %1378
    %1380 = vrot.lane.b32.xlu0 %v704, 40
    %v1381 = vpop.permute.xlu0 %1380
    %v1385 = vsel %vm292, %v1376, 0
    %v1388 = vsel %vm292, %v1377, 0
    %1390 = vmatprep.subr.bf16.mxu0 0
    %1391 = vmatpush1.bf16.msra.mxu0 0
    %1392 = vmatprep.subr.bf16.mxu0 0
    %1393 = vmatpush1.bf16.msra.mxu0 0
    %1394 = vmatprep.subr.bf16.mxu0 0
    %1395 = vmatpush1.bf16.msra.mxu0 0
    %1396 = vmatprep.subr.bf16.mxu0 0
    %1397 = vmatpush1.bf16.msra.mxu0 0
    %1398 = vmatprep.subr.bf16.mxu0 0
    %1399 = vmatpush1.bf16.msra.mxu0 0
    %1400 = vmatprep.subr.bf16.mxu0 0
    %1401 = vmatpush1.bf16.msra.mxu0 0
    %1402 = vmatprep.subr.bf16.mxu0 0
    %1403 = vmatpush1.bf16.msra.mxu0 %v1381
    %1404 = vmatprep.subr.bf16.mxu0 0
    %1405 = vmatpush1.bf16.msra.mxu0 %v1379
    %1406 = vmatprep.subr.bf16.mxu0 0
    %1407 = vmatpush2.bf16.msra.mxu0 0
    %1408 = vmatprep.subr.bf16.mxu0 0
    %1409 = vmatpush2.bf16.msra.mxu0 0
    %1410 = vmatprep.subr.bf16.mxu0 0
    %1411 = vmatpush2.bf16.msra.mxu0 0
    %1412 = vmatprep.subr.bf16.mxu0 0
    %1413 = vmatpush2.bf16.msra.mxu0 0
    %1414 = vmatprep.subr.bf16.mxu0 0
    %1415 = vmatpush2.bf16.msra.mxu0 0
    %1416 = vmatprep.subr.bf16.mxu0 0
    %1417 = vmatpush2.bf16.msra.mxu0 0
    %1418 = vmatprep.subr.bf16.mxu0 0
    %1419 = vmatpush2.bf16.msra.mxu0 0
    %1420 = vmatprep.subr.bf16.mxu0 0
    %1421 = vmatpush2.bf16.msra.mxu0 0
    %1422 = vmatprep.mubr.bf16.mxu0 0
    %1423 = vmatmul.mubr.bf16.gmra.mxu0 %v1385
    %v1424 = vpop.f32.mrf.mxu0
    %v1425 = vadd.f32 0.0, %v1424
    %v1426 = vpop.f32.mrf.mxu0
    %v1427 = vpop.f32.mrf.mxu0
    %v1428 = vadd.f32 0.0, %v1427
    %v1429 = vpop.f32.mrf.mxu0
    %1430 = vmatprep.mubr.bf16.mxu0 0
    %1431 = vmatmul.mubr.bf16.gmra.mxu0 %v1388
    %v1432 = vpop.f32.mrf.mxu0
    %v1433 = vadd.f32 0.0, %v1432
    %v1434 = vpop.f32.mrf.mxu0
    %v1435 = vpop.f32.mrf.mxu0
    %v1436 = vadd.f32 0.0, %v1435
    %v1437 = vpop.f32.mrf.mxu0
    %1438 = vdwg.mxu0
    %1443 = vrot.lane.b32.xlu0 %v1057, 8
    %v1444 = vpop.permute.xlu0 %1443
    %1445 = vrot.lane.b32.xlu0 %v1060, 8
    %v1446 = vpop.permute.xlu0 %1445
    %1447 = vrot.lane.b32.xlu0 %v1065, 8
    %v1448 = vpop.permute.xlu0 %1447
    %1449 = vrot.lane.b32.xlu0 %v1068, 8
    %v1450 = vpop.permute.xlu0 %1449
    %1459 = vrot.lane.b32.xlu0 %v1241, 16
    %v1460 = vpop.permute.xlu0 %1459
    %1461 = vrot.lane.b32.xlu0 %v1244, 16
    %v1462 = vpop.permute.xlu0 %1461
    %1463 = vrot.lane.b32.xlu0 %v1249, 16
    %v1464 = vpop.permute.xlu0 %1463
    %1465 = vrot.lane.b32.xlu0 %v1252, 16
    %v1466 = vpop.permute.xlu0 %1465
    %1475 = vrot.lane.b32.xlu0 %v1425, 24
    %v1476 = vpop.permute.xlu0 %1475
    %1477 = vrot.lane.b32.xlu0 %v1428, 24
    %v1478 = vpop.permute.xlu0 %1477
    %1479 = vrot.lane.b32.xlu0 %v1433, 24
    %v1480 = vpop.permute.xlu0 %1479
    %1481 = vrot.lane.b32.xlu0 %v1436, 24
    %v1482 = vpop.permute.xlu0 %1481
    %v1487 = vsel %vm390, %v873, %v1444
    %v1488 = vsel %vm390, %v876, %v1446
    %v1489 = vsel %vm390, %v881, %v1448
    %v1490 = vsel %vm390, %v884, %v1450
    %vm1491 = vcmask 130048
    %v1492 = vsel %vm1491, %v1487, %v1460
    %v1493 = vsel %vm1491, %v1488, %v1462
    %v1494 = vsel %vm1491, %v1489, %v1464
    %v1495 = vsel %vm1491, %v1490, %v1466
    %vm1496 = vcmask 195584
    %v1497 = vsel %vm1496, %v1492, %v1476
    %v1498 = vsel %vm1496, %v1493, %v1478
    %v1499 = vsel %vm1496, %v1494, %v1480
    %v1500 = vsel %vm1496, %v1495, %v1482
    %v1501 = vpack.c.bf16 %v1498, %v1497
    %v1502 = vpack.c.bf16 %v1500, %v1499
    %v1503 = vld [vmem:[%s17] sm:$0xf]
    %v1504 = vld [vmem:[%s17 + $0x4] sm:$0xf]
    %v1505 = vld [vmem:[%s17 + $0x8] sm:$0xf]
    %v1506 = vld [vmem:[%s17 + $0xc] sm:$0xf]
    %v1507 = vld [vmem:[%s19] sm:$0x1]
    %v1509 = vlaneseq
    %v1510 = vshrl.u32 %v1509, 7
    %v1511 = vsub.s32 0, %v1510
    %v1512 = vrot.slane %v1507, %v1511
    %v1518 = vunpack.c.l.b16 %v1503
    %v1519 = vunpack.c.l.b16 %v1504
    %v1520 = vunpack.c.l.b16 %v1505
    %v1521 = vunpack.c.l.b16 %v1506
    %v1522 = vpack.c.b16 %v1519, %v1518
    %v1523 = vpack.c.b16 %v1521, %v1520
    %v1527 = vsel %vm292, %v1501, 0
    %v1530 = vsel %vm292, %v1502, 0
    %1532 = vmatprep.subr.bf16.mxu0 0
    %1533 = vmatpush1.bf16.msra.mxu0 0
    %1534 = vmatprep.subr.bf16.mxu0 0
    %1535 = vmatpush1.bf16.msra.mxu0 0
    %1536 = vmatprep.subr.bf16.mxu0 0
    %1537 = vmatpush1.bf16.msra.mxu0 0
    %1538 = vmatprep.subr.bf16.mxu0 0
    %1539 = vmatpush1.bf16.msra.mxu0 0
    %1540 = vmatprep.subr.bf16.mxu0 0
    %1541 = vmatpush1.bf16.msra.mxu0 0
    %1542 = vmatprep.subr.bf16.mxu0 0
    %1543 = vmatpush1.bf16.msra.mxu0 0
    %1544 = vmatprep.subr.bf16.mxu0 0
    %1545 = vmatpush1.bf16.msra.mxu0 %v1523
    %1546 = vmatprep.subr.bf16.mxu0 0
    %1547 = vmatpush1.bf16.msra.mxu0 %v1522
    %1548 = vmatprep.subr.bf16.mxu0 0
    %1549 = vmatpush2.bf16.msra.mxu0 0
    %1550 = vmatprep.subr.bf16.mxu0 0
    %1551 = vmatpush2.bf16.msra.mxu0 0
    %1552 = vmatprep.subr.bf16.mxu0 0
    %1553 = vmatpush2.bf16.msra.mxu0 0
    %1554 = vmatprep.subr.bf16.mxu0 0
    %1555 = vmatpush2.bf16.msra.mxu0 0
    %1556 = vmatprep.subr.bf16.mxu0 0
    %1557 = vmatpush2.bf16.msra.mxu0 0
    %1558 = vmatprep.subr.bf16.mxu0 0
    %1559 = vmatpush2.bf16.msra.mxu0 0
    %1560 = vmatprep.subr.bf16.mxu0 0
    %1561 = vmatpush2.bf16.msra.mxu0 0
    %1562 = vmatprep.subr.bf16.mxu0 0
    %1563 = vmatpush2.bf16.msra.mxu0 0
    %1564 = vmatprep.mubr.bf16.mxu0 0
    %1565 = vmatmul.mubr.bf16.gmra.mxu0 %v1527
    %v1566 = vpop.f32.mrf.mxu0
    %v1567 = vadd.f32 %v1512, %v1566
    %v1568 = vpop.f32.mrf.mxu0
    %v1569 = vpop.f32.mrf.mxu0
    %v1570 = vadd.f32 %v1512, %v1569
    %v1571 = vpop.f32.mrf.mxu0
    %1572 = vmatprep.mubr.bf16.mxu0 0
    %1573 = vmatmul.mubr.bf16.gmra.mxu0 %v1530
    %v1574 = vpop.f32.mrf.mxu0
    %v1575 = vadd.f32 %v1512, %v1574
    %v1576 = vpop.f32.mrf.mxu0
    %v1577 = vpop.f32.mrf.mxu0
    %v1578 = vadd.f32 %v1512, %v1577
    %v1579 = vpop.f32.mrf.mxu0
    %1580 = vdwg.mxu0
    %v1581 = vadd.f32 %v609, %v1567
    %v1582 = vadd.f32 %v612, %v1570
    %v1583 = vadd.f32 %v617, %v1575
    %v1584 = vadd.f32 %v620, %v1578
    %v1585 = vld [vmem:[%s21] sm:$0x1]
    %v1586 = vld [vmem:[%s23] sm:$0x1]
    %v1587 = vsel %vm292, %v1581, 0.0
    %1588 = vadd.xlane.f32.xlu0 %v1587
    %v1589 = vpop.xlane.xlu0 %1588
    %v1590 = vsel %vm292, %v1582, 0.0
    %1591 = vadd.xlane.f32.xlu0 %v1590
    %v1592 = vpop.xlane.xlu0 %1591
    %v1593 = vsel %vm292, %v1583, 0.0
    %1594 = vadd.xlane.f32.xlu0 %v1593
    %v1595 = vpop.xlane.xlu0 %1594
    %v1596 = vsel %vm292, %v1584, 0.0
    %1597 = vadd.xlane.f32.xlu0 %v1596
    %v1598 = vpop.xlane.xlu0 %1597
    %v1599 = vrcp.pop 32.0
    %v1600 = vmul.f32 %v1589, %v1599
    %v1601 = vmul.f32 %v1592, %v1599
    %v1602 = vmul.f32 %v1595, %v1599
    %v1603 = vmul.f32 %v1598, %v1599
    %v1604 = vsub.f32 %v1581, %v1600
    %v1605 = vsub.f32 %v1582, %v1601
    %v1606 = vsub.f32 %v1583, %v1602
    %v1607 = vsub.f32 %v1584, %v1603
    %v1608 = vmul.f32 %v1604, %v1604
    %v1609 = vmul.f32 %v1605, %v1605
    %v1610 = vmul.f32 %v1606, %v1606
    %v1611 = vmul.f32 %v1607, %v1607
    %v1612 = vsel %vm292, %v1608, 0.0
    %1613 = vadd.xlane.f32.xlu0 %v1612
    %v1614 = vpop.xlane.xlu0 %1613
    %v1615 = vsel %vm292, %v1609, 0.0
    %1616 = vadd.xlane.f32.xlu0 %v1615
    %v1617 = vpop.xlane.xlu0 %1616
    %v1618 = vsel %vm292, %v1610, 0.0
    %1619 = vadd.xlane.f32.xlu0 %v1618
    %v1620 = vpop.xlane.xlu0 %1619
    %v1621 = vsel %vm292, %v1611, 0.0
    %1622 = vadd.xlane.f32.xlu0 %v1621
    %v1623 = vpop.xlane.xlu0 %1622
    %v1624 = vmul.f32 %v1614, %v1599
    %v1625 = vmul.f32 %v1617, %v1599
    %v1626 = vmul.f32 %v1620, %v1599
    %v1627 = vmul.f32 %v1623, %v1599
    %v1628 = vadd.f32 %v1624, 1e-05
    %v1629 = vadd.f32 %v1625, 1e-05
    %v1630 = vadd.f32 %v1626, 1e-05
    %v1631 = vadd.f32 %v1627, 1e-05
    %v1632 = vrsqrt.pop %v1628
    %v1633 = vrsqrt.pop %v1629
    %v1634 = vrsqrt.pop %v1630
    %v1635 = vrsqrt.pop %v1631
    %v1636 = vmul.f32 %v1604, %v1632
    %v1637 = vmul.f32 %v1605, %v1633
    %v1638 = vmul.f32 %v1606, %v1634
    %v1639 = vmul.f32 %v1607, %v1635
    %v1641 = vlaneseq
    %v1642 = vshrl.u32 %v1641, 7
    %v1643 = vsub.s32 0, %v1642
    %v1644 = vrot.slane %v1585, %v1643
    %v1646 = vmul.f32 %v1636, %v1644
    %v1647 = vmul.f32 %v1637, %v1644
    %v1648 = vmul.f32 %v1638, %v1644
    %v1649 = vmul.f32 %v1639, %v1644
    %v1651 = vlaneseq
    %v1652 = vshrl.u32 %v1651, 7
    %v1653 = vsub.s32 0, %v1652
    %v1654 = vrot.slane %v1586, %v1653
    %v1656 = vadd.f32 %v1646, %v1654
    %v1657 = vadd.f32 %v1647, %v1654
    %v1658 = vadd.f32 %v1648, %v1654
    %v1659 = vadd.f32 %v1649, %v1654
    %v1660 = vpack.c.bf16 %v1657, %v1656
    %v1661 = vpack.c.bf16 %v1659, %v1658
    %v1662 = vld [vmem:[#allocation2] sm:$0xf]
    %v1663 = vld [vmem:[#allocation2 + $0x4] sm:$0xf]
    %v1664 = vld [vmem:[#allocation2 + $0x8] sm:$0xf]
    %v1665 = vld [vmem:[#allocation2 + $0xc] sm:$0xf]
    %v1666 = vld [vmem:[%s27] sm:$0x1]
    %v1668 = vlaneseq
    %v1669 = vshrl.u32 %v1668, 7
    %v1670 = vsub.s32 0, %v1669
    %v1671 = vrot.slane %v1666, %v1670
    %v1677 = vunpack.c.l.b16 %v1662
    %v1678 = vunpack.c.l.b16 %v1663
    %v1679 = vunpack.c.l.b16 %v1664
    %v1680 = vunpack.c.l.b16 %v1665
    %v1681 = vpack.c.b16 %v1678, %v1677
    %v1682 = vpack.c.b16 %v1680, %v1679
    %v1686 = vsel %vm292, %v1660, 0
    %v1689 = vsel %vm292, %v1661, 0
    %1691 = vmatprep.subr.bf16.mxu0 0
    %1692 = vmatpush1.bf16.msra.mxu0 0
    %1693 = vmatprep.subr.bf16.mxu0 0
    %1694 = vmatpush1.bf16.msra.mxu0 0
    %1695 = vmatprep.subr.bf16.mxu0 0
    %1696 = vmatpush1.bf16.msra.mxu0 0
    %1697 = vmatprep.subr.bf16.mxu0 0
    %1698 = vmatpush1.bf16.msra.mxu0 0
    %1699 = vmatprep.subr.bf16.mxu0 0
    %1700 = vmatpush1.bf16.msra.mxu0 0
    %1701 = vmatprep.subr.bf16.mxu0 0
    %1702 = vmatpush1.bf16.msra.mxu0 0
    %1703 = vmatprep.subr.bf16.mxu0 0
    %1704 = vmatpush1.bf16.msra.mxu0 %v1682
    %1705 = vmatprep.subr.bf16.mxu0 0
    %1706 = vmatpush1.bf16.msra.mxu0 %v1681
    %1707 = vmatprep.subr.bf16.mxu0 0
    %1708 = vmatpush2.bf16.msra.mxu0 0
    %1709 = vmatprep.subr.bf16.mxu0 0
    %1710 = vmatpush2.bf16.msra.mxu0 0
    %1711 = vmatprep.subr.bf16.mxu0 0
    %1712 = vmatpush2.bf16.msra.mxu0 0
    %1713 = vmatprep.subr.bf16.mxu0 0
    %1714 = vmatpush2.bf16.msra.mxu0 0
    %1715 = vmatprep.subr.bf16.mxu0 0
    %1716 = vmatpush2.bf16.msra.mxu0 0
    %1717 = vmatprep.subr.bf16.mxu0 0
    %1718 = vmatpush2.bf16.msra.mxu0 0
    %1719 = vmatprep.subr.bf16.mxu0 0
    %1720 = vmatpush2.bf16.msra.mxu0 0
    %1721 = vmatprep.subr.bf16.mxu0 0
    %1722 = vmatpush2.bf16.msra.mxu0 0
    %1723 = vmatprep.mubr.bf16.mxu0 0
    %1724 = vmatmul.mubr.bf16.gmra.mxu0 %v1686
    %v1725 = vpop.f32.mrf.mxu0
    %v1726 = vadd.f32 %v1671, %v1725
    %v1727 = vpop.f32.mrf.mxu0
    %v1728 = vpop.f32.mrf.mxu0
    %v1729 = vadd.f32 %v1671, %v1728
    %v1730 = vpop.f32.mrf.mxu0
    %1731 = vmatprep.mubr.bf16.mxu0 0
    %1732 = vmatmul.mubr.bf16.gmra.mxu0 %v1689
    %v1733 = vpop.f32.mrf.mxu0
    %v1734 = vadd.f32 %v1671, %v1733
    %v1735 = vpop.f32.mrf.mxu0
    %v1736 = vpop.f32.mrf.mxu0
    %v1737 = vadd.f32 %v1671, %v1736
    %v1738 = vpop.f32.mrf.mxu0
    %1739 = vdwg.mxu0
    %v1740 = vmul.f32 %v1726, 0.5
    %v1741 = vmul.f32 %v1729, 0.5
    %v1742 = vmul.f32 %v1734, 0.5
    %v1743 = vmul.f32 %v1737, 0.5
    %v1744 = vmul.f32 %v1726, 0.044715
    %v1745 = vmul.f32 %v1729, 0.044715
    %v1746 = vmul.f32 %v1734, 0.044715
    %v1747 = vmul.f32 %v1737, 0.044715
    %v1748 = vmul.f32 %v1744, %v1726
    %v1749 = vmul.f32 %v1745, %v1729
    %v1750 = vmul.f32 %v1746, %v1734
    %v1751 = vmul.f32 %v1747, %v1737
    %v1752 = vmul.f32 %v1748, %v1726
    %v1753 = vmul.f32 %v1749, %v1729
    %v1754 = vmul.f32 %v1750, %v1734
    %v1755 = vmul.f32 %v1751, %v1737
    %v1756 = vadd.f32 %v1726, %v1752
    %v1757 = vadd.f32 %v1729, %v1753
    %v1758 = vadd.f32 %v1734, %v1754
    %v1759 = vadd.f32 %v1737, %v1755
    %v1760 = vmul.f32 %v1756, 0.7978846
    %v1761 = vmul.f32 %v1757, 0.7978846
    %v1762 = vmul.f32 %v1758, 0.7978846
    %v1763 = vmul.f32 %v1759, 0.7978846
    %v1764 = vtanh.pop %v1760
    %v1765 = vtanh.pop %v1761
    %v1766 = vtanh.pop %v1762
    %v1767 = vtanh.pop %v1763
    %v1768 = vadd.f32 %v1764, 1.0
    %v1769 = vadd.f32 %v1765, 1.0
    %v1770 = vadd.f32 %v1766, 1.0
    %v1771 = vadd.f32 %v1767, 1.0
    %v1772 = vmul.f32 %v1740, %v1768
    %v1773 = vmul.f32 %v1741, %v1769
    %v1774 = vmul.f32 %v1742, %v1770
    %v1775 = vmul.f32 %v1743, %v1771
    %v1776 = vpack.c.bf16 %v1773, %v1772
    %v1777 = vpack.c.bf16 %v1775, %v1774
    %v1778 = vld [vmem:[#allocation4] sm:$0xf]
    %v1779 = vld [vmem:[#allocation4 + $0x4] sm:$0xf]
    %v1780 = vld [vmem:[#allocation4 + $0x8] sm:$0xf]
    %v1781 = vld [vmem:[#allocation4 + $0xc] sm:$0xf]
    %v1782 = vld [vmem:[#allocation4 + $0x10] sm:$0xf]
    %v1783 = vld [vmem:[#allocation4 + $0x14] sm:$0xf]
    %v1784 = vld [vmem:[#allocation4 + $0x18] sm:$0xf]
    %v1785 = vld [vmem:[#allocation4 + $0x1c] sm:$0xf]
    %v1786 = vld [vmem:[%s31] sm:$0x1]
    %v1788 = vlaneseq
    %v1789 = vshrl.u32 %v1788, 7
    %v1790 = vsub.s32 0, %v1789
    %v1791 = vrot.slane %v1786, %v1790
    %v1801 = vunpack.c.l.b16 %v1778
    %v1802 = vunpack.c.l.b16 %v1779
    %v1803 = vunpack.c.l.b16 %v1780
    %v1804 = vunpack.c.l.b16 %v1781
    %v1805 = vunpack.c.l.b16 %v1782
    %v1806 = vunpack.c.l.b16 %v1783
    %v1807 = vunpack.c.l.b16 %v1784
    %v1808 = vunpack.c.l.b16 %v1785
    %v1809 = vpack.c.b16 %v1802, %v1801
    %v1810 = vpack.c.b16 %v1804, %v1803
    %v1811 = vpack.c.b16 %v1806, %v1805
    %v1812 = vpack.c.b16 %v1808, %v1807
    %vm1817 = vcmask 523264
    %v1819 = vsel %vm1817, %v1776, 0
    %v1822 = vsel %vm1817, %v1777, 0
    %1824 = vmatprep.subr.bf16.mxu0 0
    %1825 = vmatpush1.bf16.msra.mxu0 0
    %1826 = vmatprep.subr.bf16.mxu0 0
    %1827 = vmatpush1.bf16.msra.mxu0 0
    %1828 = vmatprep.subr.bf16.mxu0 0
    %1829 = vmatpush1.bf16.msra.mxu0 0
    %1830 = vmatprep.subr.bf16.mxu0 0
    %1831 = vmatpush1.bf16.msra.mxu0 0
    %1832 = vmatprep.subr.bf16.mxu0 0
    %1833 = vmatpush1.bf16.msra.mxu0 %v1812
    %1834 = vmatprep.subr.bf16.mxu0 0
    %1835 = vmatpush1.bf16.msra.mxu0 %v1811
    %1836 = vmatprep.subr.bf16.mxu0 0
    %1837 = vmatpush1.bf16.msra.mxu0 %v1810
    %1838 = vmatprep.subr.bf16.mxu0 0
    %1839 = vmatpush1.bf16.msra.mxu0 %v1809
    %1840 = vmatprep.subr.bf16.mxu0 0
    %1841 = vmatpush2.bf16.msra.mxu0 0
    %1842 = vmatprep.subr.bf16.mxu0 0
    %1843 = vmatpush2.bf16.msra.mxu0 0
    %1844 = vmatprep.subr.bf16.mxu0 0
    %1845 = vmatpush2.bf16.msra.mxu0 0
    %1846 = vmatprep.subr.bf16.mxu0 0
    %1847 = vmatpush2.bf16.msra.mxu0 0
    %1848 = vmatprep.subr.bf16.mxu0 0
    %1849 = vmatpush2.bf16.msra.mxu0 0
    %1850 = vmatprep.subr.bf16.mxu0 0
    %1851 = vmatpush2.bf16.msra.mxu0 0
    %1852 = vmatprep.subr.bf16.mxu0 0
    %1853 = vmatpush2.bf16.msra.mxu0 0
    %1854 = vmatprep.subr.bf16.mxu0 0
    %1855 = vmatpush2.bf16.msra.mxu0 0
    %1856 = vmatprep.mubr.bf16.mxu0 0
    %1857 = vmatmul.mubr.bf16.gmra.mxu0 %v1819
    %v1858 = vpop.f32.mrf.mxu0
    %v1859 = vadd.f32 %v1791, %v1858
    %v1860 = vpop.f32.mrf.mxu0
    %v1861 = vpop.f32.mrf.mxu0
    %v1862 = vadd.f32 %v1791, %v1861
    %v1863 = vpop.f32.mrf.mxu0
    %1864 = vmatprep.mubr.bf16.mxu0 0
    %1865 = vmatmul.mubr.bf16.gmra.mxu0 %v1822
    %v1866 = vpop.f32.mrf.mxu0
    %v1867 = vadd.f32 %v1791, %v1866
    %v1868 = vpop.f32.mrf.mxu0
    %v1869 = vpop.f32.mrf.mxu0
    %v1870 = vadd.f32 %v1791, %v1869
    %v1871 = vpop.f32.mrf.mxu0
    %1872 = vdwg.mxu0
    %v1873 = vadd.f32 %v1656, %v1859
    %v1874 = vadd.f32 %v1657, %v1862
    %v1875 = vadd.f32 %v1658, %v1867
    %v1876 = vadd.f32 %v1659, %v1870
    %v1877 = vld [vmem:[%s33] sm:$0x1]
    %v1878 = vld [vmem:[%s35] sm:$0x1]
    %v1879 = vsel %vm292, %v1873, 0.0
    %1880 = vadd.xlane.f32.xlu0 %v1879
    %v1881 = vpop.xlane.xlu0 %1880
    %v1882 = vsel %vm292, %v1874, 0.0
    %1883 = vadd.xlane.f32.xlu0 %v1882
    %v1884 = vpop.xlane.xlu0 %1883
    %v1885 = vsel %vm292, %v1875, 0.0
    %1886 = vadd.xlane.f32.xlu0 %v1885
    %v1887 = vpop.xlane.xlu0 %1886
    %v1888 = vsel %vm292, %v1876, 0.0
    %1889 = vadd.xlane.f32.xlu0 %v1888
    %v1890 = vpop.xlane.xlu0 %1889
    %v1891 = vmul.f32 %v1881, %v1599
    %v1892 = vmul.f32 %v1884, %v1599
    %v1893 = vmul.f32 %v1887, %v1599
    %v1894 = vmul.f32 %v1890, %v1599
    %v1895 = vsub.f32 %v1873, %v1891
    %v1896 = vsub.f32 %v1874, %v1892
    %v1897 = vsub.f32 %v1875, %v1893
    %v1898 = vsub.f32 %v1876, %v1894
    %v1899 = vmul.f32 %v1895, %v1895
    %v1900 = vmul.f32 %v1896, %v1896
    %v1901 = vmul.f32 %v1897, %v1897
    %v1902 = vmul.f32 %v1898, %v1898
    %v1903 = vsel %vm292, %v1899, 0.0
    %1904 = vadd.xlane.f32.xlu0 %v1903
    %v1905 = vpop.xlane.xlu0 %1904
    %v1906 = vsel %vm292, %v1900, 0.0
    %1907 = vadd.xlane.f32.xlu0 %v1906
    %v1908 = vpop.xlane.xlu0 %1907
    %v1909 = vsel %vm292, %v1901, 0.0
    %1910 = vadd.xlane.f32.xlu0 %v1909
    %v1911 = vpop.xlane.xlu0 %1910
    %v1912 = vsel %vm292, %v1902, 0.0
    %1913 = vadd.xlane.f32.xlu0 %v1912
    %v1914 = vpop.xlane.xlu0 %1913
    %v1915 = vmul.f32 %v1905, %v1599
    %v1916 = vmul.f32 %v1908, %v1599
    %v1917 = vmul.f32 %v1911, %v1599
    %v1918 = vmul.f32 %v1914, %v1599
    %v1919 = vadd.f32 %v1915, 1e-05
    %v1920 = vadd.f32 %v1916, 1e-05
    %v1921 = vadd.f32 %v1917, 1e-05
    %v1922 = vadd.f32 %v1918, 1e-05
    %v1923 = vrsqrt.pop %v1919
    %v1924 = vrsqrt.pop %v1920
    %v1925 = vrsqrt.pop %v1921
    %v1926 = vrsqrt.pop %v1922
    %v1927 = vmul.f32 %v1895, %v1923
    %v1928 = vmul.f32 %v1896, %v1924
    %v1929 = vmul.f32 %v1897, %v1925
    %v1930 = vmul.f32 %v1898, %v1926
    %v1932 = vlaneseq
    %v1933 = vshrl.u32 %v1932, 7
    %v1934 = vsub.s32 0, %v1933
    %v1935 = vrot.slane %v1877, %v1934
    %v1937 = vmul.f32 %v1927, %v1935
    %v1938 = vmul.f32 %v1928, %v1935
    %v1939 = vmul.f32 %v1929, %v1935
    %v1940 = vmul.f32 %v1930, %v1935
    %v1942 = vlaneseq
    %v1943 = vshrl.u32 %v1942, 7
    %v1944 = vsub.s32 0, %v1943
    %v1945 = vrot.slane %v1878, %v1944
    %v1947 = vadd.f32 %v1937, %v1945
    %v1948 = vadd.f32 %v1938, %v1945
    %v1949 = vadd.f32 %v1939, %v1945
    %v1950 = vadd.f32 %v1940, %v1945
    %v1951 = vld [vmem:[%s37] sm:$0x1]
    %v1952 = vld [vmem:[%s39] sm:$0x1]
    %v1953 = vsel %vm292, %v1947, 0.0
    %1954 = vadd.xlane.f32.xlu0 %v1953
    %v1955 = vpop.xlane.xlu0 %1954
    %v1956 = vsel %vm292, %v1948, 0.0
    %1957 = vadd.xlane.f32.xlu0 %v1956
    %v1958 = vpop.xlane.xlu0 %1957
    %v1959 = vsel %vm292, %v1949, 0.0
    %1960 = vadd.xlane.f32.xlu0 %v1959
    %v1961 = vpop.xlane.xlu0 %1960
    %v1962 = vsel %vm292, %v1950, 0.0
    %1963 = vadd.xlane.f32.xlu0 %v1962
    %v1964 = vpop.xlane.xlu0 %1963
    %v1965 = vmul.f32 %v1955, %v1599
    %v1966 = vmul.f32 %v1958, %v1599
    %v1967 = vmul.f32 %v1961, %v1599
    %v1968 = vmul.f32 %v1964, %v1599
    %v1969 = vsub.f32 %v1947, %v1965
    %v1970 = vsub.f32 %v1948, %v1966
    %v1971 = vsub.f32 %v1949, %v1967
    %v1972 = vsub.f32 %v1950, %v1968
    %v1973 = vmul.f32 %v1969, %v1969
    %v1974 = vmul.f32 %v1970, %v1970
    %v1975 = vmul.f32 %v1971, %v1971
    %v1976 = vmul.f32 %v1972, %v1972
    %v1977 = vsel %vm292, %v1973, 0.0
    %1978 = vadd.xlane.f32.xlu0 %v1977
    %v1979 = vpop.xlane.xlu0 %1978
    %v1980 = vsel %vm292, %v1974, 0.0
    %1981 = vadd.xlane.f32.xlu0 %v1980
    %v1982 = vpop.xlane.xlu0 %1981
    %v1983 = vsel %vm292, %v1975, 0.0
    %1984 = vadd.xlane.f32.xlu0 %v1983
    %v1985 = vpop.xlane.xlu0 %1984
    %v1986 = vsel %vm292, %v1976, 0.0
    %1987 = vadd.xlane.f32.xlu0 %v1986
    %v1988 = vpop.xlane.xlu0 %1987
    %v1989 = vmul.f32 %v1979, %v1599
    %v1990 = vmul.f32 %v1982, %v1599
    %v1991 = vmul.f32 %v1985, %v1599
    %v1992 = vmul.f32 %v1988, %v1599
    %v1993 = vadd.f32 %v1989, 1e-05
    %v1994 = vadd.f32 %v1990, 1e-05
    %v1995 = vadd.f32 %v1991, 1e-05
    %v1996 = vadd.f32 %v1992, 1e-05
    %v1997 = vrsqrt.pop %v1993
    %v1998 = vrsqrt.pop %v1994
    %v1999 = vrsqrt.pop %v1995
    %v2000 = vrsqrt.pop %v1996
    %v2001 = vmul.f32 %v1969, %v1997
    %v2002 = vmul.f32 %v1970, %v1998
    %v2003 = vmul.f32 %v1971, %v1999
    %v2004 = vmul.f32 %v1972, %v2000
    %v2006 = vlaneseq
    %v2007 = vshrl.u32 %v2006, 7
    %v2008 = vsub.s32 0, %v2007
    %v2009 = vrot.slane %v1951, %v2008
    %v2011 = vmul.f32 %v2001, %v2009
    %v2012 = vmul.f32 %v2002, %v2009
    %v2013 = vmul.f32 %v2003, %v2009
    %v2014 = vmul.f32 %v2004, %v2009
    %v2016 = vlaneseq
    %v2017 = vshrl.u32 %v2016, 7
    %v2018 = vsub.s32 0, %v2017
    %v2019 = vrot.slane %v1952, %v2018
    %v2021 = vadd.f32 %v2011, %v2019
    %v2022 = vadd.f32 %v2012, %v2019
    %v2023 = vadd.f32 %v2013, %v2019
    %v2024 = vadd.f32 %v2014, %v2019
    %v2025 = vpack.c.bf16 %v2022, %v2021
    %v2026 = vpack.c.bf16 %v2024, %v2023
    %v2027 = vld [vmem:[#allocation6] sm:$0xf]
    %v2028 = vld [vmem:[#allocation6 + $0x4] sm:$0xf]
    %v2029 = vld [vmem:[#allocation6 + $0x8] sm:$0xf]
    %v2030 = vld [vmem:[#allocation6 + $0xc] sm:$0xf]
    %v2031 = vld [vmem:[%s43] sm:$0x1]
    %v2033 = vlaneseq
    %v2034 = vshrl.u32 %v2033, 7
    %v2035 = vsub.s32 0, %v2034
    %v2036 = vrot.slane %v2031, %v2035
    %v2042 = vunpack.c.l.b16 %v2027
    %v2043 = vunpack.c.l.b16 %v2028
    %v2044 = vunpack.c.l.b16 %v2029
    %v2045 = vunpack.c.l.b16 %v2030
    %v2046 = vpack.c.b16 %v2043, %v2042
    %v2047 = vpack.c.b16 %v2045, %v2044
    %v2051 = vsel %vm292, %v2025, 0
    %v2054 = vsel %vm292, %v2026, 0
    %2056 = vmatprep.subr.bf16.mxu0 0
    %2057 = vmatpush1.bf16.msra.mxu0 0
    %2058 = vmatprep.subr.bf16.mxu0 0
    %2059 = vmatpush1.bf16.msra.mxu0 0
    %2060 = vmatprep.subr.bf16.mxu0 0
    %2061 = vmatpush1.bf16.msra.mxu0 0
    %2062 = vmatprep.subr.bf16.mxu0 0
    %2063 = vmatpush1.bf16.msra.mxu0 0
    %2064 = vmatprep.subr.bf16.mxu0 0
    %2065 = vmatpush1.bf16.msra.mxu0 0
    %2066 = vmatprep.subr.bf16.mxu0 0
    %2067 = vmatpush1.bf16.msra.mxu0 0
    %2068 = vmatprep.subr.bf16.mxu0 0
    %2069 = vmatpush1.bf16.msra.mxu0 %v2047
    %2070 = vmatprep.subr.bf16.mxu0 0
    %2071 = vmatpush1.bf16.msra.mxu0 %v2046
    %2072 = vmatprep.subr.bf16.mxu0 0
    %2073 = vmatpush2.bf16.msra.mxu0 0
    %2074 = vmatprep.subr.bf16.mxu0 0
    %2075 = vmatpush2.bf16.msra.mxu0 0
    %2076 = vmatprep.subr.bf16.mxu0 0
    %2077 = vmatpush2.bf16.msra.mxu0 0
    %2078 = vmatprep.subr.bf16.mxu0 0
    %2079 = vmatpush2.bf16.msra.mxu0 0
    %2080 = vmatprep.subr.bf16.mxu0 0
    %2081 = vmatpush2.bf16.msra.mxu0 0
    %2082 = vmatprep.subr.bf16.mxu0 0
    %2083 = vmatpush2.bf16.msra.mxu0 0
    %2084 = vmatprep.subr.bf16.mxu0 0
    %2085 = vmatpush2.bf16.msra.mxu0 0
    %2086 = vmatprep.subr.bf16.mxu0 0
    %2087 = vmatpush2.bf16.msra.mxu0 0
    %2088 = vmatprep.mubr.bf16.mxu0 0
    %2089 = vmatmul.mubr.bf16.gmra.mxu0 %v2051
    %v2090 = vpop.f32.mrf.mxu0
    %v2091 = vadd.f32 %v2036, %v2090
    %v2092 = vpop.f32.mrf.mxu0
    %v2093 = vpop.f32.mrf.mxu0
    %v2094 = vadd.f32 %v2036, %v2093
    %v2095 = vpop.f32.mrf.mxu0
    %2096 = vmatprep.mubr.bf16.mxu0 0
    %2097 = vmatmul.mubr.bf16.gmra.mxu0 %v2054
    %v2098 = vpop.f32.mrf.mxu0
    %v2099 = vadd.f32 %v2036, %v2098
    %v2100 = vpop.f32.mrf.mxu0
    %v2101 = vpop.f32.mrf.mxu0
    %v2102 = vadd.f32 %v2036, %v2101
    %v2103 = vpop.f32.mrf.mxu0
    %2104 = vdwg.mxu0
    %v2105 = vadd.f32 %v2091, 0.0
    %v2106 = vadd.f32 %v2094, 0.0
    %v2107 = vadd.f32 %v2099, 0.0
    %v2108 = vadd.f32 %v2102, 0.0
    %vm2113 = vcmask 1040384
    %v2114 = vrot.slane %v2091, 7
    %v2115 = vrot.slane %v2094, 7
    %v2116 = vsel %vm2113, %v2114, %v2115
    %v2117 = vrot.slane %v2099, 7
    %v2118 = vsel %vm2113, %v2115, %v2117
    %v2119 = vrot.slane %v2102, 7
    %v2120 = vsel %vm2113, %v2117, %v2119
    %v2125 = vsel %vm2113, 0.0, %v2114
    %2127 = vset.pattern.permute.xlu0 0
    %2128 = vperm.xlu0 %2127, %v284
    %v2129 = vpop.permute.xlu0 %2128
    %2132 = vset.pattern.permute.xlu0 0
    %2133 = vperm.xlu0 %2132, %v285
    %v2134 = vpop.permute.xlu0 %2133
    %2137 = vset.pattern.permute.xlu0 0
    %2138 = vperm.xlu0 %2137, %v286
    %v2139 = vpop.permute.xlu0 %2138
    %2142 = vset.pattern.permute.xlu0 0
    %2143 = vperm.xlu0 %2142, %v287
    %v2144 = vpop.permute.xlu0 %2143
    %v2146 = vmul.f32 %v2125, %v2129
    %v2147 = vmul.f32 %v2116, %v2134
    %v2148 = vmul.f32 %v2118, %v2139
    %v2149 = vmul.f32 %v2120, %v2144
    %v2150 = vsub.f32 %v557, %v2146
    %v2151 = vsub.f32 %v558, %v2147
    %v2152 = vsub.f32 %v559, %v2148
    %v2153 = vsub.f32 %v560, %v2149
    %2158 = vrot.lane.b32.xlu0 %v2150, 127
    %v2159 = vpop.permute.xlu0 %2158
    %2160 = vrot.lane.b32.xlu0 %v2151, 127
    %v2161 = vpop.permute.xlu0 %2160
    %2162 = vrot.lane.b32.xlu0 %v2152, 127
    %v2163 = vpop.permute.xlu0 %2162
    %2164 = vrot.lane.b32.xlu0 %v2153, 127
    %v2165 = vpop.permute.xlu0 %2164
    %vm2170 = vcmask 56320
    %v2171 = vsel %vm2170, %v2159, 0.0
    %v2172 = vsel %vm2170, %v2161, 0.0
    %v2173 = vsel %vm2170, %v2163, 0.0
    %v2174 = vsel %vm2170, %v2165, 0.0
    %v2175 = vmax.f32 %v2150, %v2171
    %v2176 = vmax.f32 %v2151, %v2172
    %v2177 = vmax.f32 %v2152, %v2173
    %v2178 = vmax.f32 %v2153, %v2174
    %v2179 = vpack.c.bf16 %v2176, %v2175
    %v2180 = vpack.c.bf16 %v2178, %v2177
    %v2181 = vld [vmem:[%s45] sm:$0xf]
    %v2183 = vsel %vm390, %v2179, 0
    %v2186 = vsel %vm390, %v2180, 0
    %v2189 = vsel %vm570, %v2181, 0
    %2191 = vmatprep.subr.bf16.mxu0 0
    %2192 = vmatpush1.bf16.msra.mxu0 0
    %2193 = vmatprep.subr.bf16.mxu0 0
    %2194 = vmatpush1.bf16.msra.mxu0 0
    %2195 = vmatprep.subr.bf16.mxu0 0
    %2196 = vmatpush1.bf16.msra.mxu0 0
    %2197 = vmatprep.subr.bf16.mxu0 0
    %2198 = vmatpush1.bf16.msra.mxu0 0
    %2199 = vmatprep.subr.bf16.mxu0 0
    %2200 = vmatpush1.bf16.msra.mxu0 0
    %2201 = vmatprep.subr.bf16.mxu0 0
    %2202 = vmatpush1.bf16.msra.mxu0 0
    %2203 = vmatprep.subr.bf16.mxu0 0
    %2204 = vmatpush1.bf16.msra.mxu0 0
    %2205 = vmatprep.subr.bf16.mxu0 0
    %2206 = vmatpush1.bf16.msra.mxu0 %v2189
    %2207 = vmatprep.subr.bf16.mxu0 0
    %2208 = vmatpush2.bf16.msra.mxu0 0
    %2209 = vmatprep.subr.bf16.mxu0 0
    %2210 = vmatpush2.bf16.msra.mxu0 0
    %2211 = vmatprep.subr.bf16.mxu0 0
    %2212 = vmatpush2.bf16.msra.mxu0 0
    %2213 = vmatprep.subr.bf16.mxu0 0
    %2214 = vmatpush2.bf16.msra.mxu0 0
    %2215 = vmatprep.subr.bf16.mxu0 0
    %2216 = vmatpush2.bf16.msra.mxu0 0
    %2217 = vmatprep.subr.bf16.mxu0 0
    %2218 = vmatpush2.bf16.msra.mxu0 0
    %2219 = vmatprep.subr.bf16.mxu0 0
    %2220 = vmatpush2.bf16.msra.mxu0 0
    %2221 = vmatprep.subr.bf16.mxu0 0
    %2222 = vmatpush2.bf16.msra.mxu0 0
    %2223 = vmatprep.mubr.bf16.mxu0 0
    %2224 = vmatmul.mubr.bf16.gmra.mxu0 %v2183
    %v2225 = vpop.f32.mrf.mxu0
    %v2226 = vadd.f32 %v276, %v2225
    %v2227 = vpop.f32.mrf.mxu0
    %v2228 = vpop.f32.mrf.mxu0
    %v2229 = vadd.f32 %v277, %v2228
    %v2230 = vpop.f32.mrf.mxu0
    %2231 = vmatprep.mubr.bf16.mxu0 0
    %2232 = vmatmul.mubr.bf16.gmra.mxu0 %v2186
    %v2233 = vpop.f32.mrf.mxu0
    %v2234 = vadd.f32 %v278, %v2233
    %v2235 = vpop.f32.mrf.mxu0
    %v2236 = vpop.f32.mrf.mxu0
    %v2237 = vadd.f32 %v279, %v2236
    %v2238 = vpop.f32.mrf.mxu0
    %2239 = vdwg.mxu0
    %v2240 = vpack.c.bf16 %v2229, %v2226
    %v2241 = vpack.c.bf16 %v2237, %v2234
    %v2242 = vld [vmem:[#allocation7] sm:$0xf]
    %v2243 = vld [vmem:[#allocation7 + $0x4] sm:$0xf]
    %v2244 = vld [vmem:[#allocation7 + $0x8] sm:$0xf]
    %v2245 = vld [vmem:[#allocation7 + $0xc] sm:$0xf]
    %v2246 = vld [vmem:[%s49] sm:$0x1]
    %v2248 = vlaneseq
    %v2249 = vshrl.u32 %v2248, 7
    %v2250 = vsub.s32 0, %v2249
    %v2251 = vrot.slane %v2246, %v2250
    %v2257 = vunpack.c.l.b16 %v2242
    %v2258 = vunpack.c.l.b16 %v2243
    %v2259 = vunpack.c.l.b16 %v2244
    %v2260 = vunpack.c.l.b16 %v2245
    %v2261 = vpack.c.b16 %v2258, %v2257
    %v2262 = vpack.c.b16 %v2260, %v2259
    %v2266 = vsel %vm292, %v2240, 0
    %v2269 = vsel %vm292, %v2241, 0
    %2271 = vmatprep.subr.bf16.mxu0 0
    %2272 = vmatpush1.bf16.msra.mxu0 0
    %2273 = vmatprep.subr.bf16.mxu0 0
    %2274 = vmatpush1.bf16.msra.mxu0 0
    %2275 = vmatprep.subr.bf16.mxu0 0
    %2276 = vmatpush1.bf16.msra.mxu0 0
    %2277 = vmatprep.subr.bf16.mxu0 0
    %2278 = vmatpush1.bf16.msra.mxu0 0
    %2279 = vmatprep.subr.bf16.mxu0 0
    %2280 = vmatpush1.bf16.msra.mxu0 0
    %2281 = vmatprep.subr.bf16.mxu0 0
    %2282 = vmatpush1.bf16.msra.mxu0 0
    %2283 = vmatprep.subr.bf16.mxu0 0
    %2284 = vmatpush1.bf16.msra.mxu0 %v2262
    %2285 = vmatprep.subr.bf16.mxu0 0
    %2286 = vmatpush1.bf16.msra.mxu0 %v2261
    %2287 = vmatprep.subr.bf16.mxu0 0
    %2288 = vmatpush2.bf16.msra.mxu0 0
    %2289 = vmatprep.subr.bf16.mxu0 0
    %2290 = vmatpush2.bf16.msra.mxu0 0
    %2291 = vmatprep.subr.bf16.mxu0 0
    %2292 = vmatpush2.bf16.msra.mxu0 0
    %2293 = vmatprep.subr.bf16.mxu0 0
    %2294 = vmatpush2.bf16.msra.mxu0 0
    %2295 = vmatprep.subr.bf16.mxu0 0
    %2296 = vmatpush2.bf16.msra.mxu0 0
    %2297 = vmatprep.subr.bf16.mxu0 0
    %2298 = vmatpush2.bf16.msra.mxu0 0
    %2299 = vmatprep.subr.bf16.mxu0 0
    %2300 = vmatpush2.bf16.msra.mxu0 0
    %2301 = vmatprep.subr.bf16.mxu0 0
    %2302 = vmatpush2.bf16.msra.mxu0 0
    %2303 = vmatprep.mubr.bf16.mxu0 0
    %2304 = vmatmul.mubr.bf16.gmra.mxu0 %v2266
    %v2305 = vpop.f32.mrf.mxu0
    %v2306 = vadd.f32 %v2251, %v2305
    %v2307 = vpop.f32.mrf.mxu0
    %v2308 = vpop.f32.mrf.mxu0
    %v2309 = vadd.f32 %v2251, %v2308
    %v2310 = vpop.f32.mrf.mxu0
    %2311 = vmatprep.mubr.bf16.mxu0 0
    %2312 = vmatmul.mubr.bf16.gmra.mxu0 %v2269
    %v2313 = vpop.f32.mrf.mxu0
    %v2314 = vadd.f32 %v2251, %v2313
    %v2315 = vpop.f32.mrf.mxu0
    %v2316 = vpop.f32.mrf.mxu0
    %v2317 = vadd.f32 %v2251, %v2316
    %v2318 = vpop.f32.mrf.mxu0
    %2319 = vdwg.mxu0
    %v2320 = vpack.c.bf16 %v2309, %v2306
    %v2321 = vpack.c.bf16 %v2317, %v2314
    %2324 = vrot.lane.b32.xlu0 %v2320, 96
    %v2325 = vpop.permute.xlu0 %2324
    %2326 = vrot.lane.b32.xlu0 %v2321, 96
    %v2327 = vpop.permute.xlu0 %2326
    %v2329 = vsel %vm390, %v2320, 0
    %v2332 = vsel %vm390, %v2321, 0
    %v2335 = vsel %vm390, %v2325, 0
    %v2338 = vsel %vm390, %v2327, 0
    %2340 = vmatprep.subr.bf16.mxu0 0
    %2341 = vmatpush1.bf16.xpose.msra.mxu0 0
    %2342 = vmatprep.subr.bf16.mxu0 0
    %2343 = vmatpush1.bf16.xpose.msra.mxu0 0
    %2344 = vmatprep.subr.bf16.mxu0 0
    %2345 = vmatpush1.bf16.xpose.msra.mxu0 0
    %2346 = vmatprep.subr.bf16.mxu0 0
    %2347 = vmatpush1.bf16.xpose.msra.mxu0 0
    %2348 = vmatprep.subr.bf16.mxu0 0
    %2349 = vmatpush1.bf16.xpose.msra.mxu0 0
    %2350 = vmatprep.subr.bf16.mxu0 0
    %2351 = vmatpush1.bf16.xpose.msra.mxu0 0
    %2352 = vmatprep.subr.bf16.mxu0 0
    %2353 = vmatpush1.bf16.xpose.msra.mxu0 %v2338
    %2354 = vmatprep.subr.bf16.mxu0 0
    %2355 = vmatpush1.bf16.xpose.msra.mxu0 %v2335
    %2356 = vmatprep.subr.bf16.mxu0 0
    %2357 = vmatpush2.bf16.xpose.msra.mxu0 0
    %2358 = vmatprep.subr.bf16.mxu0 0
    %2359 = vmatpush2.bf16.xpose.msra.mxu0 0
    %2360 = vmatprep.subr.bf16.mxu0 0
    %2361 = vmatpush2.bf16.xpose.msra.mxu0 0
    %2362 = vmatprep.subr.bf16.mxu0 0
    %2363 = vmatpush2.bf16.xpose.msra.mxu0 0
    %2364 = vmatprep.subr.bf16.mxu0 0
    %2365 = vmatpush2.bf16.xpose.msra.mxu0 0
    %2366 = vmatprep.subr.bf16.mxu0 0
    %2367 = vmatpush2.bf16.xpose.msra.mxu0 0
    %2368 = vmatprep.subr.bf16.mxu0 0
    %2369 = vmatpush2.bf16.xpose.msra.mxu0 0
    %2370 = vmatprep.subr.bf16.mxu0 0
    %2371 = vmatpush2.bf16.xpose.msra.mxu0 0
    %2372 = vmatprep.mubr.bf16.mxu0 0
    %2373 = vmatmul.mubr.bf16.gmra.mxu0 %v2329
    %v2374 = vpop.f32.mrf.mxu0
    %v2375 = vadd.f32 0.0, %v2374
    %v2376 = vpop.f32.mrf.mxu0
    %v2377 = vpop.f32.mrf.mxu0
    %v2378 = vadd.f32 0.0, %v2377
    %v2379 = vpop.f32.mrf.mxu0
    %2380 = vmatprep.mubr.bf16.mxu0 0
    %2381 = vmatmul.mubr.bf16.gmra.mxu0 %v2332
    %v2382 = vpop.f32.mrf.mxu0
    %v2383 = vadd.f32 0.0, %v2382
    %v2384 = vpop.f32.mrf.mxu0
    %v2385 = vpop.f32.mrf.mxu0
    %v2386 = vadd.f32 0.0, %v2385
    %v2387 = vpop.f32.mrf.mxu0
    %2388 = vdwg.mxu0
    %v2389 = vmul.f32 %v2375, 0.35355338
    %v2390 = vmul.f32 %v2378, 0.35355338
    %v2391 = vmul.f32 %v2383, 0.35355338
    %v2392 = vmul.f32 %v2386, 0.35355338
    %v2393 = vadd.f32 %v2389, %v288
    %v2394 = vadd.f32 %v2390, %v289
    %v2395 = vadd.f32 %v2391, %v290
    %v2396 = vadd.f32 %v2392, %v291
    %v2397 = vsel %vm292, %v2393, -inf
    %2398 = vmax.xlane.f32.xlu0 %v2397
    %v2399 = vpop.xlane.xlu0 %2398
    %v2400 = vsel %vm292, %v2394, -inf
    %2401 = vmax.xlane.f32.xlu0 %v2400
    %v2402 = vpop.xlane.xlu0 %2401
    %v2403 = vsel %vm292, %v2395, -inf
    %2404 = vmax.xlane.f32.xlu0 %v2403
    %v2405 = vpop.xlane.xlu0 %2404
    %v2406 = vsel %vm292, %v2396, -inf
    %2407 = vmax.xlane.f32.xlu0 %v2406
    %v2408 = vpop.xlane.xlu0 %2407
    %v2409 = vsub.f32 %v2393, %v2399
    %v2410 = vsub.f32 %v2394, %v2402
    %v2411 = vsub.f32 %v2395, %v2405
    %v2412 = vsub.f32 %v2396, %v2408
    %v2413 = vmul.f32 %v2409, 1.442695
    %v2414 = vpow.pop %v2413
    %v2415 = vmul.f32 %v2410, 1.442695
    %v2416 = vpow.pop %v2415
    %v2417 = vmul.f32 %v2411, 1.442695
    %v2418 = vpow.pop %v2417
    %v2419 = vmul.f32 %v2412, 1.442695
    %v2420 = vpow.pop %v2419
    %v2421 = vsel %vm292, %v2414, 0.0
    %2422 = vadd.xlane.f32.xlu0 %v2421
    %v2423 = vpop.xlane.xlu0 %2422
    %v2424 = vsel %vm292, %v2416, 0.0
    %2425 = vadd.xlane.f32.xlu0 %v2424
    %v2426 = vpop.xlane.xlu0 %2425
    %v2427 = vsel %vm292, %v2418, 0.0
    %2428 = vadd.xlane.f32.xlu0 %v2427
    %v2429 = vpop.xlane.xlu0 %2428
    %v2430 = vsel %vm292, %v2420, 0.0
    %2431 = vadd.xlane.f32.xlu0 %v2430
    %v2432 = vpop.xlane.xlu0 %2431
    %v2433 = vrcp.pop %v2423
    %v2434 = vrcp.pop %v2426
    %v2435 = vrcp.pop %v2429
    %v2436 = vrcp.pop %v2432
    %v2437 = vmul.f32 %v2414, %v2433
    %v2438 = vmul.f32 %v2416, %v2434
    %v2439 = vmul.f32 %v2418, %v2435
    %v2440 = vmul.f32 %v2420, %v2436
    %v2441 = vpack.c.bf16 %v2438, %v2437
    %v2442 = vpack.c.bf16 %v2440, %v2439
    %2443 = vrot.lane.b32.xlu0 %v2320, 64
    %v2444 = vpop.permute.xlu0 %2443
    %2445 = vrot.lane.b32.xlu0 %v2321, 64
    %v2446 = vpop.permute.xlu0 %2445
    %v2450 = vsel %vm292, %v2441, 0
    %v2453 = vsel %vm292, %v2442, 0
    %2455 = vmatprep.subr.bf16.mxu0 0
    %2456 = vmatpush1.bf16.msra.mxu0 0
    %2457 = vmatprep.subr.bf16.mxu0 0
    %2458 = vmatpush1.bf16.msra.mxu0 0
    %2459 = vmatprep.subr.bf16.mxu0 0
    %2460 = vmatpush1.bf16.msra.mxu0 0
    %2461 = vmatprep.subr.bf16.mxu0 0
    %2462 = vmatpush1.bf16.msra.mxu0 0
    %2463 = vmatprep.subr.bf16.mxu0 0
    %2464 = vmatpush1.bf16.msra.mxu0 0
    %2465 = vmatprep.subr.bf16.mxu0 0
    %2466 = vmatpush1.bf16.msra.mxu0 0
    %2467 = vmatprep.subr.bf16.mxu0 0
    %2468 = vmatpush1.bf16.msra.mxu0 %v2446
    %2469 = vmatprep.subr.bf16.mxu0 0
    %2470 = vmatpush1.bf16.msra.mxu0 %v2444
    %2471 = vmatprep.subr.bf16.mxu0 0
    %2472 = vmatpush2.bf16.msra.mxu0 0
    %2473 = vmatprep.subr.bf16.mxu0 0
    %2474 = vmatpush2.bf16.msra.mxu0 0
    %2475 = vmatprep.subr.bf16.mxu0 0
    %2476 = vmatpush2.bf16.msra.mxu0 0
    %2477 = vmatprep.subr.bf16.mxu0 0
    %2478 = vmatpush2.bf16.msra.mxu0 0
    %2479 = vmatprep.subr.bf16.mxu0 0
    %2480 = vmatpush2.bf16.msra.mxu0 0
    %2481 = vmatprep.subr.bf16.mxu0 0
    %2482 = vmatpush2.bf16.msra.mxu0 0
    %2483 = vmatprep.subr.bf16.mxu0 0
    %2484 = vmatpush2.bf16.msra.mxu0 0
    %2485 = vmatprep.subr.bf16.mxu0 0
    %2486 = vmatpush2.bf16.msra.mxu0 0
    %2487 = vmatprep.mubr.bf16.mxu0 0
    %2488 = vmatmul.mubr.bf16.gmra.mxu0 %v2450
    %v2489 = vpop.f32.mrf.mxu0
    %v2490 = vadd.f32 0.0, %v2489
    %v2491 = vpop.f32.mrf.mxu0
    %v2492 = vpop.f32.mrf.mxu0
    %v2493 = vadd.f32 0.0, %v2492
    %v2494 = vpop.f32.mrf.mxu0
    %2495 = vmatprep.mubr.bf16.mxu0 0
    %2496 = vmatmul.mubr.bf16.gmra.mxu0 %v2453
    %v2497 = vpop.f32.mrf.mxu0
    %v2498 = vadd.f32 0.0, %v2497
    %v2499 = vpop.f32.mrf.mxu0
    %v2500 = vpop.f32.mrf.mxu0
    %v2501 = vadd.f32 0.0, %v2500
    %v2502 = vpop.f32.mrf.mxu0
    %2503 = vdwg.mxu0
    %2504 = vrot.lane.b32.xlu0 %v2320, 120
    %v2505 = vpop.permute.xlu0 %2504
    %2506 = vrot.lane.b32.xlu0 %v2321, 120
    %v2507 = vpop.permute.xlu0 %2506
    %2508 = vrot.lane.b32.xlu0 %v2320, 88
    %v2509 = vpop.permute.xlu0 %2508
    %2510 = vrot.lane.b32.xlu0 %v2321, 88
    %v2511 = vpop.permute.xlu0 %2510
    %v2513 = vsel %vm390, %v2505, 0
    %v2516 = vsel %vm390, %v2507, 0
    %v2519 = vsel %vm390, %v2509, 0
    %v2522 = vsel %vm390, %v2511, 0
    %2524 = vmatprep.subr.bf16.mxu0 0
    %2525 = vmatpush1.bf16.xpose.msra.mxu0 0
    %2526 = vmatprep.subr.bf16.mxu0 0
    %2527 = vmatpush1.bf16.xpose.msra.mxu0 0
    %2528 = vmatprep.subr.bf16.mxu0 0
    %2529 = vmatpush1.bf16.xpose.msra.mxu0 0
    %2530 = vmatprep.subr.bf16.mxu0 0
    %2531 = vmatpush1.bf16.xpose.msra.mxu0 0
    %2532 = vmatprep.subr.bf16.mxu0 0
    %2533 = vmatpush1.bf16.xpose.msra.mxu0 0
    %2534 = vmatprep.subr.bf16.mxu0 0
    %2535 = vmatpush1.bf16.xpose.msra.mxu0 0
    %2536 = vmatprep.subr.bf16.mxu0 0
    %2537 = vmatpush1.bf16.xpose.msra.mxu0 %v2522
    %2538 = vmatprep.subr.bf16.mxu0 0
    %2539 = vmatpush1.bf16.xpose.msra.mxu0 %v2519
    %2540 = vmatprep.subr.bf16.mxu0 0
    %2541 = vmatpush2.bf16.xpose.msra.mxu0 0
    %2542 = vmatprep.subr.bf16.mxu0 0
    %2543 = vmatpush2.bf16.xpose.msra.mxu0 0
    %2544 = vmatprep.subr.bf16.mxu0 0
    %2545 = vmatpush2.bf16.xpose.msra.mxu0 0
    %2546 = vmatprep.subr.bf16.mxu0 0
    %2547 = vmatpush2.bf16.xpose.msra.mxu0 0
    %2548 = vmatprep.subr.bf16.mxu0 0
    %2549 = vmatpush2.bf16.xpose.msra.mxu0 0
    %2550 = vmatprep.subr.bf16.mxu0 0
    %2551 = vmatpush2.bf16.xpose.msra.mxu0 0
    %2552 = vmatprep.subr.bf16.mxu0 0
    %2553 = vmatpush2.bf16.xpose.msra.mxu0 0
    %2554 = vmatprep.subr.bf16.mxu0 0
    %2555 = vmatpush2.bf16.xpose.msra.mxu0 0
    %2556 = vmatprep.mubr.bf16.mxu0 0
    %2557 = vmatmul.mubr.bf16.gmra.mxu0 %v2513
    %v2558 = vpop.f32.mrf.mxu0
    %v2559 = vadd.f32 0.0, %v2558
    %v2560 = vpop.f32.mrf.mxu0
    %v2561 = vpop.f32.mrf.mxu0
    %v2562 = vadd.f32 0.0, %v2561
    %v2563 = vpop.f32.mrf.mxu0
    %2564 = vmatprep.mubr.bf16.mxu0 0
    %2565 = vmatmul.mubr.bf16.gmra.mxu0 %v2516
    %v2566 = vpop.f32.mrf.mxu0
    %v2567 = vadd.f32 0.0, %v2566
    %v2568 = vpop.f32.mrf.mxu0
    %v2569 = vpop.f32.mrf.mxu0
    %v2570 = vadd.f32 0.0, %v2569
    %v2571 = vpop.f32.mrf.mxu0
    %2572 = vdwg.mxu0
    %v2573 = vmul.f32 %v2559, 0.35355338
    %v2574 = vmul.f32 %v2562, 0.35355338
    %v2575 = vmul.f32 %v2567, 0.35355338
    %v2576 = vmul.f32 %v2570, 0.35355338
    %v2577 = vadd.f32 %v2573, %v288
    %v2578 = vadd.f32 %v2574, %v289
    %v2579 = vadd.f32 %v2575, %v290
    %v2580 = vadd.f32 %v2576, %v291
    %v2581 = vsel %vm292, %v2577, -inf
    %2582 = vmax.xlane.f32.xlu0 %v2581
    %v2583 = vpop.xlane.xlu0 %2582
    %v2584 = vsel %vm292, %v2578, -inf
    %2585 = vmax.xlane.f32.xlu0 %v2584
    %v2586 = vpop.xlane.xlu0 %2585
    %v2587 = vsel %vm292, %v2579, -inf
    %2588 = vmax.xlane.f32.xlu0 %v2587
    %v2589 = vpop.xlane.xlu0 %2588
    %v2590 = vsel %vm292, %v2580, -inf
    %2591 = vmax.xlane.f32.xlu0 %v2590
    %v2592 = vpop.xlane.xlu0 %2591
    %v2593 = vsub.f32 %v2577, %v2583
    %v2594 = vsub.f32 %v2578, %v2586
    %v2595 = vsub.f32 %v2579, %v2589
    %v2596 = vsub.f32 %v2580, %v2592
    %v2597 = vmul.f32 %v2593, 1.442695
    %v2598 = vpow.pop %v2597
    %v2599 = vmul.f32 %v2594, 1.442695
    %v2600 = vpow.pop %v2599
    %v2601 = vmul.f32 %v2595, 1.442695
    %v2602 = vpow.pop %v2601
    %v2603 = vmul.f32 %v2596, 1.442695
    %v2604 = vpow.pop %v2603
    %v2605 = vsel %vm292, %v2598, 0.0
    %2606 = vadd.xlane.f32.xlu0 %v2605
    %v2607 = vpop.xlane.xlu0 %2606
    %v2608 = vsel %vm292, %v2600, 0.0
    %2609 = vadd.xlane.f32.xlu0 %v2608
    %v2610 = vpop.xlane.xlu0 %2609
    %v2611 = vsel %vm292, %v2602, 0.0
    %2612 = vadd.xlane.f32.xlu0 %v2611
    %v2613 = vpop.xlane.xlu0 %2612
    %v2614 = vsel %vm292, %v2604, 0.0
    %2615 = vadd.xlane.f32.xlu0 %v2614
    %v2616 = vpop.xlane.xlu0 %2615
    %v2617 = vrcp.pop %v2607
    %v2618 = vrcp.pop %v2610
    %v2619 = vrcp.pop %v2613
    %v2620 = vrcp.pop %v2616
    %v2621 = vmul.f32 %v2598, %v2617
    %v2622 = vmul.f32 %v2600, %v2618
    %v2623 = vmul.f32 %v2602, %v2619
    %v2624 = vmul.f32 %v2604, %v2620
    %v2625 = vpack.c.bf16 %v2622, %v2621
    %v2626 = vpack.c.bf16 %v2624, %v2623
    %2627 = vrot.lane.b32.xlu0 %v2320, 56
    %v2628 = vpop.permute.xlu0 %2627
    %2629 = vrot.lane.b32.xlu0 %v2321, 56
    %v2630 = vpop.permute.xlu0 %2629
    %v2634 = vsel %vm292, %v2625, 0
    %v2637 = vsel %vm292, %v2626, 0
    %2639 = vmatprep.subr.bf16.mxu0 0
    %2640 = vmatpush1.bf16.msra.mxu0 0
    %2641 = vmatprep.subr.bf16.mxu0 0
    %2642 = vmatpush1.bf16.msra.mxu0 0
    %2643 = vmatprep.subr.bf16.mxu0 0
    %2644 = vmatpush1.bf16.msra.mxu0 0
    %2645 = vmatprep.subr.bf16.mxu0 0
    %2646 = vmatpush1.bf16.msra.mxu0 0
    %2647 = vmatprep.subr.bf16.mxu0 0
    %2648 = vmatpush1.bf16.msra.mxu0 0
    %2649 = vmatprep.subr.bf16.mxu0 0
    %2650 = vmatpush1.bf16.msra.mxu0 0
    %2651 = vmatprep.subr.bf16.mxu0 0
    %2652 = vmatpush1.bf16.msra.mxu0 %v2630
    %2653 = vmatprep.subr.bf16.mxu0 0
    %2654 = vmatpush1.bf16.msra.mxu0 %v2628
    %2655 = vmatprep.subr.bf16.mxu0 0
    %2656 = vmatpush2.bf16.msra.mxu0 0
    %2657 = vmatprep.subr.bf16.mxu0 0
    %2658 = vmatpush2.bf16.msra.mxu0 0
    %2659 = vmatprep.subr.bf16.mxu0 0
    %2660 = vmatpush2.bf16.msra.mxu0 0
    %2661 = vmatprep.subr.bf16.mxu0 0
    %2662 = vmatpush2.bf16.msra.mxu0 0
    %2663 = vmatprep.subr.bf16.mxu0 0
    %2664 = vmatpush2.bf16.msra.mxu0 0
    %2665 = vmatprep.subr.bf16.mxu0 0
    %2666 = vmatpush2.bf16.msra.mxu0 0
    %2667 = vmatprep.subr.bf16.mxu0 0
    %2668 = vmatpush2.bf16.msra.mxu0 0
    %2669 = vmatprep.subr.bf16.mxu0 0
    %2670 = vmatpush2.bf16.msra.mxu0 0
    %2671 = vmatprep.mubr.bf16.mxu0 0
    %2672 = vmatmul.mubr.bf16.gmra.mxu0 %v2634
    %v2673 = vpop.f32.mrf.mxu0
    %v2674 = vadd.f32 0.0, %v2673
    %v2675 = vpop.f32.mrf.mxu0
    %v2676 = vpop.f32.mrf.mxu0
    %v2677 = vadd.f32 0.0, %v2676
    %v2678 = vpop.f32.mrf.mxu0
    %2679 = vmatprep.mubr.bf16.mxu0 0
    %2680 = vmatmul.mubr.bf16.gmra.mxu0 %v2637
    %v2681 = vpop.f32.mrf.mxu0
    %v2682 = vadd.f32 0.0, %v2681
    %v2683 = vpop.f32.mrf.mxu0
    %v2684 = vpop.f32.mrf.mxu0
    %v2685 = vadd.f32 0.0, %v2684
    %v2686 = vpop.f32.mrf.mxu0
    %2687 = vdwg.mxu0
    %2688 = vrot.lane.b32.xlu0 %v2320, 112
    %v2689 = vpop.permute.xlu0 %2688
    %2690 = vrot.lane.b32.xlu0 %v2321, 112
    %v2691 = vpop.permute.xlu0 %2690
    %2692 = vrot.lane.b32.xlu0 %v2320, 80
    %v2693 = vpop.permute.xlu0 %2692
    %2694 = vrot.lane.b32.xlu0 %v2321, 80
    %v2695 = vpop.permute.xlu0 %2694
    %v2697 = vsel %vm390, %v2689, 0
    %v2700 = vsel %vm390, %v2691, 0
    %v2703 = vsel %vm390, %v2693, 0
    %v2706 = vsel %vm390, %v2695, 0
    %2708 = vmatprep.subr.bf16.mxu0 0
    %2709 = vmatpush1.bf16.xpose.msra.mxu0 0
    %2710 = vmatprep.subr.bf16.mxu0 0
    %2711 = vmatpush1.bf16.xpose.msra.mxu0 0
    %2712 = vmatprep.subr.bf16.mxu0 0
    %2713 = vmatpush1.bf16.xpose.msra.mxu0 0
    %2714 = vmatprep.subr.bf16.mxu0 0
    %2715 = vmatpush1.bf16.xpose.msra.mxu0 0
    %2716 = vmatprep.subr.bf16.mxu0 0
    %2717 = vmatpush1.bf16.xpose.msra.mxu0 0
    %2718 = vmatprep.subr.bf16.mxu0 0
    %2719 = vmatpush1.bf16.xpose.msra.mxu0 0
    %2720 = vmatprep.subr.bf16.mxu0 0
    %2721 = vmatpush1.bf16.xpose.msra.mxu0 %v2706
    %2722 = vmatprep.subr.bf16.mxu0 0
    %2723 = vmatpush1.bf16.xpose.msra.mxu0 %v2703
    %2724 = vmatprep.subr.bf16.mxu0 0
    %2725 = vmatpush2.bf16.xpose.msra.mxu0 0
    %2726 = vmatprep.subr.bf16.mxu0 0
    %2727 = vmatpush2.bf16.xpose.msra.mxu0 0
    %2728 = vmatprep.subr.bf16.mxu0 0
    %2729 = vmatpush2.bf16.xpose.msra.mxu0 0
    %2730 = vmatprep.subr.bf16.mxu0 0
    %2731 = vmatpush2.bf16.xpose.msra.mxu0 0
    %2732 = vmatprep.subr.bf16.mxu0 0
    %2733 = vmatpush2.bf16.xpose.msra.mxu0 0
    %2734 = vmatprep.subr.bf16.mxu0 0
    %2735 = vmatpush2.bf16.xpose.msra.mxu0 0
    %2736 = vmatprep.subr.bf16.mxu0 0
    %2737 = vmatpush2.bf16.xpose.msra.mxu0 0
    %2738 = vmatprep.subr.bf16.mxu0 0
    %2739 = vmatpush2.bf16.xpose.msra.mxu0 0
    %2740 = vmatprep.mubr.bf16.mxu0 0
    %2741 = vmatmul.mubr.bf16.gmra.mxu0 %v2697
    %v2742 = vpop.f32.mrf.mxu0
    %v2743 = vadd.f32 0.0, %v2742
    %v2744 = vpop.f32.mrf.mxu0
    %v2745 = vpop.f32.mrf.mxu0
    %v2746 = vadd.f32 0.0, %v2745
    %v2747 = vpop.f32.mrf.mxu0
    %2748 = vmatprep.mubr.bf16.mxu0 0
    %2749 = vmatmul.mubr.bf16.gmra.mxu0 %v2700
    %v2750 = vpop.f32.mrf.mxu0
    %v2751 = vadd.f32 0.0, %v2750
    %v2752 = vpop.f32.mrf.mxu0
    %v2753 = vpop.f32.mrf.mxu0
    %v2754 = vadd.f32 0.0, %v2753
    %v2755 = vpop.f32.mrf.mxu0
    %2756 = vdwg.mxu0
    %v2757 = vmul.f32 %v2743, 0.35355338
    %v2758 = vmul.f32 %v2746, 0.35355338
    %v2759 = vmul.f32 %v2751, 0.35355338
    %v2760 = vmul.f32 %v2754, 0.35355338
    %v2761 = vadd.f32 %v2757, %v288
    %v2762 = vadd.f32 %v2758, %v289
    %v2763 = vadd.f32 %v2759, %v290
    %v2764 = vadd.f32 %v2760, %v291
    %v2765 = vsel %vm292, %v2761, -inf
    %2766 = vmax.xlane.f32.xlu0 %v2765
    %v2767 = vpop.xlane.xlu0 %2766
    %v2768 = vsel %vm292, %v2762, -inf
    %2769 = vmax.xlane.f32.xlu0 %v2768
    %v2770 = vpop.xlane.xlu0 %2769
    %v2771 = vsel %vm292, %v2763, -inf
    %2772 = vmax.xlane.f32.xlu0 %v2771
    %v2773 = vpop.xlane.xlu0 %2772
    %v2774 = vsel %vm292, %v2764, -inf
    %2775 = vmax.xlane.f32.xlu0 %v2774
    %v2776 = vpop.xlane.xlu0 %2775
    %v2777 = vsub.f32 %v2761, %v2767
    %v2778 = vsub.f32 %v2762, %v2770
    %v2779 = vsub.f32 %v2763, %v2773
    %v2780 = vsub.f32 %v2764, %v2776
    %v2781 = vmul.f32 %v2777, 1.442695
    %v2782 = vpow.pop %v2781
    %v2783 = vmul.f32 %v2778, 1.442695
    %v2784 = vpow.pop %v2783
    %v2785 = vmul.f32 %v2779, 1.442695
    %v2786 = vpow.pop %v2785
    %v2787 = vmul.f32 %v2780, 1.442695
    %v2788 = vpow.pop %v2787
    %v2789 = vsel %vm292, %v2782, 0.0
    %2790 = vadd.xlane.f32.xlu0 %v2789
    %v2791 = vpop.xlane.xlu0 %2790
    %v2792 = vsel %vm292, %v2784, 0.0
    %2793 = vadd.xlane.f32.xlu0 %v2792
    %v2794 = vpop.xlane.xlu0 %2793
    %v2795 = vsel %vm292, %v2786, 0.0
    %2796 = vadd.xlane.f32.xlu0 %v2795
    %v2797 = vpop.xlane.xlu0 %2796
    %v2798 = vsel %vm292, %v2788, 0.0
    %2799 = vadd.xlane.f32.xlu0 %v2798
    %v2800 = vpop.xlane.xlu0 %2799
    %v2801 = vrcp.pop %v2791
    %v2802 = vrcp.pop %v2794
    %v2803 = vrcp.pop %v2797
    %v2804 = vrcp.pop %v2800
    %v2805 = vmul.f32 %v2782, %v2801
    %v2806 = vmul.f32 %v2784, %v2802
    %v2807 = vmul.f32 %v2786, %v2803
    %v2808 = vmul.f32 %v2788, %v2804
    %v2809 = vpack.c.bf16 %v2806, %v2805
    %v2810 = vpack.c.bf16 %v2808, %v2807
    %2811 = vrot.lane.b32.xlu0 %v2320, 48
    %v2812 = vpop.permute.xlu0 %2811
    %2813 = vrot.lane.b32.xlu0 %v2321, 48
    %v2814 = vpop.permute.xlu0 %2813
    %v2818 = vsel %vm292, %v2809, 0
    %v2821 = vsel %vm292, %v2810, 0
    %2823 = vmatprep.subr.bf16.mxu0 0
    %2824 = vmatpush1.bf16.msra.mxu0 0
    %2825 = vmatprep.subr.bf16.mxu0 0
    %2826 = vmatpush1.bf16.msra.mxu0 0
    %2827 = vmatprep.subr.bf16.mxu0 0
    %2828 = vmatpush1.bf16.msra.mxu0 0
    %2829 = vmatprep.subr.bf16.mxu0 0
    %2830 = vmatpush1.bf16.msra.mxu0 0
    %2831 = vmatprep.subr.bf16.mxu0 0
    %2832 = vmatpush1.bf16.msra.mxu0 0
    %2833 = vmatprep.subr.bf16.mxu0 0
    %2834 = vmatpush1.bf16.msra.mxu0 0
    %2835 = vmatprep.subr.bf16.mxu0 0
    %2836 = vmatpush1.bf16.msra.mxu0 %v2814
    %2837 = vmatprep.subr.bf16.mxu0 0
    %2838 = vmatpush1.bf16.msra.mxu0 %v2812
    %2839 = vmatprep.subr.bf16.mxu0 0
    %2840 = vmatpush2.bf16.msra.mxu0 0
    %2841 = vmatprep.subr.bf16.mxu0 0
    %2842 = vmatpush2.bf16.msra.mxu0 0
    %2843 = vmatprep.subr.bf16.mxu0 0
    %2844 = vmatpush2.bf16.msra.mxu0 0
    %2845 = vmatprep.subr.bf16.mxu0 0
    %2846 = vmatpush2.bf16.msra.mxu0 0
    %2847 = vmatprep.subr.bf16.mxu0 0
    %2848 = vmatpush2.bf16.msra.mxu0 0
    %2849 = vmatprep.subr.bf16.mxu0 0
    %2850 = vmatpush2.bf16.msra.mxu0 0
    %2851 = vmatprep.subr.bf16.mxu0 0
    %2852 = vmatpush2.bf16.msra.mxu0 0
    %2853 = vmatprep.subr.bf16.mxu0 0
    %2854 = vmatpush2.bf16.msra.mxu0 0
    %2855 = vmatprep.mubr.bf16.mxu0 0
    %2856 = vmatmul.mubr.bf16.gmra.mxu0 %v2818
    %v2857 = vpop.f32.mrf.mxu0
    %v2858 = vadd.f32 0.0, %v2857
    %v2859 = vpop.f32.mrf.mxu0
    %v2860 = vpop.f32.mrf.mxu0
    %v2861 = vadd.f32 0.0, %v2860
    %v2862 = vpop.f32.mrf.mxu0
    %2863 = vmatprep.mubr.bf16.mxu0 0
    %2864 = vmatmul.mubr.bf16.gmra.mxu0 %v2821
    %v2865 = vpop.f32.mrf.mxu0
    %v2866 = vadd.f32 0.0, %v2865
    %v2867 = vpop.f32.mrf.mxu0
    %v2868 = vpop.f32.mrf.mxu0
    %v2869 = vadd.f32 0.0, %v2868
    %v2870 = vpop.f32.mrf.mxu0
    %2871 = vdwg.mxu0
    %2872 = vrot.lane.b32.xlu0 %v2320, 104
    %v2873 = vpop.permute.xlu0 %2872
    %2874 = vrot.lane.b32.xlu0 %v2321, 104
    %v2875 = vpop.permute.xlu0 %2874
    %2876 = vrot.lane.b32.xlu0 %v2320, 72
    %v2877 = vpop.permute.xlu0 %2876
    %2878 = vrot.lane.b32.xlu0 %v2321, 72
    %v2879 = vpop.permute.xlu0 %2878
    %v2881 = vsel %vm390, %v2873, 0
    %v2884 = vsel %vm390, %v2875, 0
    %v2887 = vsel %vm390, %v2877, 0
    %v2890 = vsel %vm390, %v2879, 0
    %2892 = vmatprep.subr.bf16.mxu0 0
    %2893 = vmatpush1.bf16.xpose.msra.mxu0 0
    %2894 = vmatprep.subr.bf16.mxu0 0
    %2895 = vmatpush1.bf16.xpose.msra.mxu0 0
    %2896 = vmatprep.subr.bf16.mxu0 0
    %2897 = vmatpush1.bf16.xpose.msra.mxu0 0
    %2898 = vmatprep.subr.bf16.mxu0 0
    %2899 = vmatpush1.bf16.xpose.msra.mxu0 0
    %2900 = vmatprep.subr.bf16.mxu0 0
    %2901 = vmatpush1.bf16.xpose.msra.mxu0 0
    %2902 = vmatprep.subr.bf16.mxu0 0
    %2903 = vmatpush1.bf16.xpose.msra.mxu0 0
    %2904 = vmatprep.subr.bf16.mxu0 0
    %2905 = vmatpush1.bf16.xpose.msra.mxu0 %v2890
    %2906 = vmatprep.subr.bf16.mxu0 0
    %2907 = vmatpush1.bf16.xpose.msra.mxu0 %v2887
    %2908 = vmatprep.subr.bf16.mxu0 0
    %2909 = vmatpush2.bf16.xpose.msra.mxu0 0
    %2910 = vmatprep.subr.bf16.mxu0 0
    %2911 = vmatpush2.bf16.xpose.msra.mxu0 0
    %2912 = vmatprep.subr.bf16.mxu0 0
    %2913 = vmatpush2.bf16.xpose.msra.mxu0 0
    %2914 = vmatprep.subr.bf16.mxu0 0
    %2915 = vmatpush2.bf16.xpose.msra.mxu0 0
    %2916 = vmatprep.subr.bf16.mxu0 0
    %2917 = vmatpush2.bf16.xpose.msra.mxu0 0
    %2918 = vmatprep.subr.bf16.mxu0 0
    %2919 = vmatpush2.bf16.xpose.msra.mxu0 0
    %2920 = vmatprep.subr.bf16.mxu0 0
    %2921 = vmatpush2.bf16.xpose.msra.mxu0 0
    %2922 = vmatprep.subr.bf16.mxu0 0
    %2923 = vmatpush2.bf16.xpose.msra.mxu0 0
    %2924 = vmatprep.mubr.bf16.mxu0 0
    %2925 = vmatmul.mubr.bf16.gmra.mxu0 %v2881
    %v2926 = vpop.f32.mrf.mxu0
    %v2927 = vadd.f32 0.0, %v2926
    %v2928 = vpop.f32.mrf.mxu0
    %v2929 = vpop.f32.mrf.mxu0
    %v2930 = vadd.f32 0.0, %v2929
    %v2931 = vpop.f32.mrf.mxu0
    %2932 = vmatprep.mubr.bf16.mxu0 0
    %2933 = vmatmul.mubr.bf16.gmra.mxu0 %v2884
    %v2934 = vpop.f32.mrf.mxu0
    %v2935 = vadd.f32 0.0, %v2934
    %v2936 = vpop.f32.mrf.mxu0
    %v2937 = vpop.f32.mrf.mxu0
    %v2938 = vadd.f32 0.0, %v2937
    %v2939 = vpop.f32.mrf.mxu0
    %2940 = vdwg.mxu0
    %v2941 = vmul.f32 %v2927, 0.35355338
    %v2942 = vmul.f32 %v2930, 0.35355338
    %v2943 = vmul.f32 %v2935, 0.35355338
    %v2944 = vmul.f32 %v2938, 0.35355338
    %v2945 = vadd.f32 %v2941, %v288
    %v2946 = vadd.f32 %v2942, %v289
    %v2947 = vadd.f32 %v2943, %v290
    %v2948 = vadd.f32 %v2944, %v291
    %v2949 = vsel %vm292, %v2945, -inf
    %2950 = vmax.xlane.f32.xlu0 %v2949
    %v2951 = vpop.xlane.xlu0 %2950
    %v2952 = vsel %vm292, %v2946, -inf
    %2953 = vmax.xlane.f32.xlu0 %v2952
    %v2954 = vpop.xlane.xlu0 %2953
    %v2955 = vsel %vm292, %v2947, -inf
    %2956 = vmax.xlane.f32.xlu0 %v2955
    %v2957 = vpop.xlane.xlu0 %2956
    %v2958 = vsel %vm292, %v2948, -inf
    %2959 = vmax.xlane.f32.xlu0 %v2958
    %v2960 = vpop.xlane.xlu0 %2959
    %v2961 = vsub.f32 %v2945, %v2951
    %v2962 = vsub.f32 %v2946, %v2954
    %v2963 = vsub.f32 %v2947, %v2957
    %v2964 = vsub.f32 %v2948, %v2960
    %v2965 = vmul.f32 %v2961, 1.442695
    %v2966 = vpow.pop %v2965
    %v2967 = vmul.f32 %v2962, 1.442695
    %v2968 = vpow.pop %v2967
    %v2969 = vmul.f32 %v2963, 1.442695
    %v2970 = vpow.pop %v2969
    %v2971 = vmul.f32 %v2964, 1.442695
    %v2972 = vpow.pop %v2971
    %v2973 = vsel %vm292, %v2966, 0.0
    %2974 = vadd.xlane.f32.xlu0 %v2973
    %v2975 = vpop.xlane.xlu0 %2974
    %v2976 = vsel %vm292, %v2968, 0.0
    %2977 = vadd.xlane.f32.xlu0 %v2976
    %v2978 = vpop.xlane.xlu0 %2977
    %v2979 = vsel %vm292, %v2970, 0.0
    %2980 = vadd.xlane.f32.xlu0 %v2979
    %v2981 = vpop.xlane.xlu0 %2980
    %v2982 = vsel %vm292, %v2972, 0.0
    %2983 = vadd.xlane.f32.xlu0 %v2982
    %v2984 = vpop.xlane.xlu0 %2983
    %v2985 = vrcp.pop %v2975
    %v2986 = vrcp.pop %v2978
    %v2987 = vrcp.pop %v2981
    %v2988 = vrcp.pop %v2984
    %v2989 = vmul.f32 %v2966, %v2985
    %v2990 = vmul.f32 %v2968, %v2986
    %v2991 = vmul.f32 %v2970, %v2987
    %v2992 = vmul.f32 %v2972, %v2988
    %v2993 = vpack.c.bf16 %v2990, %v2989
    %v2994 = vpack.c.bf16 %v2992, %v2991
    %2995 = vrot.lane.b32.xlu0 %v2320, 40
    %v2996 = vpop.permute.xlu0 %2995
    %2997 = vrot.lane.b32.xlu0 %v2321, 40
    %v2998 = vpop.permute.xlu0 %2997
    %v3002 = vsel %vm292, %v2993, 0
    %v3005 = vsel %vm292, %v2994, 0
    %3007 = vmatprep.subr.bf16.mxu0 0
    %3008 = vmatpush1.bf16.msra.mxu0 0
    %3009 = vmatprep.subr.bf16.mxu0 0
    %3010 = vmatpush1.bf16.msra.mxu0 0
    %3011 = vmatprep.subr.bf16.mxu0 0
    %3012 = vmatpush1.bf16.msra.mxu0 0
    %3013 = vmatprep.subr.bf16.mxu0 0
    %3014 = vmatpush1.bf16.msra.mxu0 0
    %3015 = vmatprep.subr.bf16.mxu0 0
    %3016 = vmatpush1.bf16.msra.mxu0 0
    %3017 = vmatprep.subr.bf16.mxu0 0
    %3018 = vmatpush1.bf16.msra.mxu0 0
    %3019 = vmatprep.subr.bf16.mxu0 0
    %3020 = vmatpush1.bf16.msra.mxu0 %v2998
    %3021 = vmatprep.subr.bf16.mxu0 0
    %3022 = vmatpush1.bf16.msra.mxu0 %v2996
    %3023 = vmatprep.subr.bf16.mxu0 0
    %3024 = vmatpush2.bf16.msra.mxu0 0
    %3025 = vmatprep.subr.bf16.mxu0 0
    %3026 = vmatpush2.bf16.msra.mxu0 0
    %3027 = vmatprep.subr.bf16.mxu0 0
    %3028 = vmatpush2.bf16.msra.mxu0 0
    %3029 = vmatprep.subr.bf16.mxu0 0
    %3030 = vmatpush2.bf16.msra.mxu0 0
    %3031 = vmatprep.subr.bf16.mxu0 0
    %3032 = vmatpush2.bf16.msra.mxu0 0
    %3033 = vmatprep.subr.bf16.mxu0 0
    %3034 = vmatpush2.bf16.msra.mxu0 0
    %3035 = vmatprep.subr.bf16.mxu0 0
    %3036 = vmatpush2.bf16.msra.mxu0 0
    %3037 = vmatprep.subr.bf16.mxu0 0
    %3038 = vmatpush2.bf16.msra.mxu0 0
    %3039 = vmatprep.mubr.bf16.mxu0 0
    %3040 = vmatmul.mubr.bf16.gmra.mxu0 %v3002
    %v3041 = vpop.f32.mrf.mxu0
    %v3042 = vadd.f32 0.0, %v3041
    %v3043 = vpop.f32.mrf.mxu0
    %v3044 = vpop.f32.mrf.mxu0
    %v3045 = vadd.f32 0.0, %v3044
    %v3046 = vpop.f32.mrf.mxu0
    %3047 = vmatprep.mubr.bf16.mxu0 0
    %3048 = vmatmul.mubr.bf16.gmra.mxu0 %v3005
    %v3049 = vpop.f32.mrf.mxu0
    %v3050 = vadd.f32 0.0, %v3049
    %v3051 = vpop.f32.mrf.mxu0
    %v3052 = vpop.f32.mrf.mxu0
    %v3053 = vadd.f32 0.0, %v3052
    %v3054 = vpop.f32.mrf.mxu0
    %3055 = vdwg.mxu0
    %3060 = vrot.lane.b32.xlu0 %v2674, 8
    %v3061 = vpop.permute.xlu0 %3060
    %3062 = vrot.lane.b32.xlu0 %v2677, 8
    %v3063 = vpop.permute.xlu0 %3062
    %3064 = vrot.lane.b32.xlu0 %v2682, 8
    %v3065 = vpop.permute.xlu0 %3064
    %3066 = vrot.lane.b32.xlu0 %v2685, 8
    %v3067 = vpop.permute.xlu0 %3066
    %3076 = vrot.lane.b32.xlu0 %v2858, 16
    %v3077 = vpop.permute.xlu0 %3076
    %3078 = vrot.lane.b32.xlu0 %v2861, 16
    %v3079 = vpop.permute.xlu0 %3078
    %3080 = vrot.lane.b32.xlu0 %v2866, 16
    %v3081 = vpop.permute.xlu0 %3080
    %3082 = vrot.lane.b32.xlu0 %v2869, 16
    %v3083 = vpop.permute.xlu0 %3082
    %3092 = vrot.lane.b32.xlu0 %v3042, 24
    %v3093 = vpop.permute.xlu0 %3092
    %3094 = vrot.lane.b32.xlu0 %v3045, 24
    %v3095 = vpop.permute.xlu0 %3094
    %3096 = vrot.lane.b32.xlu0 %v3050, 24
    %v3097 = vpop.permute.xlu0 %3096
    %3098 = vrot.lane.b32.xlu0 %v3053, 24
    %v3099 = vpop.permute.xlu0 %3098
    %v3104 = vsel %vm390, %v2490, %v3061
    %v3105 = vsel %vm390, %v2493, %v3063
    %v3106 = vsel %vm390, %v2498, %v3065
    %v3107 = vsel %vm390, %v2501, %v3067
    %v3108 = vsel %vm1491, %v3104, %v3077
    %v3109 = vsel %vm1491, %v3105, %v3079
    %v3110 = vsel %vm1491, %v3106, %v3081
    %v3111 = vsel %vm1491, %v3107, %v3083
    %v3112 = vsel %vm1496, %v3108, %v3093
    %v3113 = vsel %vm1496, %v3109, %v3095
    %v3114 = vsel %vm1496, %v3110, %v3097
    %v3115 = vsel %vm1496, %v3111, %v3099
    %v3116 = vpack.c.bf16 %v3113, %v3112
    %v3117 = vpack.c.bf16 %v3115, %v3114
    %v3118 = vld [vmem:[#allocation9] sm:$0xf]
    %v3119 = vld [vmem:[#allocation9 + $0x4] sm:$0xf]
    %v3120 = vld [vmem:[#allocation9 + $0x8] sm:$0xf]
    %v3121 = vld [vmem:[#allocation9 + $0xc] sm:$0xf]
    %v3122 = vld [vmem:[%s53] sm:$0x1]
    %v3124 = vlaneseq
    %v3125 = vshrl.u32 %v3124, 7
    %v3126 = vsub.s32 0, %v3125
    %v3127 = vrot.slane %v3122, %v3126
    %v3133 = vunpack.c.l.b16 %v3118
    %v3134 = vunpack.c.l.b16 %v3119
    %v3135 = vunpack.c.l.b16 %v3120
    %v3136 = vunpack.c.l.b16 %v3121
    %v3137 = vpack.c.b16 %v3134, %v3133
    %v3138 = vpack.c.b16 %v3136, %v3135
    %v3142 = vsel %vm292, %v3116, 0
    %v3145 = vsel %vm292, %v3117, 0
    %3147 = vmatprep.subr.bf16.mxu0 0
    %3148 = vmatpush1.bf16.msra.mxu0 0
    %3149 = vmatprep.subr.bf16.mxu0 0
    %3150 = vmatpush1.bf16.msra.mxu0 0
    %3151 = vmatprep.subr.bf16.mxu0 0
    %3152 = vmatpush1.bf16.msra.mxu0 0
    %3153 = vmatprep.subr.bf16.mxu0 0
    %3154 = vmatpush1.bf16.msra.mxu0 0
    %3155 = vmatprep.subr.bf16.mxu0 0
    %3156 = vmatpush1.bf16.msra.mxu0 0
    %3157 = vmatprep.subr.bf16.mxu0 0
    %3158 = vmatpush1.bf16.msra.mxu0 0
    %3159 = vmatprep.subr.bf16.mxu0 0
    %3160 = vmatpush1.bf16.msra.mxu0 %v3138
    %3161 = vmatprep.subr.bf16.mxu0 0
    %3162 = vmatpush1.bf16.msra.mxu0 %v3137
    %3163 = vmatprep.subr.bf16.mxu0 0
    %3164 = vmatpush2.bf16.msra.mxu0 0
    %3165 = vmatprep.subr.bf16.mxu0 0
    %3166 = vmatpush2.bf16.msra.mxu0 0
    %3167 = vmatprep.subr.bf16.mxu0 0
    %3168 = vmatpush2.bf16.msra.mxu0 0
    %3169 = vmatprep.subr.bf16.mxu0 0
    %3170 = vmatpush2.bf16.msra.mxu0 0
    %3171 = vmatprep.subr.bf16.mxu0 0
    %3172 = vmatpush2.bf16.msra.mxu0 0
    %3173 = vmatprep.subr.bf16.mxu0 0
    %3174 = vmatpush2.bf16.msra.mxu0 0
    %3175 = vmatprep.subr.bf16.mxu0 0
    %3176 = vmatpush2.bf16.msra.mxu0 0
    %3177 = vmatprep.subr.bf16.mxu0 0
    %3178 = vmatpush2.bf16.msra.mxu0 0
    %3179 = vmatprep.mubr.bf16.mxu0 0
    %3180 = vmatmul.mubr.bf16.gmra.mxu0 %v3142
    %v3181 = vpop.f32.mrf.mxu0
    %v3182 = vadd.f32 %v3127, %v3181
    %v3183 = vpop.f32.mrf.mxu0
    %v3184 = vpop.f32.mrf.mxu0
    %v3185 = vadd.f32 %v3127, %v3184
    %v3186 = vpop.f32.mrf.mxu0
    %3187 = vmatprep.mubr.bf16.mxu0 0
    %3188 = vmatmul.mubr.bf16.gmra.mxu0 %v3145
    %v3189 = vpop.f32.mrf.mxu0
    %v3190 = vadd.f32 %v3127, %v3189
    %v3191 = vpop.f32.mrf.mxu0
    %v3192 = vpop.f32.mrf.mxu0
    %v3193 = vadd.f32 %v3127, %v3192
    %v3194 = vpop.f32.mrf.mxu0
    %3195 = vdwg.mxu0
    %v3196 = vadd.f32 %v2226, %v3182
    %v3197 = vadd.f32 %v2229, %v3185
    %v3198 = vadd.f32 %v2234, %v3190
    %v3199 = vadd.f32 %v2237, %v3193
    %v3200 = vld [vmem:[%s55] sm:$0x1]
    %v3201 = vld [vmem:[%s57] sm:$0x1]
    %v3202 = vsel %vm292, %v3196, 0.0
    %3203 = vadd.xlane.f32.xlu0 %v3202
    %v3204 = vpop.xlane.xlu0 %3203
    %v3205 = vsel %vm292, %v3197, 0.0
    %3206 = vadd.xlane.f32.xlu0 %v3205
    %v3207 = vpop.xlane.xlu0 %3206
    %v3208 = vsel %vm292, %v3198, 0.0
    %3209 = vadd.xlane.f32.xlu0 %v3208
    %v3210 = vpop.xlane.xlu0 %3209
    %v3211 = vsel %vm292, %v3199, 0.0
    %3212 = vadd.xlane.f32.xlu0 %v3211
    %v3213 = vpop.xlane.xlu0 %3212
    %v3214 = vmul.f32 %v3204, %v1599
    %v3215 = vmul.f32 %v3207, %v1599
    %v3216 = vmul.f32 %v3210, %v1599
    %v3217 = vmul.f32 %v3213, %v1599
    %v3218 = vsub.f32 %v3196, %v3214
    %v3219 = vsub.f32 %v3197, %v3215
    %v3220 = vsub.f32 %v3198, %v3216
    %v3221 = vsub.f32 %v3199, %v3217
    %v3222 = vmul.f32 %v3218, %v3218
    %v3223 = vmul.f32 %v3219, %v3219
    %v3224 = vmul.f32 %v3220, %v3220
    %v3225 = vmul.f32 %v3221, %v3221
    %v3226 = vsel %vm292, %v3222, 0.0
    %3227 = vadd.xlane.f32.xlu0 %v3226
    %v3228 = vpop.xlane.xlu0 %3227
    %v3229 = vsel %vm292, %v3223, 0.0
    %3230 = vadd.xlane.f32.xlu0 %v3229
    %v3231 = vpop.xlane.xlu0 %3230
    %v3232 = vsel %vm292, %v3224, 0.0
    %3233 = vadd.xlane.f32.xlu0 %v3232
    %v3234 = vpop.xlane.xlu0 %3233
    %v3235 = vsel %vm292, %v3225, 0.0
    %3236 = vadd.xlane.f32.xlu0 %v3235
    %v3237 = vpop.xlane.xlu0 %3236
    %v3238 = vmul.f32 %v3228, %v1599
    %v3239 = vmul.f32 %v3231, %v1599
    %v3240 = vmul.f32 %v3234, %v1599
    %v3241 = vmul.f32 %v3237, %v1599
    %v3242 = vadd.f32 %v3238, 1e-05
    %v3243 = vadd.f32 %v3239, 1e-05
    %v3244 = vadd.f32 %v3240, 1e-05
    %v3245 = vadd.f32 %v3241, 1e-05
    %v3246 = vrsqrt.pop %v3242
    %v3247 = vrsqrt.pop %v3243
    %v3248 = vrsqrt.pop %v3244
    %v3249 = vrsqrt.pop %v3245
    %v3250 = vmul.f32 %v3218, %v3246
    %v3251 = vmul.f32 %v3219, %v3247
    %v3252 = vmul.f32 %v3220, %v3248
    %v3253 = vmul.f32 %v3221, %v3249
    %v3255 = vlaneseq
    %v3256 = vshrl.u32 %v3255, 7
    %v3257 = vsub.s32 0, %v3256
    %v3258 = vrot.slane %v3200, %v3257
    %v3260 = vmul.f32 %v3250, %v3258
    %v3261 = vmul.f32 %v3251, %v3258
    %v3262 = vmul.f32 %v3252, %v3258
    %v3263 = vmul.f32 %v3253, %v3258
    %v3265 = vlaneseq
    %v3266 = vshrl.u32 %v3265, 7
    %v3267 = vsub.s32 0, %v3266
    %v3268 = vrot.slane %v3201, %v3267
    %v3270 = vadd.f32 %v3260, %v3268
    %v3271 = vadd.f32 %v3261, %v3268
    %v3272 = vadd.f32 %v3262, %v3268
    %v3273 = vadd.f32 %v3263, %v3268
    %v3274 = vpack.c.bf16 %v3271, %v3270
    %v3275 = vpack.c.bf16 %v3273, %v3272
    %v3276 = vld [vmem:[#allocation10] sm:$0xf]
    %v3277 = vld [vmem:[#allocation10 + $0x4] sm:$0xf]
    %v3278 = vld [vmem:[#allocation10 + $0x8] sm:$0xf]
    %v3279 = vld [vmem:[#allocation10 + $0xc] sm:$0xf]
    %v3280 = vld [vmem:[%s61] sm:$0x1]
    %v3282 = vlaneseq
    %v3283 = vshrl.u32 %v3282, 7
    %v3284 = vsub.s32 0, %v3283
    %v3285 = vrot.slane %v3280, %v3284
    %v3291 = vunpack.c.l.b16 %v3276
    %v3292 = vunpack.c.l.b16 %v3277
    %v3293 = vunpack.c.l.b16 %v3278
    %v3294 = vunpack.c.l.b16 %v3279
    %v3295 = vpack.c.b16 %v3292, %v3291
    %v3296 = vpack.c.b16 %v3294, %v3293
    %v3300 = vsel %vm292, %v3274, 0
    %v3303 = vsel %vm292, %v3275, 0
    %3305 = vmatprep.subr.bf16.mxu0 0
    %3306 = vmatpush1.bf16.msra.mxu0 0
    %3307 = vmatprep.subr.bf16.mxu0 0
    %3308 = vmatpush1.bf16.msra.mxu0 0
    %3309 = vmatprep.subr.bf16.mxu0 0
    %3310 = vmatpush1.bf16.msra.mxu0 0
    %3311 = vmatprep.subr.bf16.mxu0 0
    %3312 = vmatpush1.bf16.msra.mxu0 0
    %3313 = vmatprep.subr.bf16.mxu0 0
    %3314 = vmatpush1.bf16.msra.mxu0 0
    %3315 = vmatprep.subr.bf16.mxu0 0
    %3316 = vmatpush1.bf16.msra.mxu0 0
    %3317 = vmatprep.subr.bf16.mxu0 0
    %3318 = vmatpush1.bf16.msra.mxu0 %v3296
    %3319 = vmatprep.subr.bf16.mxu0 0
    %3320 = vmatpush1.bf16.msra.mxu0 %v3295
    %3321 = vmatprep.subr.bf16.mxu0 0
    %3322 = vmatpush2.bf16.msra.mxu0 0
    %3323 = vmatprep.subr.bf16.mxu0 0
    %3324 = vmatpush2.bf16.msra.mxu0 0
    %3325 = vmatprep.subr.bf16.mxu0 0
    %3326 = vmatpush2.bf16.msra.mxu0 0
    %3327 = vmatprep.subr.bf16.mxu0 0
    %3328 = vmatpush2.bf16.msra.mxu0 0
    %3329 = vmatprep.subr.bf16.mxu0 0
    %3330 = vmatpush2.bf16.msra.mxu0 0
    %3331 = vmatprep.subr.bf16.mxu0 0
    %3332 = vmatpush2.bf16.msra.mxu0 0
    %3333 = vmatprep.subr.bf16.mxu0 0
    %3334 = vmatpush2.bf16.msra.mxu0 0
    %3335 = vmatprep.subr.bf16.mxu0 0
    %3336 = vmatpush2.bf16.msra.mxu0 0
    %3337 = vmatprep.mubr.bf16.mxu0 0
    %3338 = vmatmul.mubr.bf16.gmra.mxu0 %v3300
    %v3339 = vpop.f32.mrf.mxu0
    %v3340 = vadd.f32 %v3285, %v3339
    %v3341 = vpop.f32.mrf.mxu0
    %v3342 = vpop.f32.mrf.mxu0
    %v3343 = vadd.f32 %v3285, %v3342
    %v3344 = vpop.f32.mrf.mxu0
    %3345 = vmatprep.mubr.bf16.mxu0 0
    %3346 = vmatmul.mubr.bf16.gmra.mxu0 %v3303
    %v3347 = vpop.f32.mrf.mxu0
    %v3348 = vadd.f32 %v3285, %v3347
    %v3349 = vpop.f32.mrf.mxu0
    %v3350 = vpop.f32.mrf.mxu0
    %v3351 = vadd.f32 %v3285, %v3350
    %v3352 = vpop.f32.mrf.mxu0
    %3353 = vdwg.mxu0
    %v3354 = vmul.f32 %v3340, 0.5
    %v3355 = vmul.f32 %v3343, 0.5
    %v3356 = vmul.f32 %v3348, 0.5
    %v3357 = vmul.f32 %v3351, 0.5
    %v3358 = vmul.f32 %v3340, 0.044715
    %v3359 = vmul.f32 %v3343, 0.044715
    %v3360 = vmul.f32 %v3348, 0.044715
    %v3361 = vmul.f32 %v3351, 0.044715
    %v3362 = vmul.f32 %v3358, %v3340
    %v3363 = vmul.f32 %v3359, %v3343
    %v3364 = vmul.f32 %v3360, %v3348
    %v3365 = vmul.f32 %v3361, %v3351
    %v3366 = vmul.f32 %v3362, %v3340
    %v3367 = vmul.f32 %v3363, %v3343
    %v3368 = vmul.f32 %v3364, %v3348
    %v3369 = vmul.f32 %v3365, %v3351
    %v3370 = vadd.f32 %v3340, %v3366
    %v3371 = vadd.f32 %v3343, %v3367
    %v3372 = vadd.f32 %v3348, %v3368
    %v3373 = vadd.f32 %v3351, %v3369
    %v3374 = vmul.f32 %v3370, 0.7978846
    %v3375 = vmul.f32 %v3371, 0.7978846
    %v3376 = vmul.f32 %v3372, 0.7978846
    %v3377 = vmul.f32 %v3373, 0.7978846
    %v3378 = vtanh.pop %v3374
    %v3379 = vtanh.pop %v3375
    %v3380 = vtanh.pop %v3376
    %v3381 = vtanh.pop %v3377
    %v3382 = vadd.f32 %v3378, 1.0
    %v3383 = vadd.f32 %v3379, 1.0
    %v3384 = vadd.f32 %v3380, 1.0
    %v3385 = vadd.f32 %v3381, 1.0
    %v3386 = vmul.f32 %v3354, %v3382
    %v3387 = vmul.f32 %v3355, %v3383
    %v3388 = vmul.f32 %v3356, %v3384
    %v3389 = vmul.f32 %v3357, %v3385
    %v3390 = vpack.c.bf16 %v3387, %v3386
    %v3391 = vpack.c.bf16 %v3389, %v3388
    %v3392 = vld [vmem:[#allocation12] sm:$0xf]
    %v3393 = vld [vmem:[#allocation12 + $0x4] sm:$0xf]
    %v3394 = vld [vmem:[#allocation12 + $0x8] sm:$0xf]
    %v3395 = vld [vmem:[#allocation12 + $0xc] sm:$0xf]
    %v3396 = vld [vmem:[#allocation12 + $0x10] sm:$0xf]
    %v3397 = vld [vmem:[#allocation12 + $0x14] sm:$0xf]
    %v3398 = vld [vmem:[#allocation12 + $0x18] sm:$0xf]
    %v3399 = vld [vmem:[#allocation12 + $0x1c] sm:$0xf]
    %v3400 = vld [vmem:[%s65] sm:$0x1]
    %v3402 = vlaneseq
    %v3403 = vshrl.u32 %v3402, 7
    %v3404 = vsub.s32 0, %v3403
    %v3405 = vrot.slane %v3400, %v3404
    %v3415 = vunpack.c.l.b16 %v3392
    %v3416 = vunpack.c.l.b16 %v3393
    %v3417 = vunpack.c.l.b16 %v3394
    %v3418 = vunpack.c.l.b16 %v3395
    %v3419 = vunpack.c.l.b16 %v3396
    %v3420 = vunpack.c.l.b16 %v3397
    %v3421 = vunpack.c.l.b16 %v3398
    %v3422 = vunpack.c.l.b16 %v3399
    %v3423 = vpack.c.b16 %v3416, %v3415
    %v3424 = vpack.c.b16 %v3418, %v3417
    %v3425 = vpack.c.b16 %v3420, %v3419
    %v3426 = vpack.c.b16 %v3422, %v3421
    %v3432 = vsel %vm1817, %v3390, 0
    %v3435 = vsel %vm1817, %v3391, 0
    %3437 = vmatprep.subr.bf16.mxu0 0
    %3438 = vmatpush1.bf16.msra.mxu0 0
    %3439 = vmatprep.subr.bf16.mxu0 0
    %3440 = vmatpush1.bf16.msra.mxu0 0
    %3441 = vmatprep.subr.bf16.mxu0 0
    %3442 = vmatpush1.bf16.msra.mxu0 0
    %3443 = vmatprep.subr.bf16.mxu0 0
    %3444 = vmatpush1.bf16.msra.mxu0 0
    %3445 = vmatprep.subr.bf16.mxu0 0
    %3446 = vmatpush1.bf16.msra.mxu0 %v3426
    %3447 = vmatprep.subr.bf16.mxu0 0
    %3448 = vmatpush1.bf16.msra.mxu0 %v3425
    %3449 = vmatprep.subr.bf16.mxu0 0
    %3450 = vmatpush1.bf16.msra.mxu0 %v3424
    %3451 = vmatprep.subr.bf16.mxu0 0
    %3452 = vmatpush1.bf16.msra.mxu0 %v3423
    %3453 = vmatprep.subr.bf16.mxu0 0
    %3454 = vmatpush2.bf16.msra.mxu0 0
    %3455 = vmatprep.subr.bf16.mxu0 0
    %3456 = vmatpush2.bf16.msra.mxu0 0
    %3457 = vmatprep.subr.bf16.mxu0 0
    %3458 = vmatpush2.bf16.msra.mxu0 0
    %3459 = vmatprep.subr.bf16.mxu0 0
    %3460 = vmatpush2.bf16.msra.mxu0 0
    %3461 = vmatprep.subr.bf16.mxu0 0
    %3462 = vmatpush2.bf16.msra.mxu0 0
    %3463 = vmatprep.subr.bf16.mxu0 0
    %3464 = vmatpush2.bf16.msra.mxu0 0
    %3465 = vmatprep.subr.bf16.mxu0 0
    %3466 = vmatpush2.bf16.msra.mxu0 0
    %3467 = vmatprep.subr.bf16.mxu0 0
    %3468 = vmatpush2.bf16.msra.mxu0 0
    %3469 = vmatprep.mubr.bf16.mxu0 0
    %3470 = vmatmul.mubr.bf16.gmra.mxu0 %v3432
    %v3471 = vpop.f32.mrf.mxu0
    %v3472 = vadd.f32 %v3405, %v3471
    %v3473 = vpop.f32.mrf.mxu0
    %v3474 = vpop.f32.mrf.mxu0
    %v3475 = vadd.f32 %v3405, %v3474
    %v3476 = vpop.f32.mrf.mxu0
    %3477 = vmatprep.mubr.bf16.mxu0 0
    %3478 = vmatmul.mubr.bf16.gmra.mxu0 %v3435
    %v3479 = vpop.f32.mrf.mxu0
    %v3480 = vadd.f32 %v3405, %v3479
    %v3481 = vpop.f32.mrf.mxu0
    %v3482 = vpop.f32.mrf.mxu0
    %v3483 = vadd.f32 %v3405, %v3482
    %v3484 = vpop.f32.mrf.mxu0
    %3485 = vdwg.mxu0
    %v3486 = vadd.f32 %v3270, %v3472
    %v3487 = vadd.f32 %v3271, %v3475
    %v3488 = vadd.f32 %v3272, %v3480
    %v3489 = vadd.f32 %v3273, %v3483
    %v3490 = vld [vmem:[%s67] sm:$0x1]
    %v3491 = vld [vmem:[%s69] sm:$0x1]
    %v3492 = vsel %vm292, %v3486, 0.0
    %3493 = vadd.xlane.f32.xlu0 %v3492
    %v3494 = vpop.xlane.xlu0 %3493
    %v3495 = vsel %vm292, %v3487, 0.0
    %3496 = vadd.xlane.f32.xlu0 %v3495
    %v3497 = vpop.xlane.xlu0 %3496
    %v3498 = vsel %vm292, %v3488, 0.0
    %3499 = vadd.xlane.f32.xlu0 %v3498
    %v3500 = vpop.xlane.xlu0 %3499
    %v3501 = vsel %vm292, %v3489, 0.0
    %3502 = vadd.xlane.f32.xlu0 %v3501
    %v3503 = vpop.xlane.xlu0 %3502
    %v3504 = vmul.f32 %v3494, %v1599
    %v3505 = vmul.f32 %v3497, %v1599
    %v3506 = vmul.f32 %v3500, %v1599
    %v3507 = vmul.f32 %v3503, %v1599
    %v3508 = vsub.f32 %v3486, %v3504
    %v3509 = vsub.f32 %v3487, %v3505
    %v3510 = vsub.f32 %v3488, %v3506
    %v3511 = vsub.f32 %v3489, %v3507
    %v3512 = vmul.f32 %v3508, %v3508
    %v3513 = vmul.f32 %v3509, %v3509
    %v3514 = vmul.f32 %v3510, %v3510
    %v3515 = vmul.f32 %v3511, %v3511
    %v3516 = vsel %vm292, %v3512, 0.0
    %3517 = vadd.xlane.f32.xlu0 %v3516
    %v3518 = vpop.xlane.xlu0 %3517
    %v3519 = vsel %vm292, %v3513, 0.0
    %3520 = vadd.xlane.f32.xlu0 %v3519
    %v3521 = vpop.xlane.xlu0 %3520
    %v3522 = vsel %vm292, %v3514, 0.0
    %3523 = vadd.xlane.f32.xlu0 %v3522
    %v3524 = vpop.xlane.xlu0 %3523
    %v3525 = vsel %vm292, %v3515, 0.0
    %3526 = vadd.xlane.f32.xlu0 %v3525
    %v3527 = vpop.xlane.xlu0 %3526
    %v3528 = vmul.f32 %v3518, %v1599
    %v3529 = vmul.f32 %v3521, %v1599
    %v3530 = vmul.f32 %v3524, %v1599
    %v3531 = vmul.f32 %v3527, %v1599
    %v3532 = vadd.f32 %v3528, 1e-05
    %v3533 = vadd.f32 %v3529, 1e-05
    %v3534 = vadd.f32 %v3530, 1e-05
    %v3535 = vadd.f32 %v3531, 1e-05
    %v3536 = vrsqrt.pop %v3532
    %v3537 = vrsqrt.pop %v3533
    %v3538 = vrsqrt.pop %v3534
    %v3539 = vrsqrt.pop %v3535
    %v3540 = vmul.f32 %v3508, %v3536
    %v3541 = vmul.f32 %v3509, %v3537
    %v3542 = vmul.f32 %v3510, %v3538
    %v3543 = vmul.f32 %v3511, %v3539
    %v3545 = vlaneseq
    %v3546 = vshrl.u32 %v3545, 7
    %v3547 = vsub.s32 0, %v3546
    %v3548 = vrot.slane %v3490, %v3547
    %v3550 = vmul.f32 %v3540, %v3548
    %v3551 = vmul.f32 %v3541, %v3548
    %v3552 = vmul.f32 %v3542, %v3548
    %v3553 = vmul.f32 %v3543, %v3548
    %v3555 = vlaneseq
    %v3556 = vshrl.u32 %v3555, 7
    %v3557 = vsub.s32 0, %v3556
    %v3558 = vrot.slane %v3491, %v3557
    %v3560 = vadd.f32 %v3550, %v3558
    %v3561 = vadd.f32 %v3551, %v3558
    %v3562 = vadd.f32 %v3552, %v3558
    %v3563 = vadd.f32 %v3553, %v3558
    %v3564 = vld [vmem:[%s71] sm:$0x1]
    %v3565 = vld [vmem:[%s73] sm:$0x1]
    %v3566 = vsel %vm292, %v3560, 0.0
    %3567 = vadd.xlane.f32.xlu0 %v3566
    %v3568 = vpop.xlane.xlu0 %3567
    %v3569 = vsel %vm292, %v3561, 0.0
    %3570 = vadd.xlane.f32.xlu0 %v3569
    %v3571 = vpop.xlane.xlu0 %3570
    %v3572 = vsel %vm292, %v3562, 0.0
    %3573 = vadd.xlane.f32.xlu0 %v3572
    %v3574 = vpop.xlane.xlu0 %3573
    %v3575 = vsel %vm292, %v3563, 0.0
    %3576 = vadd.xlane.f32.xlu0 %v3575
    %v3577 = vpop.xlane.xlu0 %3576
    %v3578 = vmul.f32 %v3568, %v1599
    %v3579 = vmul.f32 %v3571, %v1599
    %v3580 = vmul.f32 %v3574, %v1599
    %v3581 = vmul.f32 %v3577, %v1599
    %v3582 = vsub.f32 %v3560, %v3578
    %v3583 = vsub.f32 %v3561, %v3579
    %v3584 = vsub.f32 %v3562, %v3580
    %v3585 = vsub.f32 %v3563, %v3581
    %v3586 = vmul.f32 %v3582, %v3582
    %v3587 = vmul.f32 %v3583, %v3583
    %v3588 = vmul.f32 %v3584, %v3584
    %v3589 = vmul.f32 %v3585, %v3585
    %v3590 = vsel %vm292, %v3586, 0.0
    %3591 = vadd.xlane.f32.xlu0 %v3590
    %v3592 = vpop.xlane.xlu0 %3591
    %v3593 = vsel %vm292, %v3587, 0.0
    %3594 = vadd.xlane.f32.xlu0 %v3593
    %v3595 = vpop.xlane.xlu0 %3594
    %v3596 = vsel %vm292, %v3588, 0.0
    %3597 = vadd.xlane.f32.xlu0 %v3596
    %v3598 = vpop.xlane.xlu0 %3597
    %v3599 = vsel %vm292, %v3589, 0.0
    %3600 = vadd.xlane.f32.xlu0 %v3599
    %v3601 = vpop.xlane.xlu0 %3600
    %v3602 = vmul.f32 %v3592, %v1599
    %v3603 = vmul.f32 %v3595, %v1599
    %v3604 = vmul.f32 %v3598, %v1599
    %v3605 = vmul.f32 %v3601, %v1599
    %v3606 = vadd.f32 %v3602, 1e-05
    %v3607 = vadd.f32 %v3603, 1e-05
    %v3608 = vadd.f32 %v3604, 1e-05
    %v3609 = vadd.f32 %v3605, 1e-05
    %v3610 = vrsqrt.pop %v3606
    %v3611 = vrsqrt.pop %v3607
    %v3612 = vrsqrt.pop %v3608
    %v3613 = vrsqrt.pop %v3609
    %v3614 = vmul.f32 %v3582, %v3610
    %v3615 = vmul.f32 %v3583, %v3611
    %v3616 = vmul.f32 %v3584, %v3612
    %v3617 = vmul.f32 %v3585, %v3613
    %v3619 = vlaneseq
    %v3620 = vshrl.u32 %v3619, 7
    %v3621 = vsub.s32 0, %v3620
    %v3622 = vrot.slane %v3564, %v3621
    %v3624 = vmul.f32 %v3614, %v3622
    %v3625 = vmul.f32 %v3615, %v3622
    %v3626 = vmul.f32 %v3616, %v3622
    %v3627 = vmul.f32 %v3617, %v3622
    %v3629 = vlaneseq
    %v3630 = vshrl.u32 %v3629, 7
    %v3631 = vsub.s32 0, %v3630
    %v3632 = vrot.slane %v3565, %v3631
    %v3634 = vadd.f32 %v3624, %v3632
    %v3635 = vadd.f32 %v3625, %v3632
    %v3636 = vadd.f32 %v3626, %v3632
    %v3637 = vadd.f32 %v3627, %v3632
    %v3638 = vpack.c.bf16 %v3635, %v3634
    %v3639 = vpack.c.bf16 %v3637, %v3636
    %v3640 = vld [vmem:[#allocation13] sm:$0xf]
    %v3641 = vld [vmem:[#allocation13 + $0x4] sm:$0xf]
    %v3642 = vld [vmem:[#allocation13 + $0x8] sm:$0xf]
    %v3643 = vld [vmem:[#allocation13 + $0xc] sm:$0xf]
    %v3644 = vld [vmem:[%s77] sm:$0x1]
    %v3646 = vlaneseq
    %v3647 = vshrl.u32 %v3646, 7
    %v3648 = vsub.s32 0, %v3647
    %v3649 = vrot.slane %v3644, %v3648
    %v3655 = vunpack.c.l.b16 %v3640
    %v3656 = vunpack.c.l.b16 %v3641
    %v3657 = vunpack.c.l.b16 %v3642
    %v3658 = vunpack.c.l.b16 %v3643
    %v3659 = vpack.c.b16 %v3656, %v3655
    %v3660 = vpack.c.b16 %v3658, %v3657
    %v3664 = vsel %vm292, %v3638, 0
    %v3667 = vsel %vm292, %v3639, 0
    %3669 = vmatprep.subr.bf16.mxu0 0
    %3670 = vmatpush1.bf16.msra.mxu0 0
    %3671 = vmatprep.subr.bf16.mxu0 0
    %3672 = vmatpush1.bf16.msra.mxu0 0
    %3673 = vmatprep.subr.bf16.mxu0 0
    %3674 = vmatpush1.bf16.msra.mxu0 0
    %3675 = vmatprep.subr.bf16.mxu0 0
    %3676 = vmatpush1.bf16.msra.mxu0 0
    %3677 = vmatprep.subr.bf16.mxu0 0
    %3678 = vmatpush1.bf16.msra.mxu0 0
    %3679 = vmatprep.subr.bf16.mxu0 0
    %3680 = vmatpush1.bf16.msra.mxu0 0
    %3681 = vmatprep.subr.bf16.mxu0 0
    %3682 = vmatpush1.bf16.msra.mxu0 %v3660
    %3683 = vmatprep.subr.bf16.mxu0 0
    %3684 = vmatpush1.bf16.msra.mxu0 %v3659
    %3685 = vmatprep.subr.bf16.mxu0 0
    %3686 = vmatpush2.bf16.msra.mxu0 0
    %3687 = vmatprep.subr.bf16.mxu0 0
    %3688 = vmatpush2.bf16.msra.mxu0 0
    %3689 = vmatprep.subr.bf16.mxu0 0
    %3690 = vmatpush2.bf16.msra.mxu0 0
    %3691 = vmatprep.subr.bf16.mxu0 0
    %3692 = vmatpush2.bf16.msra.mxu0 0
    %3693 = vmatprep.subr.bf16.mxu0 0
    %3694 = vmatpush2.bf16.msra.mxu0 0
    %3695 = vmatprep.subr.bf16.mxu0 0
    %3696 = vmatpush2.bf16.msra.mxu0 0
    %3697 = vmatprep.subr.bf16.mxu0 0
    %3698 = vmatpush2.bf16.msra.mxu0 0
    %3699 = vmatprep.subr.bf16.mxu0 0
    %3700 = vmatpush2.bf16.msra.mxu0 0
    %3701 = vmatprep.mubr.bf16.mxu0 0
    %3702 = vmatmul.mubr.bf16.gmra.mxu0 %v3664
    %v3703 = vpop.f32.mrf.mxu0
    %v3704 = vadd.f32 %v3649, %v3703
    %v3705 = vpop.f32.mrf.mxu0
    %v3706 = vpop.f32.mrf.mxu0
    %v3707 = vadd.f32 %v3649, %v3706
    %v3708 = vpop.f32.mrf.mxu0
    %3709 = vmatprep.mubr.bf16.mxu0 0
    %3710 = vmatmul.mubr.bf16.gmra.mxu0 %v3667
    %v3711 = vpop.f32.mrf.mxu0
    %v3712 = vadd.f32 %v3649, %v3711
    %v3713 = vpop.f32.mrf.mxu0
    %v3714 = vpop.f32.mrf.mxu0
    %v3715 = vadd.f32 %v3649, %v3714
    %v3716 = vpop.f32.mrf.mxu0
    %3717 = vdwg.mxu0
    %v3718 = vadd.f32 %v2105, %v3704
    %v3719 = vadd.f32 %v2106, %v3707
    %v3720 = vadd.f32 %v2107, %v3712
    %v3721 = vadd.f32 %v2108, %v3715
    %v3722 = vmul.f32 %v3718, %v527
    %v3723 = vmul.f32 %v3719, %v534
    %v3724 = vmul.f32 %v3720, %v541
    %v3725 = vmul.f32 %v3721, %v548
    %v3726 = vadd.f32 %v3722, %v404
    %v3727 = vadd.f32 %v3723, %v405
    %v3728 = vadd.f32 %v3724, %v406
    %v3729 = vadd.f32 %v3725, %v407
    %3730 = vst.msk [vmem:[%s79] sm:$0xff] %vm390, %v3726
    %3731 = vst.msk [vmem:[%s79 + $0x8] sm:$0xff] %vm390, %v3727
    %3732 = vst.msk [vmem:[%s79 + $0x10] sm:$0xff] %vm390, %v3728
    %3733 = vst.msk [vmem:[%s79 + $0x18] sm:$0xff] %vm390, %v3729
    // Predicated region
    $region190: #{_lambda_.1} parent=1 // pred_check
      _
    $region191: #{_lambda_.1} parent=1 // pred_check_branch
      %3735 = sbr.rel (0) target = $region193
    $region192: #{_lambda_.1} parent=1 // pred_region
      _
    $region193: #{_lambda_.1} parent=1 // pred_fallthru
      _
    // Predicated region
    $region194: #{_lambda_.1} parent=1 // pred_check
      _
    $region195: #{_lambda_.1} parent=1 // pred_check_branch
      %3737 = sbr.rel (0) target = $region197
    $region196: #{_lambda_.1} parent=1 // pred_region
      _
    $region197: #{_lambda_.1} parent=1 // pred_fallthru
      _
    %3738 = vsyncpa [#allocation3], 1
    %3739 = vsyncpa [#allocation5], 1
    %3740 = vsyncpa [#allocation8], 1
    %3741 = vsyncpa [#allocation11], 1
    %3742 = vsyncpa [#allocation14], 1

</llo_original>
